<compile_context>
chip_gen: v5e
topology: v5e:2x2
jax: 0.10.0
libtpu: 0.0.40
codegen_flags: <defaults>
</compile_context>

<pallas_src>
import functools

import jax
import jax.numpy as jnp
from jax.experimental import pallas as pl
from jax.experimental.pallas import tpu as pltpu

# Model hyper-parameters (from the PyTorch module construction).
INPUT_SIZE = 11
HIDDEN_LAYERS = [11, 10, 15]
OUTPUT_SIZE = 1
DIMS = [INPUT_SIZE] + HIDDEN_LAYERS + [OUTPUT_SIZE]
PARAM_COUNT = sum(DIMS[i] * DIMS[i + 1] + DIMS[i + 1] for i in range(len(DIMS) - 1))

LANE = 128                 # samples per lane row
SUB = 8                    # sublane multiple for f32 blocks
TILE_ROWS_DEFAULT = 2048   # samples per grid step (16 sublane-rows): register
                           # resident (~52 live vregs peak), amortizes the
                           # ~0.35us grid-step overhead; sweep upward on v6e if
                           # batches are huge (spills appear past ~2048).


def _round_up(n, m):
    return ((n + m - 1) // m) * m


def _mlp_kernel(params_ref, x_ref, out_ref):
    """Fused MLP on one batch tile, feature-major / batch-on-lanes.

    params_ref : (PARAM_COUNT,) f32 in SMEM.  Per layer: W (fan_in*fan_out,
                 row-major (in, out)) followed by b (fan_out,).
    x_ref      : (11, tile_sub, 128) f32 VMEM -- feature-major input, batch on
                 (sublane, lane).
    out_ref    : (tile_sub, 128) f32 VMEM -- lane-dense sigmoid output.
    """
    # Each feature row is a dense (tile_sub, 128) tile -> full vreg utilization.
    h = [x_ref[i] for i in range(INPUT_SIZE)]

    off = 0
    for l in range(len(DIMS) - 1):
        fan_in, fan_out = DIMS[l], DIMS[l + 1]
        w_off = off
        b_off = off + fan_in * fan_out
        off = b_off + fan_out
        last = l == len(DIMS) - 2

        new_h = []
        for j in range(fan_out):
            # out_j = sum_i W[i, j] * h_i + b_j  (scalar-broadcast VPU MACs;
            # all SMEM offsets are compile-time constants).
            acc = h[0] * params_ref[w_off + j]
            for i in range(1, fan_in):
                acc = acc + h[i] * params_ref[w_off + i * fan_out + j]
            acc = acc + params_ref[b_off + j]
            new_h.append(acc if last else jnp.maximum(acc, 0.0))
        h = new_h

    # Output layer produced a single logit row; sigmoid on the EUP.
    out_ref[...] = jax.nn.sigmoid(h[0])


def pack_params(params):
    """One-time flattening of the 4 (W, b) pairs into a single f32 vector.

    params: list of (W, b) with W shaped (in_features, out_features).
    """
    flat = []
    for w, b in params:
        flat.append(w.astype(jnp.float32).reshape(-1))
        flat.append(b.astype(jnp.float32).reshape(-1))
    packed = jnp.concatenate(flat)
    assert packed.shape[0] == PARAM_COUNT
    return packed


@functools.partial(jax.jit, static_argnames=("tile_rows",))
def heart_disease_ann_forward(x, params_flat, tile_rows=TILE_ROWS_DEFAULT):
    """x: (B, 11) float32.  params_flat from pack_params().  Returns (B, 1)."""
    b = x.shape[0]

    # Batch -> (sublane-rows of 128 lanes).  Tile over sublane-rows.
    sub_total = _round_up(b, LANE) // LANE
    tile_sub_req = max(tile_rows // LANE, 1)
    if sub_total <= tile_sub_req:
        tile_sub = sub_total                      # single tile == full extent
    else:
        tile_sub = max((tile_sub_req // SUB) * SUB, SUB)   # multiple of 8
    sub_total_p = _round_up(sub_total, tile_sub)
    bp = sub_total_p * LANE
    num_tiles = sub_total_p // tile_sub

    # Layout plumbing in the wrapper (not compute hoisting): feature-major,
    # batch split across (sublane, lane).  Padded rows are zero and their
    # outputs are discarded by the final slice.
    x_pad = jnp.pad(x.astype(jnp.float32), ((0, bp - b), (0, 0)))       # (bp, 11)
    x_fm = x_pad.T.reshape(INPUT_SIZE, sub_total_p, LANE)               # (11, SP, 128)

    out = pl.pallas_call(
        _mlp_kernel,
        out_shape=jax.ShapeDtypeStruct((sub_total_p, LANE), jnp.float32),
        grid=(num_tiles,),
        in_specs=[
            # All parameters as scalars in SMEM (~2 KB padded), read statically.
            pl.BlockSpec(memory_space=pltpu.MemorySpace.SMEM),
            # Feature-major input tile: dense (tile_sub, 128) last dims.
            pl.BlockSpec((INPUT_SIZE, tile_sub, LANE), lambda i: (0, i, 0)),
        ],
        # Lane-dense output block (no last-dim-1 masked stores).
        out_specs=pl.BlockSpec((tile_sub, LANE), lambda i: (i, 0)),
        compiler_params=pltpu.CompilerParams(
            dimension_semantics=("parallel",)),
    )(params_flat, x_fm)

    # Un-flatten back to the PyTorch (B, 1) shape; drops padded rows.
    return out.reshape(bp)[:b].reshape(b, OUTPUT_SIZE)


def init_params(key):
    """Deterministic init mimicking nn.Linear (uniform +/- 1/sqrt(fan_in)).
    Weights stored as (in_features, out_features) = transpose of PyTorch."""
    params = []
    for i in range(len(DIMS) - 1):
        fan_in, fan_out = DIMS[i], DIMS[i + 1]
        key, kw, kb = jax.random.split(key, 3)
        bound = 1.0 / jnp.sqrt(fan_in)
        w = jax.random.uniform(kw, (fan_in, fan_out), jnp.float32, -bound, bound)
        b = jax.random.uniform(kb, (fan_out,), jnp.float32, -bound, bound)
        params.append((w, b))
    return params


def _reference_forward(x, params):
    h = x
    for i, (w, b) in enumerate(params):
        h = jnp.dot(h, w, precision=jax.lax.Precision.HIGHEST) + b
        h = jnp.maximum(h, 0.0) if i < len(params) - 1 else jax.nn.sigmoid(h)
    return h


# TODO(synk): trainModel / BCELoss / Adam / getAccuracy / plotting are training
# utilities, not part of the forward pass; only inference is implemented.

if __name__ == "__main__":
    key = jax.random.PRNGKey(0)
    kx, kx2, kp = jax.random.split(key, 3)

    params = init_params(kp)
    params_flat = pack_params(params)   # hoisted one-time packing

    # Small demo batch (single grid step).
    batch = 2
    x = jax.random.normal(kx, (batch, INPUT_SIZE), dtype=jnp.float32)
    out = jax.block_until_ready(heart_disease_ann_forward(x, params_flat))
    ref = _reference_forward(x, params)
    assert out.shape == (batch, OUTPUT_SIZE)
    # Full-f32 VPU path -> tight tolerance vs the f32 reference.
    assert jnp.allclose(out, ref, atol=1e-5, rtol=1e-5)

    # Also exercise the multi-tile (pipelined, padded-last-tile) path.
    batch2 = 2500
    x2 = jax.random.normal(kx2, (batch2, INPUT_SIZE), dtype=jnp.float32)
    out2 = jax.block_until_ready(
        heart_disease_ann_forward(x2, params_flat, tile_rows=1024))  # grid=(3,)
    ref2 = _reference_forward(x2, params)
    assert out2.shape == (batch2, OUTPUT_SIZE)
    assert jnp.allclose(out2, ref2, atol=1e-5, rtol=1e-5)

    print("KERNEL_OK")
</pallas_src>

<mosaic_0001>
module attributes {stable_mosaic.version = 11 : i64} {
  func.func @_mlp_kernel(%arg0: i32, %arg1: memref<433xf32, #tpu.memory_space<smem>>, %arg2: memref<11x1x128xf32, #tpu.memory_space<vmem>>, %arg3: memref<1x128xf32, #tpu.memory_space<vmem>>) attributes {dimension_semantics = [#tpu.dimension_semantics<parallel>], iteration_bounds = array<i64: 1>, scalar_prefetch = 0 : i64, scratch_operands = 0 : i64, tpu.core_type = #tpu.core_type<tc>, window_params = [{transform_indices = @transform_0, window_bounds = array<i64: 433>}, {transform_indices = @transform_1, window_bounds = array<i64: 11, 1, 128>}, {transform_indices = @transform_2, window_bounds = array<i64: 1, 128>}]} {
    %c0 = arith.constant 0 : index
    %c0_0 = arith.constant 0 : index
    %c0_1 = arith.constant 0 : index
    %0 = vector.load %arg2[%c0, %c0_0, %c0_1] : memref<11x1x128xf32, #tpu.memory_space<vmem>>, vector<1x1x128xf32>
    %1 = vector.shape_cast %0 : vector<1x1x128xf32> to vector<1x128xf32>
    %c1 = arith.constant 1 : index
    %c0_2 = arith.constant 0 : index
    %c0_3 = arith.constant 0 : index
    %2 = vector.load %arg2[%c1, %c0_2, %c0_3] : memref<11x1x128xf32, #tpu.memory_space<vmem>>, vector<1x1x128xf32>
    %3 = vector.shape_cast %2 : vector<1x1x128xf32> to vector<1x128xf32>
    %c2 = arith.constant 2 : index
    %c0_4 = arith.constant 0 : index
    %c0_5 = arith.constant 0 : index
    %4 = vector.load %arg2[%c2, %c0_4, %c0_5] : memref<11x1x128xf32, #tpu.memory_space<vmem>>, vector<1x1x128xf32>
    %5 = vector.shape_cast %4 : vector<1x1x128xf32> to vector<1x128xf32>
    %c3 = arith.constant 3 : index
    %c0_6 = arith.constant 0 : index
    %c0_7 = arith.constant 0 : index
    %6 = vector.load %arg2[%c3, %c0_6, %c0_7] : memref<11x1x128xf32, #tpu.memory_space<vmem>>, vector<1x1x128xf32>
    %7 = vector.shape_cast %6 : vector<1x1x128xf32> to vector<1x128xf32>
    %c4 = arith.constant 4 : index
    %c0_8 = arith.constant 0 : index
    %c0_9 = arith.constant 0 : index
    %8 = vector.load %arg2[%c4, %c0_8, %c0_9] : memref<11x1x128xf32, #tpu.memory_space<vmem>>, vector<1x1x128xf32>
    %9 = vector.shape_cast %8 : vector<1x1x128xf32> to vector<1x128xf32>
    %c5 = arith.constant 5 : index
    %c0_10 = arith.constant 0 : index
    %c0_11 = arith.constant 0 : index
    %10 = vector.load %arg2[%c5, %c0_10, %c0_11] : memref<11x1x128xf32, #tpu.memory_space<vmem>>, vector<1x1x128xf32>
    %11 = vector.shape_cast %10 : vector<1x1x128xf32> to vector<1x128xf32>
    %c6 = arith.constant 6 : index
    %c0_12 = arith.constant 0 : index
    %c0_13 = arith.constant 0 : index
    %12 = vector.load %arg2[%c6, %c0_12, %c0_13] : memref<11x1x128xf32, #tpu.memory_space<vmem>>, vector<1x1x128xf32>
    %13 = vector.shape_cast %12 : vector<1x1x128xf32> to vector<1x128xf32>
    %c7 = arith.constant 7 : index
    %c0_14 = arith.constant 0 : index
    %c0_15 = arith.constant 0 : index
    %14 = vector.load %arg2[%c7, %c0_14, %c0_15] : memref<11x1x128xf32, #tpu.memory_space<vmem>>, vector<1x1x128xf32>
    %15 = vector.shape_cast %14 : vector<1x1x128xf32> to vector<1x128xf32>
    %c8 = arith.constant 8 : index
    %c0_16 = arith.constant 0 : index
    %c0_17 = arith.constant 0 : index
    %16 = vector.load %arg2[%c8, %c0_16, %c0_17] : memref<11x1x128xf32, #tpu.memory_space<vmem>>, vector<1x1x128xf32>
    %17 = vector.shape_cast %16 : vector<1x1x128xf32> to vector<1x128xf32>
    %c9 = arith.constant 9 : index
    %c0_18 = arith.constant 0 : index
    %c0_19 = arith.constant 0 : index
    %18 = vector.load %arg2[%c9, %c0_18, %c0_19] : memref<11x1x128xf32, #tpu.memory_space<vmem>>, vector<1x1x128xf32>
    %19 = vector.shape_cast %18 : vector<1x1x128xf32> to vector<1x128xf32>
    %c10 = arith.constant 10 : index
    %c0_20 = arith.constant 0 : index
    %c0_21 = arith.constant 0 : index
    %20 = vector.load %arg2[%c10, %c0_20, %c0_21] : memref<11x1x128xf32, #tpu.memory_space<vmem>>, vector<1x1x128xf32>
    %21 = vector.shape_cast %20 : vector<1x1x128xf32> to vector<1x128xf32>
    %c0_22 = arith.constant 0 : index
    %22 = memref.load %arg1[%c0_22] : memref<433xf32, #tpu.memory_space<smem>>
    %23 = vector.broadcast %22 : f32 to vector<1x128xf32>
    %24 = arith.mulf %1, %23 : vector<1x128xf32>
    %c11 = arith.constant 11 : index
    %25 = memref.load %arg1[%c11] : memref<433xf32, #tpu.memory_space<smem>>
    %26 = vector.broadcast %25 : f32 to vector<1x128xf32>
    %27 = arith.mulf %3, %26 : vector<1x128xf32>
    %28 = arith.addf %24, %27 : vector<1x128xf32>
    %c22 = arith.constant 22 : index
    %29 = memref.load %arg1[%c22] : memref<433xf32, #tpu.memory_space<smem>>
    %30 = vector.broadcast %29 : f32 to vector<1x128xf32>
    %31 = arith.mulf %5, %30 : vector<1x128xf32>
    %32 = arith.addf %28, %31 : vector<1x128xf32>
    %c33 = arith.constant 33 : index
    %33 = memref.load %arg1[%c33] : memref<433xf32, #tpu.memory_space<smem>>
    %34 = vector.broadcast %33 : f32 to vector<1x128xf32>
    %35 = arith.mulf %7, %34 : vector<1x128xf32>
    %36 = arith.addf %32, %35 : vector<1x128xf32>
    %c44 = arith.constant 44 : index
    %37 = memref.load %arg1[%c44] : memref<433xf32, #tpu.memory_space<smem>>
    %38 = vector.broadcast %37 : f32 to vector<1x128xf32>
    %39 = arith.mulf %9, %38 : vector<1x128xf32>
    %40 = arith.addf %36, %39 : vector<1x128xf32>
    %c55 = arith.constant 55 : index
    %41 = memref.load %arg1[%c55] : memref<433xf32, #tpu.memory_space<smem>>
    %42 = vector.broadcast %41 : f32 to vector<1x128xf32>
    %43 = arith.mulf %11, %42 : vector<1x128xf32>
    %44 = arith.addf %40, %43 : vector<1x128xf32>
    %c66 = arith.constant 66 : index
    %45 = memref.load %arg1[%c66] : memref<433xf32, #tpu.memory_space<smem>>
    %46 = vector.broadcast %45 : f32 to vector<1x128xf32>
    %47 = arith.mulf %13, %46 : vector<1x128xf32>
    %48 = arith.addf %44, %47 : vector<1x128xf32>
    %c77 = arith.constant 77 : index
    %49 = memref.load %arg1[%c77] : memref<433xf32, #tpu.memory_space<smem>>
    %50 = vector.broadcast %49 : f32 to vector<1x128xf32>
    %51 = arith.mulf %15, %50 : vector<1x128xf32>
    %52 = arith.addf %48, %51 : vector<1x128xf32>
    %c88 = arith.constant 88 : index
    %53 = memref.load %arg1[%c88] : memref<433xf32, #tpu.memory_space<smem>>
    %54 = vector.broadcast %53 : f32 to vector<1x128xf32>
    %55 = arith.mulf %17, %54 : vector<1x128xf32>
    %56 = arith.addf %52, %55 : vector<1x128xf32>
    %c99 = arith.constant 99 : index
    %57 = memref.load %arg1[%c99] : memref<433xf32, #tpu.memory_space<smem>>
    %58 = vector.broadcast %57 : f32 to vector<1x128xf32>
    %59 = arith.mulf %19, %58 : vector<1x128xf32>
    %60 = arith.addf %56, %59 : vector<1x128xf32>
    %c110 = arith.constant 110 : index
    %61 = memref.load %arg1[%c110] : memref<433xf32, #tpu.memory_space<smem>>
    %62 = vector.broadcast %61 : f32 to vector<1x128xf32>
    %63 = arith.mulf %21, %62 : vector<1x128xf32>
    %64 = arith.addf %60, %63 : vector<1x128xf32>
    %c121 = arith.constant 121 : index
    %65 = memref.load %arg1[%c121] : memref<433xf32, #tpu.memory_space<smem>>
    %66 = vector.broadcast %65 : f32 to vector<1x128xf32>
    %67 = arith.addf %64, %66 : vector<1x128xf32>
    %cst = arith.constant 0.000000e+00 : f32
    %68 = vector.broadcast %cst : f32 to vector<1x128xf32>
    %69 = arith.maximumf %67, %68 : vector<1x128xf32>
    %c1_23 = arith.constant 1 : index
    %70 = memref.load %arg1[%c1_23] : memref<433xf32, #tpu.memory_space<smem>>
    %71 = vector.broadcast %70 : f32 to vector<1x128xf32>
    %72 = arith.mulf %1, %71 : vector<1x128xf32>
    %c12 = arith.constant 12 : index
    %73 = memref.load %arg1[%c12] : memref<433xf32, #tpu.memory_space<smem>>
    %74 = vector.broadcast %73 : f32 to vector<1x128xf32>
    %75 = arith.mulf %3, %74 : vector<1x128xf32>
    %76 = arith.addf %72, %75 : vector<1x128xf32>
    %c23 = arith.constant 23 : index
    %77 = memref.load %arg1[%c23] : memref<433xf32, #tpu.memory_space<smem>>
    %78 = vector.broadcast %77 : f32 to vector<1x128xf32>
    %79 = arith.mulf %5, %78 : vector<1x128xf32>
    %80 = arith.addf %76, %79 : vector<1x128xf32>
    %c34 = arith.constant 34 : index
    %81 = memref.load %arg1[%c34] : memref<433xf32, #tpu.memory_space<smem>>
    %82 = vector.broadcast %81 : f32 to vector<1x128xf32>
    %83 = arith.mulf %7, %82 : vector<1x128xf32>
    %84 = arith.addf %80, %83 : vector<1x128xf32>
    %c45 = arith.constant 45 : index
    %85 = memref.load %arg1[%c45] : memref<433xf32, #tpu.memory_space<smem>>
    %86 = vector.broadcast %85 : f32 to vector<1x128xf32>
    %87 = arith.mulf %9, %86 : vector<1x128xf32>
    %88 = arith.addf %84, %87 : vector<1x128xf32>
    %c56 = arith.constant 56 : index
    %89 = memref.load %arg1[%c56] : memref<433xf32, #tpu.memory_space<smem>>
    %90 = vector.broadcast %89 : f32 to vector<1x128xf32>
    %91 = arith.mulf %11, %90 : vector<1x128xf32>
    %92 = arith.addf %88, %91 : vector<1x128xf32>
    %c67 = arith.constant 67 : index
    %93 = memref.load %arg1[%c67] : memref<433xf32, #tpu.memory_space<smem>>
    %94 = vector.broadcast %93 : f32 to vector<1x128xf32>
    %95 = arith.mulf %13, %94 : vector<1x128xf32>
    %96 = arith.addf %92, %95 : vector<1x128xf32>
    %c78 = arith.constant 78 : index
    %97 = memref.load %arg1[%c78] : memref<433xf32, #tpu.memory_space<smem>>
    %98 = vector.broadcast %97 : f32 to vector<1x128xf32>
    %99 = arith.mulf %15, %98 : vector<1x128xf32>
    %100 = arith.addf %96, %99 : vector<1x128xf32>
    %c89 = arith.constant 89 : index
    %101 = memref.load %arg1[%c89] : memref<433xf32, #tpu.memory_space<smem>>
    %102 = vector.broadcast %101 : f32 to vector<1x128xf32>
    %103 = arith.mulf %17, %102 : vector<1x128xf32>
    %104 = arith.addf %100, %103 : vector<1x128xf32>
    %c100 = arith.constant 100 : index
    %105 = memref.load %arg1[%c100] : memref<433xf32, #tpu.memory_space<smem>>
    %106 = vector.broadcast %105 : f32 to vector<1x128xf32>
    %107 = arith.mulf %19, %106 : vector<1x128xf32>
    %108 = arith.addf %104, %107 : vector<1x128xf32>
    %c111 = arith.constant 111 : index
    %109 = memref.load %arg1[%c111] : memref<433xf32, #tpu.memory_space<smem>>
    %110 = vector.broadcast %109 : f32 to vector<1x128xf32>
    %111 = arith.mulf %21, %110 : vector<1x128xf32>
    %112 = arith.addf %108, %111 : vector<1x128xf32>
    %c122 = arith.constant 122 : index
    %113 = memref.load %arg1[%c122] : memref<433xf32, #tpu.memory_space<smem>>
    %114 = vector.broadcast %113 : f32 to vector<1x128xf32>
    %115 = arith.addf %112, %114 : vector<1x128xf32>
    %cst_24 = arith.constant 0.000000e+00 : f32
    %116 = vector.broadcast %cst_24 : f32 to vector<1x128xf32>
    %117 = arith.maximumf %115, %116 : vector<1x128xf32>
    %c2_25 = arith.constant 2 : index
    %118 = memref.load %arg1[%c2_25] : memref<433xf32, #tpu.memory_space<smem>>
    %119 = vector.broadcast %118 : f32 to vector<1x128xf32>
    %120 = arith.mulf %1, %119 : vector<1x128xf32>
    %c13 = arith.constant 13 : index
    %121 = memref.load %arg1[%c13] : memref<433xf32, #tpu.memory_space<smem>>
    %122 = vector.broadcast %121 : f32 to vector<1x128xf32>
    %123 = arith.mulf %3, %122 : vector<1x128xf32>
    %124 = arith.addf %120, %123 : vector<1x128xf32>
    %c24 = arith.constant 24 : index
    %125 = memref.load %arg1[%c24] : memref<433xf32, #tpu.memory_space<smem>>
    %126 = vector.broadcast %125 : f32 to vector<1x128xf32>
    %127 = arith.mulf %5, %126 : vector<1x128xf32>
    %128 = arith.addf %124, %127 : vector<1x128xf32>
    %c35 = arith.constant 35 : index
    %129 = memref.load %arg1[%c35] : memref<433xf32, #tpu.memory_space<smem>>
    %130 = vector.broadcast %129 : f32 to vector<1x128xf32>
    %131 = arith.mulf %7, %130 : vector<1x128xf32>
    %132 = arith.addf %128, %131 : vector<1x128xf32>
    %c46 = arith.constant 46 : index
    %133 = memref.load %arg1[%c46] : memref<433xf32, #tpu.memory_space<smem>>
    %134 = vector.broadcast %133 : f32 to vector<1x128xf32>
    %135 = arith.mulf %9, %134 : vector<1x128xf32>
    %136 = arith.addf %132, %135 : vector<1x128xf32>
    %c57 = arith.constant 57 : index
    %137 = memref.load %arg1[%c57] : memref<433xf32, #tpu.memory_space<smem>>
    %138 = vector.broadcast %137 : f32 to vector<1x128xf32>
    %139 = arith.mulf %11, %138 : vector<1x128xf32>
    %140 = arith.addf %136, %139 : vector<1x128xf32>
    %c68 = arith.constant 68 : index
    %141 = memref.load %arg1[%c68] : memref<433xf32, #tpu.memory_space<smem>>
    %142 = vector.broadcast %141 : f32 to vector<1x128xf32>
    %143 = arith.mulf %13, %142 : vector<1x128xf32>
    %144 = arith.addf %140, %143 : vector<1x128xf32>
    %c79 = arith.constant 79 : index
    %145 = memref.load %arg1[%c79] : memref<433xf32, #tpu.memory_space<smem>>
    %146 = vector.broadcast %145 : f32 to vector<1x128xf32>
    %147 = arith.mulf %15, %146 : vector<1x128xf32>
    %148 = arith.addf %144, %147 : vector<1x128xf32>
    %c90 = arith.constant 90 : index
    %149 = memref.load %arg1[%c90] : memref<433xf32, #tpu.memory_space<smem>>
    %150 = vector.broadcast %149 : f32 to vector<1x128xf32>
    %151 = arith.mulf %17, %150 : vector<1x128xf32>
    %152 = arith.addf %148, %151 : vector<1x128xf32>
    %c101 = arith.constant 101 : index
    %153 = memref.load %arg1[%c101] : memref<433xf32, #tpu.memory_space<smem>>
    %154 = vector.broadcast %153 : f32 to vector<1x128xf32>
    %155 = arith.mulf %19, %154 : vector<1x128xf32>
    %156 = arith.addf %152, %155 : vector<1x128xf32>
    %c112 = arith.constant 112 : index
    %157 = memref.load %arg1[%c112] : memref<433xf32, #tpu.memory_space<smem>>
    %158 = vector.broadcast %157 : f32 to vector<1x128xf32>
    %159 = arith.mulf %21, %158 : vector<1x128xf32>
    %160 = arith.addf %156, %159 : vector<1x128xf32>
    %c123 = arith.constant 123 : index
    %161 = memref.load %arg1[%c123] : memref<433xf32, #tpu.memory_space<smem>>
    %162 = vector.broadcast %161 : f32 to vector<1x128xf32>
    %163 = arith.addf %160, %162 : vector<1x128xf32>
    %cst_26 = arith.constant 0.000000e+00 : f32
    %164 = vector.broadcast %cst_26 : f32 to vector<1x128xf32>
    %165 = arith.maximumf %163, %164 : vector<1x128xf32>
    %c3_27 = arith.constant 3 : index
    %166 = memref.load %arg1[%c3_27] : memref<433xf32, #tpu.memory_space<smem>>
    %167 = vector.broadcast %166 : f32 to vector<1x128xf32>
    %168 = arith.mulf %1, %167 : vector<1x128xf32>
    %c14 = arith.constant 14 : index
    %169 = memref.load %arg1[%c14] : memref<433xf32, #tpu.memory_space<smem>>
    %170 = vector.broadcast %169 : f32 to vector<1x128xf32>
    %171 = arith.mulf %3, %170 : vector<1x128xf32>
    %172 = arith.addf %168, %171 : vector<1x128xf32>
    %c25 = arith.constant 25 : index
    %173 = memref.load %arg1[%c25] : memref<433xf32, #tpu.memory_space<smem>>
    %174 = vector.broadcast %173 : f32 to vector<1x128xf32>
    %175 = arith.mulf %5, %174 : vector<1x128xf32>
    %176 = arith.addf %172, %175 : vector<1x128xf32>
    %c36 = arith.constant 36 : index
    %177 = memref.load %arg1[%c36] : memref<433xf32, #tpu.memory_space<smem>>
    %178 = vector.broadcast %177 : f32 to vector<1x128xf32>
    %179 = arith.mulf %7, %178 : vector<1x128xf32>
    %180 = arith.addf %176, %179 : vector<1x128xf32>
    %c47 = arith.constant 47 : index
    %181 = memref.load %arg1[%c47] : memref<433xf32, #tpu.memory_space<smem>>
    %182 = vector.broadcast %181 : f32 to vector<1x128xf32>
    %183 = arith.mulf %9, %182 : vector<1x128xf32>
    %184 = arith.addf %180, %183 : vector<1x128xf32>
    %c58 = arith.constant 58 : index
    %185 = memref.load %arg1[%c58] : memref<433xf32, #tpu.memory_space<smem>>
    %186 = vector.broadcast %185 : f32 to vector<1x128xf32>
    %187 = arith.mulf %11, %186 : vector<1x128xf32>
    %188 = arith.addf %184, %187 : vector<1x128xf32>
    %c69 = arith.constant 69 : index
    %189 = memref.load %arg1[%c69] : memref<433xf32, #tpu.memory_space<smem>>
    %190 = vector.broadcast %189 : f32 to vector<1x128xf32>
    %191 = arith.mulf %13, %190 : vector<1x128xf32>
    %192 = arith.addf %188, %191 : vector<1x128xf32>
    %c80 = arith.constant 80 : index
    %193 = memref.load %arg1[%c80] : memref<433xf32, #tpu.memory_space<smem>>
    %194 = vector.broadcast %193 : f32 to vector<1x128xf32>
    %195 = arith.mulf %15, %194 : vector<1x128xf32>
    %196 = arith.addf %192, %195 : vector<1x128xf32>
    %c91 = arith.constant 91 : index
    %197 = memref.load %arg1[%c91] : memref<433xf32, #tpu.memory_space<smem>>
    %198 = vector.broadcast %197 : f32 to vector<1x128xf32>
    %199 = arith.mulf %17, %198 : vector<1x128xf32>
    %200 = arith.addf %196, %199 : vector<1x128xf32>
    %c102 = arith.constant 102 : index
    %201 = memref.load %arg1[%c102] : memref<433xf32, #tpu.memory_space<smem>>
    %202 = vector.broadcast %201 : f32 to vector<1x128xf32>
    %203 = arith.mulf %19, %202 : vector<1x128xf32>
    %204 = arith.addf %200, %203 : vector<1x128xf32>
    %c113 = arith.constant 113 : index
    %205 = memref.load %arg1[%c113] : memref<433xf32, #tpu.memory_space<smem>>
    %206 = vector.broadcast %205 : f32 to vector<1x128xf32>
    %207 = arith.mulf %21, %206 : vector<1x128xf32>
    %208 = arith.addf %204, %207 : vector<1x128xf32>
    %c124 = arith.constant 124 : index
    %209 = memref.load %arg1[%c124] : memref<433xf32, #tpu.memory_space<smem>>
    %210 = vector.broadcast %209 : f32 to vector<1x128xf32>
    %211 = arith.addf %208, %210 : vector<1x128xf32>
    %cst_28 = arith.constant 0.000000e+00 : f32
    %212 = vector.broadcast %cst_28 : f32 to vector<1x128xf32>
    %213 = arith.maximumf %211, %212 : vector<1x128xf32>
    %c4_29 = arith.constant 4 : index
    %214 = memref.load %arg1[%c4_29] : memref<433xf32, #tpu.memory_space<smem>>
    %215 = vector.broadcast %214 : f32 to vector<1x128xf32>
    %216 = arith.mulf %1, %215 : vector<1x128xf32>
    %c15 = arith.constant 15 : index
    %217 = memref.load %arg1[%c15] : memref<433xf32, #tpu.memory_space<smem>>
    %218 = vector.broadcast %217 : f32 to vector<1x128xf32>
    %219 = arith.mulf %3, %218 : vector<1x128xf32>
    %220 = arith.addf %216, %219 : vector<1x128xf32>
    %c26 = arith.constant 26 : index
    %221 = memref.load %arg1[%c26] : memref<433xf32, #tpu.memory_space<smem>>
    %222 = vector.broadcast %221 : f32 to vector<1x128xf32>
    %223 = arith.mulf %5, %222 : vector<1x128xf32>
    %224 = arith.addf %220, %223 : vector<1x128xf32>
    %c37 = arith.constant 37 : index
    %225 = memref.load %arg1[%c37] : memref<433xf32, #tpu.memory_space<smem>>
    %226 = vector.broadcast %225 : f32 to vector<1x128xf32>
    %227 = arith.mulf %7, %226 : vector<1x128xf32>
    %228 = arith.addf %224, %227 : vector<1x128xf32>
    %c48 = arith.constant 48 : index
    %229 = memref.load %arg1[%c48] : memref<433xf32, #tpu.memory_space<smem>>
    %230 = vector.broadcast %229 : f32 to vector<1x128xf32>
    %231 = arith.mulf %9, %230 : vector<1x128xf32>
    %232 = arith.addf %228, %231 : vector<1x128xf32>
    %c59 = arith.constant 59 : index
    %233 = memref.load %arg1[%c59] : memref<433xf32, #tpu.memory_space<smem>>
    %234 = vector.broadcast %233 : f32 to vector<1x128xf32>
    %235 = arith.mulf %11, %234 : vector<1x128xf32>
    %236 = arith.addf %232, %235 : vector<1x128xf32>
    %c70 = arith.constant 70 : index
    %237 = memref.load %arg1[%c70] : memref<433xf32, #tpu.memory_space<smem>>
    %238 = vector.broadcast %237 : f32 to vector<1x128xf32>
    %239 = arith.mulf %13, %238 : vector<1x128xf32>
    %240 = arith.addf %236, %239 : vector<1x128xf32>
    %c81 = arith.constant 81 : index
    %241 = memref.load %arg1[%c81] : memref<433xf32, #tpu.memory_space<smem>>
    %242 = vector.broadcast %241 : f32 to vector<1x128xf32>
    %243 = arith.mulf %15, %242 : vector<1x128xf32>
    %244 = arith.addf %240, %243 : vector<1x128xf32>
    %c92 = arith.constant 92 : index
    %245 = memref.load %arg1[%c92] : memref<433xf32, #tpu.memory_space<smem>>
    %246 = vector.broadcast %245 : f32 to vector<1x128xf32>
    %247 = arith.mulf %17, %246 : vector<1x128xf32>
    %248 = arith.addf %244, %247 : vector<1x128xf32>
    %c103 = arith.constant 103 : index
    %249 = memref.load %arg1[%c103] : memref<433xf32, #tpu.memory_space<smem>>
    %250 = vector.broadcast %249 : f32 to vector<1x128xf32>
    %251 = arith.mulf %19, %250 : vector<1x128xf32>
    %252 = arith.addf %248, %251 : vector<1x128xf32>
    %c114 = arith.constant 114 : index
    %253 = memref.load %arg1[%c114] : memref<433xf32, #tpu.memory_space<smem>>
    %254 = vector.broadcast %253 : f32 to vector<1x128xf32>
    %255 = arith.mulf %21, %254 : vector<1x128xf32>
    %256 = arith.addf %252, %255 : vector<1x128xf32>
    %c125 = arith.constant 125 : index
    %257 = memref.load %arg1[%c125] : memref<433xf32, #tpu.memory_space<smem>>
    %258 = vector.broadcast %257 : f32 to vector<1x128xf32>
    %259 = arith.addf %256, %258 : vector<1x128xf32>
    %cst_30 = arith.constant 0.000000e+00 : f32
    %260 = vector.broadcast %cst_30 : f32 to vector<1x128xf32>
    %261 = arith.maximumf %259, %260 : vector<1x128xf32>
    %c5_31 = arith.constant 5 : index
    %262 = memref.load %arg1[%c5_31] : memref<433xf32, #tpu.memory_space<smem>>
    %263 = vector.broadcast %262 : f32 to vector<1x128xf32>
    %264 = arith.mulf %1, %263 : vector<1x128xf32>
    %c16 = arith.constant 16 : index
    %265 = memref.load %arg1[%c16] : memref<433xf32, #tpu.memory_space<smem>>
    %266 = vector.broadcast %265 : f32 to vector<1x128xf32>
    %267 = arith.mulf %3, %266 : vector<1x128xf32>
    %268 = arith.addf %264, %267 : vector<1x128xf32>
    %c27 = arith.constant 27 : index
    %269 = memref.load %arg1[%c27] : memref<433xf32, #tpu.memory_space<smem>>
    %270 = vector.broadcast %269 : f32 to vector<1x128xf32>
    %271 = arith.mulf %5, %270 : vector<1x128xf32>
    %272 = arith.addf %268, %271 : vector<1x128xf32>
    %c38 = arith.constant 38 : index
    %273 = memref.load %arg1[%c38] : memref<433xf32, #tpu.memory_space<smem>>
    %274 = vector.broadcast %273 : f32 to vector<1x128xf32>
    %275 = arith.mulf %7, %274 : vector<1x128xf32>
    %276 = arith.addf %272, %275 : vector<1x128xf32>
    %c49 = arith.constant 49 : index
    %277 = memref.load %arg1[%c49] : memref<433xf32, #tpu.memory_space<smem>>
    %278 = vector.broadcast %277 : f32 to vector<1x128xf32>
    %279 = arith.mulf %9, %278 : vector<1x128xf32>
    %280 = arith.addf %276, %279 : vector<1x128xf32>
    %c60 = arith.constant 60 : index
    %281 = memref.load %arg1[%c60] : memref<433xf32, #tpu.memory_space<smem>>
    %282 = vector.broadcast %281 : f32 to vector<1x128xf32>
    %283 = arith.mulf %11, %282 : vector<1x128xf32>
    %284 = arith.addf %280, %283 : vector<1x128xf32>
    %c71 = arith.constant 71 : index
    %285 = memref.load %arg1[%c71] : memref<433xf32, #tpu.memory_space<smem>>
    %286 = vector.broadcast %285 : f32 to vector<1x128xf32>
    %287 = arith.mulf %13, %286 : vector<1x128xf32>
    %288 = arith.addf %284, %287 : vector<1x128xf32>
    %c82 = arith.constant 82 : index
    %289 = memref.load %arg1[%c82] : memref<433xf32, #tpu.memory_space<smem>>
    %290 = vector.broadcast %289 : f32 to vector<1x128xf32>
    %291 = arith.mulf %15, %290 : vector<1x128xf32>
    %292 = arith.addf %288, %291 : vector<1x128xf32>
    %c93 = arith.constant 93 : index
    %293 = memref.load %arg1[%c93] : memref<433xf32, #tpu.memory_space<smem>>
    %294 = vector.broadcast %293 : f32 to vector<1x128xf32>
    %295 = arith.mulf %17, %294 : vector<1x128xf32>
    %296 = arith.addf %292, %295 : vector<1x128xf32>
    %c104 = arith.constant 104 : index
    %297 = memref.load %arg1[%c104] : memref<433xf32, #tpu.memory_space<smem>>
    %298 = vector.broadcast %297 : f32 to vector<1x128xf32>
    %299 = arith.mulf %19, %298 : vector<1x128xf32>
    %300 = arith.addf %296, %299 : vector<1x128xf32>
    %c115 = arith.constant 115 : index
    %301 = memref.load %arg1[%c115] : memref<433xf32, #tpu.memory_space<smem>>
    %302 = vector.broadcast %301 : f32 to vector<1x128xf32>
    %303 = arith.mulf %21, %302 : vector<1x128xf32>
    %304 = arith.addf %300, %303 : vector<1x128xf32>
    %c126 = arith.constant 126 : index
    %305 = memref.load %arg1[%c126] : memref<433xf32, #tpu.memory_space<smem>>
    %306 = vector.broadcast %305 : f32 to vector<1x128xf32>
    %307 = arith.addf %304, %306 : vector<1x128xf32>
    %cst_32 = arith.constant 0.000000e+00 : f32
    %308 = vector.broadcast %cst_32 : f32 to vector<1x128xf32>
    %309 = arith.maximumf %307, %308 : vector<1x128xf32>
    %c6_33 = arith.constant 6 : index
    %310 = memref.load %arg1[%c6_33] : memref<433xf32, #tpu.memory_space<smem>>
    %311 = vector.broadcast %310 : f32 to vector<1x128xf32>
    %312 = arith.mulf %1, %311 : vector<1x128xf32>
    %c17 = arith.constant 17 : index
    %313 = memref.load %arg1[%c17] : memref<433xf32, #tpu.memory_space<smem>>
    %314 = vector.broadcast %313 : f32 to vector<1x128xf32>
    %315 = arith.mulf %3, %314 : vector<1x128xf32>
    %316 = arith.addf %312, %315 : vector<1x128xf32>
    %c28 = arith.constant 28 : index
    %317 = memref.load %arg1[%c28] : memref<433xf32, #tpu.memory_space<smem>>
    %318 = vector.broadcast %317 : f32 to vector<1x128xf32>
    %319 = arith.mulf %5, %318 : vector<1x128xf32>
    %320 = arith.addf %316, %319 : vector<1x128xf32>
    %c39 = arith.constant 39 : index
    %321 = memref.load %arg1[%c39] : memref<433xf32, #tpu.memory_space<smem>>
    %322 = vector.broadcast %321 : f32 to vector<1x128xf32>
    %323 = arith.mulf %7, %322 : vector<1x128xf32>
    %324 = arith.addf %320, %323 : vector<1x128xf32>
    %c50 = arith.constant 50 : index
    %325 = memref.load %arg1[%c50] : memref<433xf32, #tpu.memory_space<smem>>
    %326 = vector.broadcast %325 : f32 to vector<1x128xf32>
    %327 = arith.mulf %9, %326 : vector<1x128xf32>
    %328 = arith.addf %324, %327 : vector<1x128xf32>
    %c61 = arith.constant 61 : index
    %329 = memref.load %arg1[%c61] : memref<433xf32, #tpu.memory_space<smem>>
    %330 = vector.broadcast %329 : f32 to vector<1x128xf32>
    %331 = arith.mulf %11, %330 : vector<1x128xf32>
    %332 = arith.addf %328, %331 : vector<1x128xf32>
    %c72 = arith.constant 72 : index
    %333 = memref.load %arg1[%c72] : memref<433xf32, #tpu.memory_space<smem>>
    %334 = vector.broadcast %333 : f32 to vector<1x128xf32>
    %335 = arith.mulf %13, %334 : vector<1x128xf32>
    %336 = arith.addf %332, %335 : vector<1x128xf32>
    %c83 = arith.constant 83 : index
    %337 = memref.load %arg1[%c83] : memref<433xf32, #tpu.memory_space<smem>>
    %338 = vector.broadcast %337 : f32 to vector<1x128xf32>
    %339 = arith.mulf %15, %338 : vector<1x128xf32>
    %340 = arith.addf %336, %339 : vector<1x128xf32>
    %c94 = arith.constant 94 : index
    %341 = memref.load %arg1[%c94] : memref<433xf32, #tpu.memory_space<smem>>
    %342 = vector.broadcast %341 : f32 to vector<1x128xf32>
    %343 = arith.mulf %17, %342 : vector<1x128xf32>
    %344 = arith.addf %340, %343 : vector<1x128xf32>
    %c105 = arith.constant 105 : index
    %345 = memref.load %arg1[%c105] : memref<433xf32, #tpu.memory_space<smem>>
    %346 = vector.broadcast %345 : f32 to vector<1x128xf32>
    %347 = arith.mulf %19, %346 : vector<1x128xf32>
    %348 = arith.addf %344, %347 : vector<1x128xf32>
    %c116 = arith.constant 116 : index
    %349 = memref.load %arg1[%c116] : memref<433xf32, #tpu.memory_space<smem>>
    %350 = vector.broadcast %349 : f32 to vector<1x128xf32>
    %351 = arith.mulf %21, %350 : vector<1x128xf32>
    %352 = arith.addf %348, %351 : vector<1x128xf32>
    %c127 = arith.constant 127 : index
    %353 = memref.load %arg1[%c127] : memref<433xf32, #tpu.memory_space<smem>>
    %354 = vector.broadcast %353 : f32 to vector<1x128xf32>
    %355 = arith.addf %352, %354 : vector<1x128xf32>
    %cst_34 = arith.constant 0.000000e+00 : f32
    %356 = vector.broadcast %cst_34 : f32 to vector<1x128xf32>
    %357 = arith.maximumf %355, %356 : vector<1x128xf32>
    %c7_35 = arith.constant 7 : index
    %358 = memref.load %arg1[%c7_35] : memref<433xf32, #tpu.memory_space<smem>>
    %359 = vector.broadcast %358 : f32 to vector<1x128xf32>
    %360 = arith.mulf %1, %359 : vector<1x128xf32>
    %c18 = arith.constant 18 : index
    %361 = memref.load %arg1[%c18] : memref<433xf32, #tpu.memory_space<smem>>
    %362 = vector.broadcast %361 : f32 to vector<1x128xf32>
    %363 = arith.mulf %3, %362 : vector<1x128xf32>
    %364 = arith.addf %360, %363 : vector<1x128xf32>
    %c29 = arith.constant 29 : index
    %365 = memref.load %arg1[%c29] : memref<433xf32, #tpu.memory_space<smem>>
    %366 = vector.broadcast %365 : f32 to vector<1x128xf32>
    %367 = arith.mulf %5, %366 : vector<1x128xf32>
    %368 = arith.addf %364, %367 : vector<1x128xf32>
    %c40 = arith.constant 40 : index
    %369 = memref.load %arg1[%c40] : memref<433xf32, #tpu.memory_space<smem>>
    %370 = vector.broadcast %369 : f32 to vector<1x128xf32>
    %371 = arith.mulf %7, %370 : vector<1x128xf32>
    %372 = arith.addf %368, %371 : vector<1x128xf32>
    %c51 = arith.constant 51 : index
    %373 = memref.load %arg1[%c51] : memref<433xf32, #tpu.memory_space<smem>>
    %374 = vector.broadcast %373 : f32 to vector<1x128xf32>
    %375 = arith.mulf %9, %374 : vector<1x128xf32>
    %376 = arith.addf %372, %375 : vector<1x128xf32>
    %c62 = arith.constant 62 : index
    %377 = memref.load %arg1[%c62] : memref<433xf32, #tpu.memory_space<smem>>
    %378 = vector.broadcast %377 : f32 to vector<1x128xf32>
    %379 = arith.mulf %11, %378 : vector<1x128xf32>
    %380 = arith.addf %376, %379 : vector<1x128xf32>
    %c73 = arith.constant 73 : index
    %381 = memref.load %arg1[%c73] : memref<433xf32, #tpu.memory_space<smem>>
    %382 = vector.broadcast %381 : f32 to vector<1x128xf32>
    %383 = arith.mulf %13, %382 : vector<1x128xf32>
    %384 = arith.addf %380, %383 : vector<1x128xf32>
    %c84 = arith.constant 84 : index
    %385 = memref.load %arg1[%c84] : memref<433xf32, #tpu.memory_space<smem>>
    %386 = vector.broadcast %385 : f32 to vector<1x128xf32>
    %387 = arith.mulf %15, %386 : vector<1x128xf32>
    %388 = arith.addf %384, %387 : vector<1x128xf32>
    %c95 = arith.constant 95 : index
    %389 = memref.load %arg1[%c95] : memref<433xf32, #tpu.memory_space<smem>>
    %390 = vector.broadcast %389 : f32 to vector<1x128xf32>
    %391 = arith.mulf %17, %390 : vector<1x128xf32>
    %392 = arith.addf %388, %391 : vector<1x128xf32>
    %c106 = arith.constant 106 : index
    %393 = memref.load %arg1[%c106] : memref<433xf32, #tpu.memory_space<smem>>
    %394 = vector.broadcast %393 : f32 to vector<1x128xf32>
    %395 = arith.mulf %19, %394 : vector<1x128xf32>
    %396 = arith.addf %392, %395 : vector<1x128xf32>
    %c117 = arith.constant 117 : index
    %397 = memref.load %arg1[%c117] : memref<433xf32, #tpu.memory_space<smem>>
    %398 = vector.broadcast %397 : f32 to vector<1x128xf32>
    %399 = arith.mulf %21, %398 : vector<1x128xf32>
    %400 = arith.addf %396, %399 : vector<1x128xf32>
    %c128 = arith.constant 128 : index
    %401 = memref.load %arg1[%c128] : memref<433xf32, #tpu.memory_space<smem>>
    %402 = vector.broadcast %401 : f32 to vector<1x128xf32>
    %403 = arith.addf %400, %402 : vector<1x128xf32>
    %cst_36 = arith.constant 0.000000e+00 : f32
    %404 = vector.broadcast %cst_36 : f32 to vector<1x128xf32>
    %405 = arith.maximumf %403, %404 : vector<1x128xf32>
    %c8_37 = arith.constant 8 : index
    %406 = memref.load %arg1[%c8_37] : memref<433xf32, #tpu.memory_space<smem>>
    %407 = vector.broadcast %406 : f32 to vector<1x128xf32>
    %408 = arith.mulf %1, %407 : vector<1x128xf32>
    %c19 = arith.constant 19 : index
    %409 = memref.load %arg1[%c19] : memref<433xf32, #tpu.memory_space<smem>>
    %410 = vector.broadcast %409 : f32 to vector<1x128xf32>
    %411 = arith.mulf %3, %410 : vector<1x128xf32>
    %412 = arith.addf %408, %411 : vector<1x128xf32>
    %c30 = arith.constant 30 : index
    %413 = memref.load %arg1[%c30] : memref<433xf32, #tpu.memory_space<smem>>
    %414 = vector.broadcast %413 : f32 to vector<1x128xf32>
    %415 = arith.mulf %5, %414 : vector<1x128xf32>
    %416 = arith.addf %412, %415 : vector<1x128xf32>
    %c41 = arith.constant 41 : index
    %417 = memref.load %arg1[%c41] : memref<433xf32, #tpu.memory_space<smem>>
    %418 = vector.broadcast %417 : f32 to vector<1x128xf32>
    %419 = arith.mulf %7, %418 : vector<1x128xf32>
    %420 = arith.addf %416, %419 : vector<1x128xf32>
    %c52 = arith.constant 52 : index
    %421 = memref.load %arg1[%c52] : memref<433xf32, #tpu.memory_space<smem>>
    %422 = vector.broadcast %421 : f32 to vector<1x128xf32>
    %423 = arith.mulf %9, %422 : vector<1x128xf32>
    %424 = arith.addf %420, %423 : vector<1x128xf32>
    %c63 = arith.constant 63 : index
    %425 = memref.load %arg1[%c63] : memref<433xf32, #tpu.memory_space<smem>>
    %426 = vector.broadcast %425 : f32 to vector<1x128xf32>
    %427 = arith.mulf %11, %426 : vector<1x128xf32>
    %428 = arith.addf %424, %427 : vector<1x128xf32>
    %c74 = arith.constant 74 : index
    %429 = memref.load %arg1[%c74] : memref<433xf32, #tpu.memory_space<smem>>
    %430 = vector.broadcast %429 : f32 to vector<1x128xf32>
    %431 = arith.mulf %13, %430 : vector<1x128xf32>
    %432 = arith.addf %428, %431 : vector<1x128xf32>
    %c85 = arith.constant 85 : index
    %433 = memref.load %arg1[%c85] : memref<433xf32, #tpu.memory_space<smem>>
    %434 = vector.broadcast %433 : f32 to vector<1x128xf32>
    %435 = arith.mulf %15, %434 : vector<1x128xf32>
    %436 = arith.addf %432, %435 : vector<1x128xf32>
    %c96 = arith.constant 96 : index
    %437 = memref.load %arg1[%c96] : memref<433xf32, #tpu.memory_space<smem>>
    %438 = vector.broadcast %437 : f32 to vector<1x128xf32>
    %439 = arith.mulf %17, %438 : vector<1x128xf32>
    %440 = arith.addf %436, %439 : vector<1x128xf32>
    %c107 = arith.constant 107 : index
    %441 = memref.load %arg1[%c107] : memref<433xf32, #tpu.memory_space<smem>>
    %442 = vector.broadcast %441 : f32 to vector<1x128xf32>
    %443 = arith.mulf %19, %442 : vector<1x128xf32>
    %444 = arith.addf %440, %443 : vector<1x128xf32>
    %c118 = arith.constant 118 : index
    %445 = memref.load %arg1[%c118] : memref<433xf32, #tpu.memory_space<smem>>
    %446 = vector.broadcast %445 : f32 to vector<1x128xf32>
    %447 = arith.mulf %21, %446 : vector<1x128xf32>
    %448 = arith.addf %444, %447 : vector<1x128xf32>
    %c129 = arith.constant 129 : index
    %449 = memref.load %arg1[%c129] : memref<433xf32, #tpu.memory_space<smem>>
    %450 = vector.broadcast %449 : f32 to vector<1x128xf32>
    %451 = arith.addf %448, %450 : vector<1x128xf32>
    %cst_38 = arith.constant 0.000000e+00 : f32
    %452 = vector.broadcast %cst_38 : f32 to vector<1x128xf32>
    %453 = arith.maximumf %451, %452 : vector<1x128xf32>
    %c9_39 = arith.constant 9 : index
    %454 = memref.load %arg1[%c9_39] : memref<433xf32, #tpu.memory_space<smem>>
    %455 = vector.broadcast %454 : f32 to vector<1x128xf32>
    %456 = arith.mulf %1, %455 : vector<1x128xf32>
    %c20 = arith.constant 20 : index
    %457 = memref.load %arg1[%c20] : memref<433xf32, #tpu.memory_space<smem>>
    %458 = vector.broadcast %457 : f32 to vector<1x128xf32>
    %459 = arith.mulf %3, %458 : vector<1x128xf32>
    %460 = arith.addf %456, %459 : vector<1x128xf32>
    %c31 = arith.constant 31 : index
    %461 = memref.load %arg1[%c31] : memref<433xf32, #tpu.memory_space<smem>>
    %462 = vector.broadcast %461 : f32 to vector<1x128xf32>
    %463 = arith.mulf %5, %462 : vector<1x128xf32>
    %464 = arith.addf %460, %463 : vector<1x128xf32>
    %c42 = arith.constant 42 : index
    %465 = memref.load %arg1[%c42] : memref<433xf32, #tpu.memory_space<smem>>
    %466 = vector.broadcast %465 : f32 to vector<1x128xf32>
    %467 = arith.mulf %7, %466 : vector<1x128xf32>
    %468 = arith.addf %464, %467 : vector<1x128xf32>
    %c53 = arith.constant 53 : index
    %469 = memref.load %arg1[%c53] : memref<433xf32, #tpu.memory_space<smem>>
    %470 = vector.broadcast %469 : f32 to vector<1x128xf32>
    %471 = arith.mulf %9, %470 : vector<1x128xf32>
    %472 = arith.addf %468, %471 : vector<1x128xf32>
    %c64 = arith.constant 64 : index
    %473 = memref.load %arg1[%c64] : memref<433xf32, #tpu.memory_space<smem>>
    %474 = vector.broadcast %473 : f32 to vector<1x128xf32>
    %475 = arith.mulf %11, %474 : vector<1x128xf32>
    %476 = arith.addf %472, %475 : vector<1x128xf32>
    %c75 = arith.constant 75 : index
    %477 = memref.load %arg1[%c75] : memref<433xf32, #tpu.memory_space<smem>>
    %478 = vector.broadcast %477 : f32 to vector<1x128xf32>
    %479 = arith.mulf %13, %478 : vector<1x128xf32>
    %480 = arith.addf %476, %479 : vector<1x128xf32>
    %c86 = arith.constant 86 : index
    %481 = memref.load %arg1[%c86] : memref<433xf32, #tpu.memory_space<smem>>
    %482 = vector.broadcast %481 : f32 to vector<1x128xf32>
    %483 = arith.mulf %15, %482 : vector<1x128xf32>
    %484 = arith.addf %480, %483 : vector<1x128xf32>
    %c97 = arith.constant 97 : index
    %485 = memref.load %arg1[%c97] : memref<433xf32, #tpu.memory_space<smem>>
    %486 = vector.broadcast %485 : f32 to vector<1x128xf32>
    %487 = arith.mulf %17, %486 : vector<1x128xf32>
    %488 = arith.addf %484, %487 : vector<1x128xf32>
    %c108 = arith.constant 108 : index
    %489 = memref.load %arg1[%c108] : memref<433xf32, #tpu.memory_space<smem>>
    %490 = vector.broadcast %489 : f32 to vector<1x128xf32>
    %491 = arith.mulf %19, %490 : vector<1x128xf32>
    %492 = arith.addf %488, %491 : vector<1x128xf32>
    %c119 = arith.constant 119 : index
    %493 = memref.load %arg1[%c119] : memref<433xf32, #tpu.memory_space<smem>>
    %494 = vector.broadcast %493 : f32 to vector<1x128xf32>
    %495 = arith.mulf %21, %494 : vector<1x128xf32>
    %496 = arith.addf %492, %495 : vector<1x128xf32>
    %c130 = arith.constant 130 : index
    %497 = memref.load %arg1[%c130] : memref<433xf32, #tpu.memory_space<smem>>
    %498 = vector.broadcast %497 : f32 to vector<1x128xf32>
    %499 = arith.addf %496, %498 : vector<1x128xf32>
    %cst_40 = arith.constant 0.000000e+00 : f32
    %500 = vector.broadcast %cst_40 : f32 to vector<1x128xf32>
    %501 = arith.maximumf %499, %500 : vector<1x128xf32>
    %c10_41 = arith.constant 10 : index
    %502 = memref.load %arg1[%c10_41] : memref<433xf32, #tpu.memory_space<smem>>
    %503 = vector.broadcast %502 : f32 to vector<1x128xf32>
    %504 = arith.mulf %1, %503 : vector<1x128xf32>
    %c21 = arith.constant 21 : index
    %505 = memref.load %arg1[%c21] : memref<433xf32, #tpu.memory_space<smem>>
    %506 = vector.broadcast %505 : f32 to vector<1x128xf32>
    %507 = arith.mulf %3, %506 : vector<1x128xf32>
    %508 = arith.addf %504, %507 : vector<1x128xf32>
    %c32 = arith.constant 32 : index
    %509 = memref.load %arg1[%c32] : memref<433xf32, #tpu.memory_space<smem>>
    %510 = vector.broadcast %509 : f32 to vector<1x128xf32>
    %511 = arith.mulf %5, %510 : vector<1x128xf32>
    %512 = arith.addf %508, %511 : vector<1x128xf32>
    %c43 = arith.constant 43 : index
    %513 = memref.load %arg1[%c43] : memref<433xf32, #tpu.memory_space<smem>>
    %514 = vector.broadcast %513 : f32 to vector<1x128xf32>
    %515 = arith.mulf %7, %514 : vector<1x128xf32>
    %516 = arith.addf %512, %515 : vector<1x128xf32>
    %c54 = arith.constant 54 : index
    %517 = memref.load %arg1[%c54] : memref<433xf32, #tpu.memory_space<smem>>
    %518 = vector.broadcast %517 : f32 to vector<1x128xf32>
    %519 = arith.mulf %9, %518 : vector<1x128xf32>
    %520 = arith.addf %516, %519 : vector<1x128xf32>
    %c65 = arith.constant 65 : index
    %521 = memref.load %arg1[%c65] : memref<433xf32, #tpu.memory_space<smem>>
    %522 = vector.broadcast %521 : f32 to vector<1x128xf32>
    %523 = arith.mulf %11, %522 : vector<1x128xf32>
    %524 = arith.addf %520, %523 : vector<1x128xf32>
    %c76 = arith.constant 76 : index
    %525 = memref.load %arg1[%c76] : memref<433xf32, #tpu.memory_space<smem>>
    %526 = vector.broadcast %525 : f32 to vector<1x128xf32>
    %527 = arith.mulf %13, %526 : vector<1x128xf32>
    %528 = arith.addf %524, %527 : vector<1x128xf32>
    %c87 = arith.constant 87 : index
    %529 = memref.load %arg1[%c87] : memref<433xf32, #tpu.memory_space<smem>>
    %530 = vector.broadcast %529 : f32 to vector<1x128xf32>
    %531 = arith.mulf %15, %530 : vector<1x128xf32>
    %532 = arith.addf %528, %531 : vector<1x128xf32>
    %c98 = arith.constant 98 : index
    %533 = memref.load %arg1[%c98] : memref<433xf32, #tpu.memory_space<smem>>
    %534 = vector.broadcast %533 : f32 to vector<1x128xf32>
    %535 = arith.mulf %17, %534 : vector<1x128xf32>
    %536 = arith.addf %532, %535 : vector<1x128xf32>
    %c109 = arith.constant 109 : index
    %537 = memref.load %arg1[%c109] : memref<433xf32, #tpu.memory_space<smem>>
    %538 = vector.broadcast %537 : f32 to vector<1x128xf32>
    %539 = arith.mulf %19, %538 : vector<1x128xf32>
    %540 = arith.addf %536, %539 : vector<1x128xf32>
    %c120 = arith.constant 120 : index
    %541 = memref.load %arg1[%c120] : memref<433xf32, #tpu.memory_space<smem>>
    %542 = vector.broadcast %541 : f32 to vector<1x128xf32>
    %543 = arith.mulf %21, %542 : vector<1x128xf32>
    %544 = arith.addf %540, %543 : vector<1x128xf32>
    %c131 = arith.constant 131 : index
    %545 = memref.load %arg1[%c131] : memref<433xf32, #tpu.memory_space<smem>>
    %546 = vector.broadcast %545 : f32 to vector<1x128xf32>
    %547 = arith.addf %544, %546 : vector<1x128xf32>
    %cst_42 = arith.constant 0.000000e+00 : f32
    %548 = vector.broadcast %cst_42 : f32 to vector<1x128xf32>
    %549 = arith.maximumf %547, %548 : vector<1x128xf32>
    %c132 = arith.constant 132 : index
    %550 = memref.load %arg1[%c132] : memref<433xf32, #tpu.memory_space<smem>>
    %551 = vector.broadcast %550 : f32 to vector<1x128xf32>
    %552 = arith.mulf %69, %551 : vector<1x128xf32>
    %c142 = arith.constant 142 : index
    %553 = memref.load %arg1[%c142] : memref<433xf32, #tpu.memory_space<smem>>
    %554 = vector.broadcast %553 : f32 to vector<1x128xf32>
    %555 = arith.mulf %117, %554 : vector<1x128xf32>
    %556 = arith.addf %552, %555 : vector<1x128xf32>
    %c152 = arith.constant 152 : index
    %557 = memref.load %arg1[%c152] : memref<433xf32, #tpu.memory_space<smem>>
    %558 = vector.broadcast %557 : f32 to vector<1x128xf32>
    %559 = arith.mulf %165, %558 : vector<1x128xf32>
    %560 = arith.addf %556, %559 : vector<1x128xf32>
    %c162 = arith.constant 162 : index
    %561 = memref.load %arg1[%c162] : memref<433xf32, #tpu.memory_space<smem>>
    %562 = vector.broadcast %561 : f32 to vector<1x128xf32>
    %563 = arith.mulf %213, %562 : vector<1x128xf32>
    %564 = arith.addf %560, %563 : vector<1x128xf32>
    %c172 = arith.constant 172 : index
    %565 = memref.load %arg1[%c172] : memref<433xf32, #tpu.memory_space<smem>>
    %566 = vector.broadcast %565 : f32 to vector<1x128xf32>
    %567 = arith.mulf %261, %566 : vector<1x128xf32>
    %568 = arith.addf %564, %567 : vector<1x128xf32>
    %c182 = arith.constant 182 : index
    %569 = memref.load %arg1[%c182] : memref<433xf32, #tpu.memory_space<smem>>
    %570 = vector.broadcast %569 : f32 to vector<1x128xf32>
    %571 = arith.mulf %309, %570 : vector<1x128xf32>
    %572 = arith.addf %568, %571 : vector<1x128xf32>
    %c192 = arith.constant 192 : index
    %573 = memref.load %arg1[%c192] : memref<433xf32, #tpu.memory_space<smem>>
    %574 = vector.broadcast %573 : f32 to vector<1x128xf32>
    %575 = arith.mulf %357, %574 : vector<1x128xf32>
    %576 = arith.addf %572, %575 : vector<1x128xf32>
    %c202 = arith.constant 202 : index
    %577 = memref.load %arg1[%c202] : memref<433xf32, #tpu.memory_space<smem>>
    %578 = vector.broadcast %577 : f32 to vector<1x128xf32>
    %579 = arith.mulf %405, %578 : vector<1x128xf32>
    %580 = arith.addf %576, %579 : vector<1x128xf32>
    %c212 = arith.constant 212 : index
    %581 = memref.load %arg1[%c212] : memref<433xf32, #tpu.memory_space<smem>>
    %582 = vector.broadcast %581 : f32 to vector<1x128xf32>
    %583 = arith.mulf %453, %582 : vector<1x128xf32>
    %584 = arith.addf %580, %583 : vector<1x128xf32>
    %c222 = arith.constant 222 : index
    %585 = memref.load %arg1[%c222] : memref<433xf32, #tpu.memory_space<smem>>
    %586 = vector.broadcast %585 : f32 to vector<1x128xf32>
    %587 = arith.mulf %501, %586 : vector<1x128xf32>
    %588 = arith.addf %584, %587 : vector<1x128xf32>
    %c232 = arith.constant 232 : index
    %589 = memref.load %arg1[%c232] : memref<433xf32, #tpu.memory_space<smem>>
    %590 = vector.broadcast %589 : f32 to vector<1x128xf32>
    %591 = arith.mulf %549, %590 : vector<1x128xf32>
    %592 = arith.addf %588, %591 : vector<1x128xf32>
    %c242 = arith.constant 242 : index
    %593 = memref.load %arg1[%c242] : memref<433xf32, #tpu.memory_space<smem>>
    %594 = vector.broadcast %593 : f32 to vector<1x128xf32>
    %595 = arith.addf %592, %594 : vector<1x128xf32>
    %cst_43 = arith.constant 0.000000e+00 : f32
    %596 = vector.broadcast %cst_43 : f32 to vector<1x128xf32>
    %597 = arith.maximumf %595, %596 : vector<1x128xf32>
    %c133 = arith.constant 133 : index
    %598 = memref.load %arg1[%c133] : memref<433xf32, #tpu.memory_space<smem>>
    %599 = vector.broadcast %598 : f32 to vector<1x128xf32>
    %600 = arith.mulf %69, %599 : vector<1x128xf32>
    %c143 = arith.constant 143 : index
    %601 = memref.load %arg1[%c143] : memref<433xf32, #tpu.memory_space<smem>>
    %602 = vector.broadcast %601 : f32 to vector<1x128xf32>
    %603 = arith.mulf %117, %602 : vector<1x128xf32>
    %604 = arith.addf %600, %603 : vector<1x128xf32>
    %c153 = arith.constant 153 : index
    %605 = memref.load %arg1[%c153] : memref<433xf32, #tpu.memory_space<smem>>
    %606 = vector.broadcast %605 : f32 to vector<1x128xf32>
    %607 = arith.mulf %165, %606 : vector<1x128xf32>
    %608 = arith.addf %604, %607 : vector<1x128xf32>
    %c163 = arith.constant 163 : index
    %609 = memref.load %arg1[%c163] : memref<433xf32, #tpu.memory_space<smem>>
    %610 = vector.broadcast %609 : f32 to vector<1x128xf32>
    %611 = arith.mulf %213, %610 : vector<1x128xf32>
    %612 = arith.addf %608, %611 : vector<1x128xf32>
    %c173 = arith.constant 173 : index
    %613 = memref.load %arg1[%c173] : memref<433xf32, #tpu.memory_space<smem>>
    %614 = vector.broadcast %613 : f32 to vector<1x128xf32>
    %615 = arith.mulf %261, %614 : vector<1x128xf32>
    %616 = arith.addf %612, %615 : vector<1x128xf32>
    %c183 = arith.constant 183 : index
    %617 = memref.load %arg1[%c183] : memref<433xf32, #tpu.memory_space<smem>>
    %618 = vector.broadcast %617 : f32 to vector<1x128xf32>
    %619 = arith.mulf %309, %618 : vector<1x128xf32>
    %620 = arith.addf %616, %619 : vector<1x128xf32>
    %c193 = arith.constant 193 : index
    %621 = memref.load %arg1[%c193] : memref<433xf32, #tpu.memory_space<smem>>
    %622 = vector.broadcast %621 : f32 to vector<1x128xf32>
    %623 = arith.mulf %357, %622 : vector<1x128xf32>
    %624 = arith.addf %620, %623 : vector<1x128xf32>
    %c203 = arith.constant 203 : index
    %625 = memref.load %arg1[%c203] : memref<433xf32, #tpu.memory_space<smem>>
    %626 = vector.broadcast %625 : f32 to vector<1x128xf32>
    %627 = arith.mulf %405, %626 : vector<1x128xf32>
    %628 = arith.addf %624, %627 : vector<1x128xf32>
    %c213 = arith.constant 213 : index
    %629 = memref.load %arg1[%c213] : memref<433xf32, #tpu.memory_space<smem>>
    %630 = vector.broadcast %629 : f32 to vector<1x128xf32>
    %631 = arith.mulf %453, %630 : vector<1x128xf32>
    %632 = arith.addf %628, %631 : vector<1x128xf32>
    %c223 = arith.constant 223 : index
    %633 = memref.load %arg1[%c223] : memref<433xf32, #tpu.memory_space<smem>>
    %634 = vector.broadcast %633 : f32 to vector<1x128xf32>
    %635 = arith.mulf %501, %634 : vector<1x128xf32>
    %636 = arith.addf %632, %635 : vector<1x128xf32>
    %c233 = arith.constant 233 : index
    %637 = memref.load %arg1[%c233] : memref<433xf32, #tpu.memory_space<smem>>
    %638 = vector.broadcast %637 : f32 to vector<1x128xf32>
    %639 = arith.mulf %549, %638 : vector<1x128xf32>
    %640 = arith.addf %636, %639 : vector<1x128xf32>
    %c243 = arith.constant 243 : index
    %641 = memref.load %arg1[%c243] : memref<433xf32, #tpu.memory_space<smem>>
    %642 = vector.broadcast %641 : f32 to vector<1x128xf32>
    %643 = arith.addf %640, %642 : vector<1x128xf32>
    %cst_44 = arith.constant 0.000000e+00 : f32
    %644 = vector.broadcast %cst_44 : f32 to vector<1x128xf32>
    %645 = arith.maximumf %643, %644 : vector<1x128xf32>
    %c134 = arith.constant 134 : index
    %646 = memref.load %arg1[%c134] : memref<433xf32, #tpu.memory_space<smem>>
    %647 = vector.broadcast %646 : f32 to vector<1x128xf32>
    %648 = arith.mulf %69, %647 : vector<1x128xf32>
    %c144 = arith.constant 144 : index
    %649 = memref.load %arg1[%c144] : memref<433xf32, #tpu.memory_space<smem>>
    %650 = vector.broadcast %649 : f32 to vector<1x128xf32>
    %651 = arith.mulf %117, %650 : vector<1x128xf32>
    %652 = arith.addf %648, %651 : vector<1x128xf32>
    %c154 = arith.constant 154 : index
    %653 = memref.load %arg1[%c154] : memref<433xf32, #tpu.memory_space<smem>>
    %654 = vector.broadcast %653 : f32 to vector<1x128xf32>
    %655 = arith.mulf %165, %654 : vector<1x128xf32>
    %656 = arith.addf %652, %655 : vector<1x128xf32>
    %c164 = arith.constant 164 : index
    %657 = memref.load %arg1[%c164] : memref<433xf32, #tpu.memory_space<smem>>
    %658 = vector.broadcast %657 : f32 to vector<1x128xf32>
    %659 = arith.mulf %213, %658 : vector<1x128xf32>
    %660 = arith.addf %656, %659 : vector<1x128xf32>
    %c174 = arith.constant 174 : index
    %661 = memref.load %arg1[%c174] : memref<433xf32, #tpu.memory_space<smem>>
    %662 = vector.broadcast %661 : f32 to vector<1x128xf32>
    %663 = arith.mulf %261, %662 : vector<1x128xf32>
    %664 = arith.addf %660, %663 : vector<1x128xf32>
    %c184 = arith.constant 184 : index
    %665 = memref.load %arg1[%c184] : memref<433xf32, #tpu.memory_space<smem>>
    %666 = vector.broadcast %665 : f32 to vector<1x128xf32>
    %667 = arith.mulf %309, %666 : vector<1x128xf32>
    %668 = arith.addf %664, %667 : vector<1x128xf32>
    %c194 = arith.constant 194 : index
    %669 = memref.load %arg1[%c194] : memref<433xf32, #tpu.memory_space<smem>>
    %670 = vector.broadcast %669 : f32 to vector<1x128xf32>
    %671 = arith.mulf %357, %670 : vector<1x128xf32>
    %672 = arith.addf %668, %671 : vector<1x128xf32>
    %c204 = arith.constant 204 : index
    %673 = memref.load %arg1[%c204] : memref<433xf32, #tpu.memory_space<smem>>
    %674 = vector.broadcast %673 : f32 to vector<1x128xf32>
    %675 = arith.mulf %405, %674 : vector<1x128xf32>
    %676 = arith.addf %672, %675 : vector<1x128xf32>
    %c214 = arith.constant 214 : index
    %677 = memref.load %arg1[%c214] : memref<433xf32, #tpu.memory_space<smem>>
    %678 = vector.broadcast %677 : f32 to vector<1x128xf32>
    %679 = arith.mulf %453, %678 : vector<1x128xf32>
    %680 = arith.addf %676, %679 : vector<1x128xf32>
    %c224 = arith.constant 224 : index
    %681 = memref.load %arg1[%c224] : memref<433xf32, #tpu.memory_space<smem>>
    %682 = vector.broadcast %681 : f32 to vector<1x128xf32>
    %683 = arith.mulf %501, %682 : vector<1x128xf32>
    %684 = arith.addf %680, %683 : vector<1x128xf32>
    %c234 = arith.constant 234 : index
    %685 = memref.load %arg1[%c234] : memref<433xf32, #tpu.memory_space<smem>>
    %686 = vector.broadcast %685 : f32 to vector<1x128xf32>
    %687 = arith.mulf %549, %686 : vector<1x128xf32>
    %688 = arith.addf %684, %687 : vector<1x128xf32>
    %c244 = arith.constant 244 : index
    %689 = memref.load %arg1[%c244] : memref<433xf32, #tpu.memory_space<smem>>
    %690 = vector.broadcast %689 : f32 to vector<1x128xf32>
    %691 = arith.addf %688, %690 : vector<1x128xf32>
    %cst_45 = arith.constant 0.000000e+00 : f32
    %692 = vector.broadcast %cst_45 : f32 to vector<1x128xf32>
    %693 = arith.maximumf %691, %692 : vector<1x128xf32>
    %c135 = arith.constant 135 : index
    %694 = memref.load %arg1[%c135] : memref<433xf32, #tpu.memory_space<smem>>
    %695 = vector.broadcast %694 : f32 to vector<1x128xf32>
    %696 = arith.mulf %69, %695 : vector<1x128xf32>
    %c145 = arith.constant 145 : index
    %697 = memref.load %arg1[%c145] : memref<433xf32, #tpu.memory_space<smem>>
    %698 = vector.broadcast %697 : f32 to vector<1x128xf32>
    %699 = arith.mulf %117, %698 : vector<1x128xf32>
    %700 = arith.addf %696, %699 : vector<1x128xf32>
    %c155 = arith.constant 155 : index
    %701 = memref.load %arg1[%c155] : memref<433xf32, #tpu.memory_space<smem>>
    %702 = vector.broadcast %701 : f32 to vector<1x128xf32>
    %703 = arith.mulf %165, %702 : vector<1x128xf32>
    %704 = arith.addf %700, %703 : vector<1x128xf32>
    %c165 = arith.constant 165 : index
    %705 = memref.load %arg1[%c165] : memref<433xf32, #tpu.memory_space<smem>>
    %706 = vector.broadcast %705 : f32 to vector<1x128xf32>
    %707 = arith.mulf %213, %706 : vector<1x128xf32>
    %708 = arith.addf %704, %707 : vector<1x128xf32>
    %c175 = arith.constant 175 : index
    %709 = memref.load %arg1[%c175] : memref<433xf32, #tpu.memory_space<smem>>
    %710 = vector.broadcast %709 : f32 to vector<1x128xf32>
    %711 = arith.mulf %261, %710 : vector<1x128xf32>
    %712 = arith.addf %708, %711 : vector<1x128xf32>
    %c185 = arith.constant 185 : index
    %713 = memref.load %arg1[%c185] : memref<433xf32, #tpu.memory_space<smem>>
    %714 = vector.broadcast %713 : f32 to vector<1x128xf32>
    %715 = arith.mulf %309, %714 : vector<1x128xf32>
    %716 = arith.addf %712, %715 : vector<1x128xf32>
    %c195 = arith.constant 195 : index
    %717 = memref.load %arg1[%c195] : memref<433xf32, #tpu.memory_space<smem>>
    %718 = vector.broadcast %717 : f32 to vector<1x128xf32>
    %719 = arith.mulf %357, %718 : vector<1x128xf32>
    %720 = arith.addf %716, %719 : vector<1x128xf32>
    %c205 = arith.constant 205 : index
    %721 = memref.load %arg1[%c205] : memref<433xf32, #tpu.memory_space<smem>>
    %722 = vector.broadcast %721 : f32 to vector<1x128xf32>
    %723 = arith.mulf %405, %722 : vector<1x128xf32>
    %724 = arith.addf %720, %723 : vector<1x128xf32>
    %c215 = arith.constant 215 : index
    %725 = memref.load %arg1[%c215] : memref<433xf32, #tpu.memory_space<smem>>
    %726 = vector.broadcast %725 : f32 to vector<1x128xf32>
    %727 = arith.mulf %453, %726 : vector<1x128xf32>
    %728 = arith.addf %724, %727 : vector<1x128xf32>
    %c225 = arith.constant 225 : index
    %729 = memref.load %arg1[%c225] : memref<433xf32, #tpu.memory_space<smem>>
    %730 = vector.broadcast %729 : f32 to vector<1x128xf32>
    %731 = arith.mulf %501, %730 : vector<1x128xf32>
    %732 = arith.addf %728, %731 : vector<1x128xf32>
    %c235 = arith.constant 235 : index
    %733 = memref.load %arg1[%c235] : memref<433xf32, #tpu.memory_space<smem>>
    %734 = vector.broadcast %733 : f32 to vector<1x128xf32>
    %735 = arith.mulf %549, %734 : vector<1x128xf32>
    %736 = arith.addf %732, %735 : vector<1x128xf32>
    %c245 = arith.constant 245 : index
    %737 = memref.load %arg1[%c245] : memref<433xf32, #tpu.memory_space<smem>>
    %738 = vector.broadcast %737 : f32 to vector<1x128xf32>
    %739 = arith.addf %736, %738 : vector<1x128xf32>
    %cst_46 = arith.constant 0.000000e+00 : f32
    %740 = vector.broadcast %cst_46 : f32 to vector<1x128xf32>
    %741 = arith.maximumf %739, %740 : vector<1x128xf32>
    %c136 = arith.constant 136 : index
    %742 = memref.load %arg1[%c136] : memref<433xf32, #tpu.memory_space<smem>>
    %743 = vector.broadcast %742 : f32 to vector<1x128xf32>
    %744 = arith.mulf %69, %743 : vector<1x128xf32>
    %c146 = arith.constant 146 : index
    %745 = memref.load %arg1[%c146] : memref<433xf32, #tpu.memory_space<smem>>
    %746 = vector.broadcast %745 : f32 to vector<1x128xf32>
    %747 = arith.mulf %117, %746 : vector<1x128xf32>
    %748 = arith.addf %744, %747 : vector<1x128xf32>
    %c156 = arith.constant 156 : index
    %749 = memref.load %arg1[%c156] : memref<433xf32, #tpu.memory_space<smem>>
    %750 = vector.broadcast %749 : f32 to vector<1x128xf32>
    %751 = arith.mulf %165, %750 : vector<1x128xf32>
    %752 = arith.addf %748, %751 : vector<1x128xf32>
    %c166 = arith.constant 166 : index
    %753 = memref.load %arg1[%c166] : memref<433xf32, #tpu.memory_space<smem>>
    %754 = vector.broadcast %753 : f32 to vector<1x128xf32>
    %755 = arith.mulf %213, %754 : vector<1x128xf32>
    %756 = arith.addf %752, %755 : vector<1x128xf32>
    %c176 = arith.constant 176 : index
    %757 = memref.load %arg1[%c176] : memref<433xf32, #tpu.memory_space<smem>>
    %758 = vector.broadcast %757 : f32 to vector<1x128xf32>
    %759 = arith.mulf %261, %758 : vector<1x128xf32>
    %760 = arith.addf %756, %759 : vector<1x128xf32>
    %c186 = arith.constant 186 : index
    %761 = memref.load %arg1[%c186] : memref<433xf32, #tpu.memory_space<smem>>
    %762 = vector.broadcast %761 : f32 to vector<1x128xf32>
    %763 = arith.mulf %309, %762 : vector<1x128xf32>
    %764 = arith.addf %760, %763 : vector<1x128xf32>
    %c196 = arith.constant 196 : index
    %765 = memref.load %arg1[%c196] : memref<433xf32, #tpu.memory_space<smem>>
    %766 = vector.broadcast %765 : f32 to vector<1x128xf32>
    %767 = arith.mulf %357, %766 : vector<1x128xf32>
    %768 = arith.addf %764, %767 : vector<1x128xf32>
    %c206 = arith.constant 206 : index
    %769 = memref.load %arg1[%c206] : memref<433xf32, #tpu.memory_space<smem>>
    %770 = vector.broadcast %769 : f32 to vector<1x128xf32>
    %771 = arith.mulf %405, %770 : vector<1x128xf32>
    %772 = arith.addf %768, %771 : vector<1x128xf32>
    %c216 = arith.constant 216 : index
    %773 = memref.load %arg1[%c216] : memref<433xf32, #tpu.memory_space<smem>>
    %774 = vector.broadcast %773 : f32 to vector<1x128xf32>
    %775 = arith.mulf %453, %774 : vector<1x128xf32>
    %776 = arith.addf %772, %775 : vector<1x128xf32>
    %c226 = arith.constant 226 : index
    %777 = memref.load %arg1[%c226] : memref<433xf32, #tpu.memory_space<smem>>
    %778 = vector.broadcast %777 : f32 to vector<1x128xf32>
    %779 = arith.mulf %501, %778 : vector<1x128xf32>
    %780 = arith.addf %776, %779 : vector<1x128xf32>
    %c236 = arith.constant 236 : index
    %781 = memref.load %arg1[%c236] : memref<433xf32, #tpu.memory_space<smem>>
    %782 = vector.broadcast %781 : f32 to vector<1x128xf32>
    %783 = arith.mulf %549, %782 : vector<1x128xf32>
    %784 = arith.addf %780, %783 : vector<1x128xf32>
    %c246 = arith.constant 246 : index
    %785 = memref.load %arg1[%c246] : memref<433xf32, #tpu.memory_space<smem>>
    %786 = vector.broadcast %785 : f32 to vector<1x128xf32>
    %787 = arith.addf %784, %786 : vector<1x128xf32>
    %cst_47 = arith.constant 0.000000e+00 : f32
    %788 = vector.broadcast %cst_47 : f32 to vector<1x128xf32>
    %789 = arith.maximumf %787, %788 : vector<1x128xf32>
    %c137 = arith.constant 137 : index
    %790 = memref.load %arg1[%c137] : memref<433xf32, #tpu.memory_space<smem>>
    %791 = vector.broadcast %790 : f32 to vector<1x128xf32>
    %792 = arith.mulf %69, %791 : vector<1x128xf32>
    %c147 = arith.constant 147 : index
    %793 = memref.load %arg1[%c147] : memref<433xf32, #tpu.memory_space<smem>>
    %794 = vector.broadcast %793 : f32 to vector<1x128xf32>
    %795 = arith.mulf %117, %794 : vector<1x128xf32>
    %796 = arith.addf %792, %795 : vector<1x128xf32>
    %c157 = arith.constant 157 : index
    %797 = memref.load %arg1[%c157] : memref<433xf32, #tpu.memory_space<smem>>
    %798 = vector.broadcast %797 : f32 to vector<1x128xf32>
    %799 = arith.mulf %165, %798 : vector<1x128xf32>
    %800 = arith.addf %796, %799 : vector<1x128xf32>
    %c167 = arith.constant 167 : index
    %801 = memref.load %arg1[%c167] : memref<433xf32, #tpu.memory_space<smem>>
    %802 = vector.broadcast %801 : f32 to vector<1x128xf32>
    %803 = arith.mulf %213, %802 : vector<1x128xf32>
    %804 = arith.addf %800, %803 : vector<1x128xf32>
    %c177 = arith.constant 177 : index
    %805 = memref.load %arg1[%c177] : memref<433xf32, #tpu.memory_space<smem>>
    %806 = vector.broadcast %805 : f32 to vector<1x128xf32>
    %807 = arith.mulf %261, %806 : vector<1x128xf32>
    %808 = arith.addf %804, %807 : vector<1x128xf32>
    %c187 = arith.constant 187 : index
    %809 = memref.load %arg1[%c187] : memref<433xf32, #tpu.memory_space<smem>>
    %810 = vector.broadcast %809 : f32 to vector<1x128xf32>
    %811 = arith.mulf %309, %810 : vector<1x128xf32>
    %812 = arith.addf %808, %811 : vector<1x128xf32>
    %c197 = arith.constant 197 : index
    %813 = memref.load %arg1[%c197] : memref<433xf32, #tpu.memory_space<smem>>
    %814 = vector.broadcast %813 : f32 to vector<1x128xf32>
    %815 = arith.mulf %357, %814 : vector<1x128xf32>
    %816 = arith.addf %812, %815 : vector<1x128xf32>
    %c207 = arith.constant 207 : index
    %817 = memref.load %arg1[%c207] : memref<433xf32, #tpu.memory_space<smem>>
    %818 = vector.broadcast %817 : f32 to vector<1x128xf32>
    %819 = arith.mulf %405, %818 : vector<1x128xf32>
    %820 = arith.addf %816, %819 : vector<1x128xf32>
    %c217 = arith.constant 217 : index
    %821 = memref.load %arg1[%c217] : memref<433xf32, #tpu.memory_space<smem>>
    %822 = vector.broadcast %821 : f32 to vector<1x128xf32>
    %823 = arith.mulf %453, %822 : vector<1x128xf32>
    %824 = arith.addf %820, %823 : vector<1x128xf32>
    %c227 = arith.constant 227 : index
    %825 = memref.load %arg1[%c227] : memref<433xf32, #tpu.memory_space<smem>>
    %826 = vector.broadcast %825 : f32 to vector<1x128xf32>
    %827 = arith.mulf %501, %826 : vector<1x128xf32>
    %828 = arith.addf %824, %827 : vector<1x128xf32>
    %c237 = arith.constant 237 : index
    %829 = memref.load %arg1[%c237] : memref<433xf32, #tpu.memory_space<smem>>
    %830 = vector.broadcast %829 : f32 to vector<1x128xf32>
    %831 = arith.mulf %549, %830 : vector<1x128xf32>
    %832 = arith.addf %828, %831 : vector<1x128xf32>
    %c247 = arith.constant 247 : index
    %833 = memref.load %arg1[%c247] : memref<433xf32, #tpu.memory_space<smem>>
    %834 = vector.broadcast %833 : f32 to vector<1x128xf32>
    %835 = arith.addf %832, %834 : vector<1x128xf32>
    %cst_48 = arith.constant 0.000000e+00 : f32
    %836 = vector.broadcast %cst_48 : f32 to vector<1x128xf32>
    %837 = arith.maximumf %835, %836 : vector<1x128xf32>
    %c138 = arith.constant 138 : index
    %838 = memref.load %arg1[%c138] : memref<433xf32, #tpu.memory_space<smem>>
    %839 = vector.broadcast %838 : f32 to vector<1x128xf32>
    %840 = arith.mulf %69, %839 : vector<1x128xf32>
    %c148 = arith.constant 148 : index
    %841 = memref.load %arg1[%c148] : memref<433xf32, #tpu.memory_space<smem>>
    %842 = vector.broadcast %841 : f32 to vector<1x128xf32>
    %843 = arith.mulf %117, %842 : vector<1x128xf32>
    %844 = arith.addf %840, %843 : vector<1x128xf32>
    %c158 = arith.constant 158 : index
    %845 = memref.load %arg1[%c158] : memref<433xf32, #tpu.memory_space<smem>>
    %846 = vector.broadcast %845 : f32 to vector<1x128xf32>
    %847 = arith.mulf %165, %846 : vector<1x128xf32>
    %848 = arith.addf %844, %847 : vector<1x128xf32>
    %c168 = arith.constant 168 : index
    %849 = memref.load %arg1[%c168] : memref<433xf32, #tpu.memory_space<smem>>
    %850 = vector.broadcast %849 : f32 to vector<1x128xf32>
    %851 = arith.mulf %213, %850 : vector<1x128xf32>
    %852 = arith.addf %848, %851 : vector<1x128xf32>
    %c178 = arith.constant 178 : index
    %853 = memref.load %arg1[%c178] : memref<433xf32, #tpu.memory_space<smem>>
    %854 = vector.broadcast %853 : f32 to vector<1x128xf32>
    %855 = arith.mulf %261, %854 : vector<1x128xf32>
    %856 = arith.addf %852, %855 : vector<1x128xf32>
    %c188 = arith.constant 188 : index
    %857 = memref.load %arg1[%c188] : memref<433xf32, #tpu.memory_space<smem>>
    %858 = vector.broadcast %857 : f32 to vector<1x128xf32>
    %859 = arith.mulf %309, %858 : vector<1x128xf32>
    %860 = arith.addf %856, %859 : vector<1x128xf32>
    %c198 = arith.constant 198 : index
    %861 = memref.load %arg1[%c198] : memref<433xf32, #tpu.memory_space<smem>>
    %862 = vector.broadcast %861 : f32 to vector<1x128xf32>
    %863 = arith.mulf %357, %862 : vector<1x128xf32>
    %864 = arith.addf %860, %863 : vector<1x128xf32>
    %c208 = arith.constant 208 : index
    %865 = memref.load %arg1[%c208] : memref<433xf32, #tpu.memory_space<smem>>
    %866 = vector.broadcast %865 : f32 to vector<1x128xf32>
    %867 = arith.mulf %405, %866 : vector<1x128xf32>
    %868 = arith.addf %864, %867 : vector<1x128xf32>
    %c218 = arith.constant 218 : index
    %869 = memref.load %arg1[%c218] : memref<433xf32, #tpu.memory_space<smem>>
    %870 = vector.broadcast %869 : f32 to vector<1x128xf32>
    %871 = arith.mulf %453, %870 : vector<1x128xf32>
    %872 = arith.addf %868, %871 : vector<1x128xf32>
    %c228 = arith.constant 228 : index
    %873 = memref.load %arg1[%c228] : memref<433xf32, #tpu.memory_space<smem>>
    %874 = vector.broadcast %873 : f32 to vector<1x128xf32>
    %875 = arith.mulf %501, %874 : vector<1x128xf32>
    %876 = arith.addf %872, %875 : vector<1x128xf32>
    %c238 = arith.constant 238 : index
    %877 = memref.load %arg1[%c238] : memref<433xf32, #tpu.memory_space<smem>>
    %878 = vector.broadcast %877 : f32 to vector<1x128xf32>
    %879 = arith.mulf %549, %878 : vector<1x128xf32>
    %880 = arith.addf %876, %879 : vector<1x128xf32>
    %c248 = arith.constant 248 : index
    %881 = memref.load %arg1[%c248] : memref<433xf32, #tpu.memory_space<smem>>
    %882 = vector.broadcast %881 : f32 to vector<1x128xf32>
    %883 = arith.addf %880, %882 : vector<1x128xf32>
    %cst_49 = arith.constant 0.000000e+00 : f32
    %884 = vector.broadcast %cst_49 : f32 to vector<1x128xf32>
    %885 = arith.maximumf %883, %884 : vector<1x128xf32>
    %c139 = arith.constant 139 : index
    %886 = memref.load %arg1[%c139] : memref<433xf32, #tpu.memory_space<smem>>
    %887 = vector.broadcast %886 : f32 to vector<1x128xf32>
    %888 = arith.mulf %69, %887 : vector<1x128xf32>
    %c149 = arith.constant 149 : index
    %889 = memref.load %arg1[%c149] : memref<433xf32, #tpu.memory_space<smem>>
    %890 = vector.broadcast %889 : f32 to vector<1x128xf32>
    %891 = arith.mulf %117, %890 : vector<1x128xf32>
    %892 = arith.addf %888, %891 : vector<1x128xf32>
    %c159 = arith.constant 159 : index
    %893 = memref.load %arg1[%c159] : memref<433xf32, #tpu.memory_space<smem>>
    %894 = vector.broadcast %893 : f32 to vector<1x128xf32>
    %895 = arith.mulf %165, %894 : vector<1x128xf32>
    %896 = arith.addf %892, %895 : vector<1x128xf32>
    %c169 = arith.constant 169 : index
    %897 = memref.load %arg1[%c169] : memref<433xf32, #tpu.memory_space<smem>>
    %898 = vector.broadcast %897 : f32 to vector<1x128xf32>
    %899 = arith.mulf %213, %898 : vector<1x128xf32>
    %900 = arith.addf %896, %899 : vector<1x128xf32>
    %c179 = arith.constant 179 : index
    %901 = memref.load %arg1[%c179] : memref<433xf32, #tpu.memory_space<smem>>
    %902 = vector.broadcast %901 : f32 to vector<1x128xf32>
    %903 = arith.mulf %261, %902 : vector<1x128xf32>
    %904 = arith.addf %900, %903 : vector<1x128xf32>
    %c189 = arith.constant 189 : index
    %905 = memref.load %arg1[%c189] : memref<433xf32, #tpu.memory_space<smem>>
    %906 = vector.broadcast %905 : f32 to vector<1x128xf32>
    %907 = arith.mulf %309, %906 : vector<1x128xf32>
    %908 = arith.addf %904, %907 : vector<1x128xf32>
    %c199 = arith.constant 199 : index
    %909 = memref.load %arg1[%c199] : memref<433xf32, #tpu.memory_space<smem>>
    %910 = vector.broadcast %909 : f32 to vector<1x128xf32>
    %911 = arith.mulf %357, %910 : vector<1x128xf32>
    %912 = arith.addf %908, %911 : vector<1x128xf32>
    %c209 = arith.constant 209 : index
    %913 = memref.load %arg1[%c209] : memref<433xf32, #tpu.memory_space<smem>>
    %914 = vector.broadcast %913 : f32 to vector<1x128xf32>
    %915 = arith.mulf %405, %914 : vector<1x128xf32>
    %916 = arith.addf %912, %915 : vector<1x128xf32>
    %c219 = arith.constant 219 : index
    %917 = memref.load %arg1[%c219] : memref<433xf32, #tpu.memory_space<smem>>
    %918 = vector.broadcast %917 : f32 to vector<1x128xf32>
    %919 = arith.mulf %453, %918 : vector<1x128xf32>
    %920 = arith.addf %916, %919 : vector<1x128xf32>
    %c229 = arith.constant 229 : index
    %921 = memref.load %arg1[%c229] : memref<433xf32, #tpu.memory_space<smem>>
    %922 = vector.broadcast %921 : f32 to vector<1x128xf32>
    %923 = arith.mulf %501, %922 : vector<1x128xf32>
    %924 = arith.addf %920, %923 : vector<1x128xf32>
    %c239 = arith.constant 239 : index
    %925 = memref.load %arg1[%c239] : memref<433xf32, #tpu.memory_space<smem>>
    %926 = vector.broadcast %925 : f32 to vector<1x128xf32>
    %927 = arith.mulf %549, %926 : vector<1x128xf32>
    %928 = arith.addf %924, %927 : vector<1x128xf32>
    %c249 = arith.constant 249 : index
    %929 = memref.load %arg1[%c249] : memref<433xf32, #tpu.memory_space<smem>>
    %930 = vector.broadcast %929 : f32 to vector<1x128xf32>
    %931 = arith.addf %928, %930 : vector<1x128xf32>
    %cst_50 = arith.constant 0.000000e+00 : f32
    %932 = vector.broadcast %cst_50 : f32 to vector<1x128xf32>
    %933 = arith.maximumf %931, %932 : vector<1x128xf32>
    %c140 = arith.constant 140 : index
    %934 = memref.load %arg1[%c140] : memref<433xf32, #tpu.memory_space<smem>>
    %935 = vector.broadcast %934 : f32 to vector<1x128xf32>
    %936 = arith.mulf %69, %935 : vector<1x128xf32>
    %c150 = arith.constant 150 : index
    %937 = memref.load %arg1[%c150] : memref<433xf32, #tpu.memory_space<smem>>
    %938 = vector.broadcast %937 : f32 to vector<1x128xf32>
    %939 = arith.mulf %117, %938 : vector<1x128xf32>
    %940 = arith.addf %936, %939 : vector<1x128xf32>
    %c160 = arith.constant 160 : index
    %941 = memref.load %arg1[%c160] : memref<433xf32, #tpu.memory_space<smem>>
    %942 = vector.broadcast %941 : f32 to vector<1x128xf32>
    %943 = arith.mulf %165, %942 : vector<1x128xf32>
    %944 = arith.addf %940, %943 : vector<1x128xf32>
    %c170 = arith.constant 170 : index
    %945 = memref.load %arg1[%c170] : memref<433xf32, #tpu.memory_space<smem>>
    %946 = vector.broadcast %945 : f32 to vector<1x128xf32>
    %947 = arith.mulf %213, %946 : vector<1x128xf32>
    %948 = arith.addf %944, %947 : vector<1x128xf32>
    %c180 = arith.constant 180 : index
    %949 = memref.load %arg1[%c180] : memref<433xf32, #tpu.memory_space<smem>>
    %950 = vector.broadcast %949 : f32 to vector<1x128xf32>
    %951 = arith.mulf %261, %950 : vector<1x128xf32>
    %952 = arith.addf %948, %951 : vector<1x128xf32>
    %c190 = arith.constant 190 : index
    %953 = memref.load %arg1[%c190] : memref<433xf32, #tpu.memory_space<smem>>
    %954 = vector.broadcast %953 : f32 to vector<1x128xf32>
    %955 = arith.mulf %309, %954 : vector<1x128xf32>
    %956 = arith.addf %952, %955 : vector<1x128xf32>
    %c200 = arith.constant 200 : index
    %957 = memref.load %arg1[%c200] : memref<433xf32, #tpu.memory_space<smem>>
    %958 = vector.broadcast %957 : f32 to vector<1x128xf32>
    %959 = arith.mulf %357, %958 : vector<1x128xf32>
    %960 = arith.addf %956, %959 : vector<1x128xf32>
    %c210 = arith.constant 210 : index
    %961 = memref.load %arg1[%c210] : memref<433xf32, #tpu.memory_space<smem>>
    %962 = vector.broadcast %961 : f32 to vector<1x128xf32>
    %963 = arith.mulf %405, %962 : vector<1x128xf32>
    %964 = arith.addf %960, %963 : vector<1x128xf32>
    %c220 = arith.constant 220 : index
    %965 = memref.load %arg1[%c220] : memref<433xf32, #tpu.memory_space<smem>>
    %966 = vector.broadcast %965 : f32 to vector<1x128xf32>
    %967 = arith.mulf %453, %966 : vector<1x128xf32>
    %968 = arith.addf %964, %967 : vector<1x128xf32>
    %c230 = arith.constant 230 : index
    %969 = memref.load %arg1[%c230] : memref<433xf32, #tpu.memory_space<smem>>
    %970 = vector.broadcast %969 : f32 to vector<1x128xf32>
    %971 = arith.mulf %501, %970 : vector<1x128xf32>
    %972 = arith.addf %968, %971 : vector<1x128xf32>
    %c240 = arith.constant 240 : index
    %973 = memref.load %arg1[%c240] : memref<433xf32, #tpu.memory_space<smem>>
    %974 = vector.broadcast %973 : f32 to vector<1x128xf32>
    %975 = arith.mulf %549, %974 : vector<1x128xf32>
    %976 = arith.addf %972, %975 : vector<1x128xf32>
    %c250 = arith.constant 250 : index
    %977 = memref.load %arg1[%c250] : memref<433xf32, #tpu.memory_space<smem>>
    %978 = vector.broadcast %977 : f32 to vector<1x128xf32>
    %979 = arith.addf %976, %978 : vector<1x128xf32>
    %cst_51 = arith.constant 0.000000e+00 : f32
    %980 = vector.broadcast %cst_51 : f32 to vector<1x128xf32>
    %981 = arith.maximumf %979, %980 : vector<1x128xf32>
    %c141 = arith.constant 141 : index
    %982 = memref.load %arg1[%c141] : memref<433xf32, #tpu.memory_space<smem>>
    %983 = vector.broadcast %982 : f32 to vector<1x128xf32>
    %984 = arith.mulf %69, %983 : vector<1x128xf32>
    %c151 = arith.constant 151 : index
    %985 = memref.load %arg1[%c151] : memref<433xf32, #tpu.memory_space<smem>>
    %986 = vector.broadcast %985 : f32 to vector<1x128xf32>
    %987 = arith.mulf %117, %986 : vector<1x128xf32>
    %988 = arith.addf %984, %987 : vector<1x128xf32>
    %c161 = arith.constant 161 : index
    %989 = memref.load %arg1[%c161] : memref<433xf32, #tpu.memory_space<smem>>
    %990 = vector.broadcast %989 : f32 to vector<1x128xf32>
    %991 = arith.mulf %165, %990 : vector<1x128xf32>
    %992 = arith.addf %988, %991 : vector<1x128xf32>
    %c171 = arith.constant 171 : index
    %993 = memref.load %arg1[%c171] : memref<433xf32, #tpu.memory_space<smem>>
    %994 = vector.broadcast %993 : f32 to vector<1x128xf32>
    %995 = arith.mulf %213, %994 : vector<1x128xf32>
    %996 = arith.addf %992, %995 : vector<1x128xf32>
    %c181 = arith.constant 181 : index
    %997 = memref.load %arg1[%c181] : memref<433xf32, #tpu.memory_space<smem>>
    %998 = vector.broadcast %997 : f32 to vector<1x128xf32>
    %999 = arith.mulf %261, %998 : vector<1x128xf32>
    %1000 = arith.addf %996, %999 : vector<1x128xf32>
    %c191 = arith.constant 191 : index
    %1001 = memref.load %arg1[%c191] : memref<433xf32, #tpu.memory_space<smem>>
    %1002 = vector.broadcast %1001 : f32 to vector<1x128xf32>
    %1003 = arith.mulf %309, %1002 : vector<1x128xf32>
    %1004 = arith.addf %1000, %1003 : vector<1x128xf32>
    %c201 = arith.constant 201 : index
    %1005 = memref.load %arg1[%c201] : memref<433xf32, #tpu.memory_space<smem>>
    %1006 = vector.broadcast %1005 : f32 to vector<1x128xf32>
    %1007 = arith.mulf %357, %1006 : vector<1x128xf32>
    %1008 = arith.addf %1004, %1007 : vector<1x128xf32>
    %c211 = arith.constant 211 : index
    %1009 = memref.load %arg1[%c211] : memref<433xf32, #tpu.memory_space<smem>>
    %1010 = vector.broadcast %1009 : f32 to vector<1x128xf32>
    %1011 = arith.mulf %405, %1010 : vector<1x128xf32>
    %1012 = arith.addf %1008, %1011 : vector<1x128xf32>
    %c221 = arith.constant 221 : index
    %1013 = memref.load %arg1[%c221] : memref<433xf32, #tpu.memory_space<smem>>
    %1014 = vector.broadcast %1013 : f32 to vector<1x128xf32>
    %1015 = arith.mulf %453, %1014 : vector<1x128xf32>
    %1016 = arith.addf %1012, %1015 : vector<1x128xf32>
    %c231 = arith.constant 231 : index
    %1017 = memref.load %arg1[%c231] : memref<433xf32, #tpu.memory_space<smem>>
    %1018 = vector.broadcast %1017 : f32 to vector<1x128xf32>
    %1019 = arith.mulf %501, %1018 : vector<1x128xf32>
    %1020 = arith.addf %1016, %1019 : vector<1x128xf32>
    %c241 = arith.constant 241 : index
    %1021 = memref.load %arg1[%c241] : memref<433xf32, #tpu.memory_space<smem>>
    %1022 = vector.broadcast %1021 : f32 to vector<1x128xf32>
    %1023 = arith.mulf %549, %1022 : vector<1x128xf32>
    %1024 = arith.addf %1020, %1023 : vector<1x128xf32>
    %c251 = arith.constant 251 : index
    %1025 = memref.load %arg1[%c251] : memref<433xf32, #tpu.memory_space<smem>>
    %1026 = vector.broadcast %1025 : f32 to vector<1x128xf32>
    %1027 = arith.addf %1024, %1026 : vector<1x128xf32>
    %cst_52 = arith.constant 0.000000e+00 : f32
    %1028 = vector.broadcast %cst_52 : f32 to vector<1x128xf32>
    %1029 = arith.maximumf %1027, %1028 : vector<1x128xf32>
    %c252 = arith.constant 252 : index
    %1030 = memref.load %arg1[%c252] : memref<433xf32, #tpu.memory_space<smem>>
    %1031 = vector.broadcast %1030 : f32 to vector<1x128xf32>
    %1032 = arith.mulf %597, %1031 : vector<1x128xf32>
    %c267 = arith.constant 267 : index
    %1033 = memref.load %arg1[%c267] : memref<433xf32, #tpu.memory_space<smem>>
    %1034 = vector.broadcast %1033 : f32 to vector<1x128xf32>
    %1035 = arith.mulf %645, %1034 : vector<1x128xf32>
    %1036 = arith.addf %1032, %1035 : vector<1x128xf32>
    %c282 = arith.constant 282 : index
    %1037 = memref.load %arg1[%c282] : memref<433xf32, #tpu.memory_space<smem>>
    %1038 = vector.broadcast %1037 : f32 to vector<1x128xf32>
    %1039 = arith.mulf %693, %1038 : vector<1x128xf32>
    %1040 = arith.addf %1036, %1039 : vector<1x128xf32>
    %c297 = arith.constant 297 : index
    %1041 = memref.load %arg1[%c297] : memref<433xf32, #tpu.memory_space<smem>>
    %1042 = vector.broadcast %1041 : f32 to vector<1x128xf32>
    %1043 = arith.mulf %741, %1042 : vector<1x128xf32>
    %1044 = arith.addf %1040, %1043 : vector<1x128xf32>
    %c312 = arith.constant 312 : index
    %1045 = memref.load %arg1[%c312] : memref<433xf32, #tpu.memory_space<smem>>
    %1046 = vector.broadcast %1045 : f32 to vector<1x128xf32>
    %1047 = arith.mulf %789, %1046 : vector<1x128xf32>
    %1048 = arith.addf %1044, %1047 : vector<1x128xf32>
    %c327 = arith.constant 327 : index
    %1049 = memref.load %arg1[%c327] : memref<433xf32, #tpu.memory_space<smem>>
    %1050 = vector.broadcast %1049 : f32 to vector<1x128xf32>
    %1051 = arith.mulf %837, %1050 : vector<1x128xf32>
    %1052 = arith.addf %1048, %1051 : vector<1x128xf32>
    %c342 = arith.constant 342 : index
    %1053 = memref.load %arg1[%c342] : memref<433xf32, #tpu.memory_space<smem>>
    %1054 = vector.broadcast %1053 : f32 to vector<1x128xf32>
    %1055 = arith.mulf %885, %1054 : vector<1x128xf32>
    %1056 = arith.addf %1052, %1055 : vector<1x128xf32>
    %c357 = arith.constant 357 : index
    %1057 = memref.load %arg1[%c357] : memref<433xf32, #tpu.memory_space<smem>>
    %1058 = vector.broadcast %1057 : f32 to vector<1x128xf32>
    %1059 = arith.mulf %933, %1058 : vector<1x128xf32>
    %1060 = arith.addf %1056, %1059 : vector<1x128xf32>
    %c372 = arith.constant 372 : index
    %1061 = memref.load %arg1[%c372] : memref<433xf32, #tpu.memory_space<smem>>
    %1062 = vector.broadcast %1061 : f32 to vector<1x128xf32>
    %1063 = arith.mulf %981, %1062 : vector<1x128xf32>
    %1064 = arith.addf %1060, %1063 : vector<1x128xf32>
    %c387 = arith.constant 387 : index
    %1065 = memref.load %arg1[%c387] : memref<433xf32, #tpu.memory_space<smem>>
    %1066 = vector.broadcast %1065 : f32 to vector<1x128xf32>
    %1067 = arith.mulf %1029, %1066 : vector<1x128xf32>
    %1068 = arith.addf %1064, %1067 : vector<1x128xf32>
    %c402 = arith.constant 402 : index
    %1069 = memref.load %arg1[%c402] : memref<433xf32, #tpu.memory_space<smem>>
    %1070 = vector.broadcast %1069 : f32 to vector<1x128xf32>
    %1071 = arith.addf %1068, %1070 : vector<1x128xf32>
    %cst_53 = arith.constant 0.000000e+00 : f32
    %1072 = vector.broadcast %cst_53 : f32 to vector<1x128xf32>
    %1073 = arith.maximumf %1071, %1072 : vector<1x128xf32>
    %c253 = arith.constant 253 : index
    %1074 = memref.load %arg1[%c253] : memref<433xf32, #tpu.memory_space<smem>>
    %1075 = vector.broadcast %1074 : f32 to vector<1x128xf32>
    %1076 = arith.mulf %597, %1075 : vector<1x128xf32>
    %c268 = arith.constant 268 : index
    %1077 = memref.load %arg1[%c268] : memref<433xf32, #tpu.memory_space<smem>>
    %1078 = vector.broadcast %1077 : f32 to vector<1x128xf32>
    %1079 = arith.mulf %645, %1078 : vector<1x128xf32>
    %1080 = arith.addf %1076, %1079 : vector<1x128xf32>
    %c283 = arith.constant 283 : index
    %1081 = memref.load %arg1[%c283] : memref<433xf32, #tpu.memory_space<smem>>
    %1082 = vector.broadcast %1081 : f32 to vector<1x128xf32>
    %1083 = arith.mulf %693, %1082 : vector<1x128xf32>
    %1084 = arith.addf %1080, %1083 : vector<1x128xf32>
    %c298 = arith.constant 298 : index
    %1085 = memref.load %arg1[%c298] : memref<433xf32, #tpu.memory_space<smem>>
    %1086 = vector.broadcast %1085 : f32 to vector<1x128xf32>
    %1087 = arith.mulf %741, %1086 : vector<1x128xf32>
    %1088 = arith.addf %1084, %1087 : vector<1x128xf32>
    %c313 = arith.constant 313 : index
    %1089 = memref.load %arg1[%c313] : memref<433xf32, #tpu.memory_space<smem>>
    %1090 = vector.broadcast %1089 : f32 to vector<1x128xf32>
    %1091 = arith.mulf %789, %1090 : vector<1x128xf32>
    %1092 = arith.addf %1088, %1091 : vector<1x128xf32>
    %c328 = arith.constant 328 : index
    %1093 = memref.load %arg1[%c328] : memref<433xf32, #tpu.memory_space<smem>>
    %1094 = vector.broadcast %1093 : f32 to vector<1x128xf32>
    %1095 = arith.mulf %837, %1094 : vector<1x128xf32>
    %1096 = arith.addf %1092, %1095 : vector<1x128xf32>
    %c343 = arith.constant 343 : index
    %1097 = memref.load %arg1[%c343] : memref<433xf32, #tpu.memory_space<smem>>
    %1098 = vector.broadcast %1097 : f32 to vector<1x128xf32>
    %1099 = arith.mulf %885, %1098 : vector<1x128xf32>
    %1100 = arith.addf %1096, %1099 : vector<1x128xf32>
    %c358 = arith.constant 358 : index
    %1101 = memref.load %arg1[%c358] : memref<433xf32, #tpu.memory_space<smem>>
    %1102 = vector.broadcast %1101 : f32 to vector<1x128xf32>
    %1103 = arith.mulf %933, %1102 : vector<1x128xf32>
    %1104 = arith.addf %1100, %1103 : vector<1x128xf32>
    %c373 = arith.constant 373 : index
    %1105 = memref.load %arg1[%c373] : memref<433xf32, #tpu.memory_space<smem>>
    %1106 = vector.broadcast %1105 : f32 to vector<1x128xf32>
    %1107 = arith.mulf %981, %1106 : vector<1x128xf32>
    %1108 = arith.addf %1104, %1107 : vector<1x128xf32>
    %c388 = arith.constant 388 : index
    %1109 = memref.load %arg1[%c388] : memref<433xf32, #tpu.memory_space<smem>>
    %1110 = vector.broadcast %1109 : f32 to vector<1x128xf32>
    %1111 = arith.mulf %1029, %1110 : vector<1x128xf32>
    %1112 = arith.addf %1108, %1111 : vector<1x128xf32>
    %c403 = arith.constant 403 : index
    %1113 = memref.load %arg1[%c403] : memref<433xf32, #tpu.memory_space<smem>>
    %1114 = vector.broadcast %1113 : f32 to vector<1x128xf32>
    %1115 = arith.addf %1112, %1114 : vector<1x128xf32>
    %cst_54 = arith.constant 0.000000e+00 : f32
    %1116 = vector.broadcast %cst_54 : f32 to vector<1x128xf32>
    %1117 = arith.maximumf %1115, %1116 : vector<1x128xf32>
    %c254 = arith.constant 254 : index
    %1118 = memref.load %arg1[%c254] : memref<433xf32, #tpu.memory_space<smem>>
    %1119 = vector.broadcast %1118 : f32 to vector<1x128xf32>
    %1120 = arith.mulf %597, %1119 : vector<1x128xf32>
    %c269 = arith.constant 269 : index
    %1121 = memref.load %arg1[%c269] : memref<433xf32, #tpu.memory_space<smem>>
    %1122 = vector.broadcast %1121 : f32 to vector<1x128xf32>
    %1123 = arith.mulf %645, %1122 : vector<1x128xf32>
    %1124 = arith.addf %1120, %1123 : vector<1x128xf32>
    %c284 = arith.constant 284 : index
    %1125 = memref.load %arg1[%c284] : memref<433xf32, #tpu.memory_space<smem>>
    %1126 = vector.broadcast %1125 : f32 to vector<1x128xf32>
    %1127 = arith.mulf %693, %1126 : vector<1x128xf32>
    %1128 = arith.addf %1124, %1127 : vector<1x128xf32>
    %c299 = arith.constant 299 : index
    %1129 = memref.load %arg1[%c299] : memref<433xf32, #tpu.memory_space<smem>>
    %1130 = vector.broadcast %1129 : f32 to vector<1x128xf32>
    %1131 = arith.mulf %741, %1130 : vector<1x128xf32>
    %1132 = arith.addf %1128, %1131 : vector<1x128xf32>
    %c314 = arith.constant 314 : index
    %1133 = memref.load %arg1[%c314] : memref<433xf32, #tpu.memory_space<smem>>
    %1134 = vector.broadcast %1133 : f32 to vector<1x128xf32>
    %1135 = arith.mulf %789, %1134 : vector<1x128xf32>
    %1136 = arith.addf %1132, %1135 : vector<1x128xf32>
    %c329 = arith.constant 329 : index
    %1137 = memref.load %arg1[%c329] : memref<433xf32, #tpu.memory_space<smem>>
    %1138 = vector.broadcast %1137 : f32 to vector<1x128xf32>
    %1139 = arith.mulf %837, %1138 : vector<1x128xf32>
    %1140 = arith.addf %1136, %1139 : vector<1x128xf32>
    %c344 = arith.constant 344 : index
    %1141 = memref.load %arg1[%c344] : memref<433xf32, #tpu.memory_space<smem>>
    %1142 = vector.broadcast %1141 : f32 to vector<1x128xf32>
    %1143 = arith.mulf %885, %1142 : vector<1x128xf32>
    %1144 = arith.addf %1140, %1143 : vector<1x128xf32>
    %c359 = arith.constant 359 : index
    %1145 = memref.load %arg1[%c359] : memref<433xf32, #tpu.memory_space<smem>>
    %1146 = vector.broadcast %1145 : f32 to vector<1x128xf32>
    %1147 = arith.mulf %933, %1146 : vector<1x128xf32>
    %1148 = arith.addf %1144, %1147 : vector<1x128xf32>
    %c374 = arith.constant 374 : index
    %1149 = memref.load %arg1[%c374] : memref<433xf32, #tpu.memory_space<smem>>
    %1150 = vector.broadcast %1149 : f32 to vector<1x128xf32>
    %1151 = arith.mulf %981, %1150 : vector<1x128xf32>
    %1152 = arith.addf %1148, %1151 : vector<1x128xf32>
    %c389 = arith.constant 389 : index
    %1153 = memref.load %arg1[%c389] : memref<433xf32, #tpu.memory_space<smem>>
    %1154 = vector.broadcast %1153 : f32 to vector<1x128xf32>
    %1155 = arith.mulf %1029, %1154 : vector<1x128xf32>
    %1156 = arith.addf %1152, %1155 : vector<1x128xf32>
    %c404 = arith.constant 404 : index
    %1157 = memref.load %arg1[%c404] : memref<433xf32, #tpu.memory_space<smem>>
    %1158 = vector.broadcast %1157 : f32 to vector<1x128xf32>
    %1159 = arith.addf %1156, %1158 : vector<1x128xf32>
    %cst_55 = arith.constant 0.000000e+00 : f32
    %1160 = vector.broadcast %cst_55 : f32 to vector<1x128xf32>
    %1161 = arith.maximumf %1159, %1160 : vector<1x128xf32>
    %c255 = arith.constant 255 : index
    %1162 = memref.load %arg1[%c255] : memref<433xf32, #tpu.memory_space<smem>>
    %1163 = vector.broadcast %1162 : f32 to vector<1x128xf32>
    %1164 = arith.mulf %597, %1163 : vector<1x128xf32>
    %c270 = arith.constant 270 : index
    %1165 = memref.load %arg1[%c270] : memref<433xf32, #tpu.memory_space<smem>>
    %1166 = vector.broadcast %1165 : f32 to vector<1x128xf32>
    %1167 = arith.mulf %645, %1166 : vector<1x128xf32>
    %1168 = arith.addf %1164, %1167 : vector<1x128xf32>
    %c285 = arith.constant 285 : index
    %1169 = memref.load %arg1[%c285] : memref<433xf32, #tpu.memory_space<smem>>
    %1170 = vector.broadcast %1169 : f32 to vector<1x128xf32>
    %1171 = arith.mulf %693, %1170 : vector<1x128xf32>
    %1172 = arith.addf %1168, %1171 : vector<1x128xf32>
    %c300 = arith.constant 300 : index
    %1173 = memref.load %arg1[%c300] : memref<433xf32, #tpu.memory_space<smem>>
    %1174 = vector.broadcast %1173 : f32 to vector<1x128xf32>
    %1175 = arith.mulf %741, %1174 : vector<1x128xf32>
    %1176 = arith.addf %1172, %1175 : vector<1x128xf32>
    %c315 = arith.constant 315 : index
    %1177 = memref.load %arg1[%c315] : memref<433xf32, #tpu.memory_space<smem>>
    %1178 = vector.broadcast %1177 : f32 to vector<1x128xf32>
    %1179 = arith.mulf %789, %1178 : vector<1x128xf32>
    %1180 = arith.addf %1176, %1179 : vector<1x128xf32>
    %c330 = arith.constant 330 : index
    %1181 = memref.load %arg1[%c330] : memref<433xf32, #tpu.memory_space<smem>>
    %1182 = vector.broadcast %1181 : f32 to vector<1x128xf32>
    %1183 = arith.mulf %837, %1182 : vector<1x128xf32>
    %1184 = arith.addf %1180, %1183 : vector<1x128xf32>
    %c345 = arith.constant 345 : index
    %1185 = memref.load %arg1[%c345] : memref<433xf32, #tpu.memory_space<smem>>
    %1186 = vector.broadcast %1185 : f32 to vector<1x128xf32>
    %1187 = arith.mulf %885, %1186 : vector<1x128xf32>
    %1188 = arith.addf %1184, %1187 : vector<1x128xf32>
    %c360 = arith.constant 360 : index
    %1189 = memref.load %arg1[%c360] : memref<433xf32, #tpu.memory_space<smem>>
    %1190 = vector.broadcast %1189 : f32 to vector<1x128xf32>
    %1191 = arith.mulf %933, %1190 : vector<1x128xf32>
    %1192 = arith.addf %1188, %1191 : vector<1x128xf32>
    %c375 = arith.constant 375 : index
    %1193 = memref.load %arg1[%c375] : memref<433xf32, #tpu.memory_space<smem>>
    %1194 = vector.broadcast %1193 : f32 to vector<1x128xf32>
    %1195 = arith.mulf %981, %1194 : vector<1x128xf32>
    %1196 = arith.addf %1192, %1195 : vector<1x128xf32>
    %c390 = arith.constant 390 : index
    %1197 = memref.load %arg1[%c390] : memref<433xf32, #tpu.memory_space<smem>>
    %1198 = vector.broadcast %1197 : f32 to vector<1x128xf32>
    %1199 = arith.mulf %1029, %1198 : vector<1x128xf32>
    %1200 = arith.addf %1196, %1199 : vector<1x128xf32>
    %c405 = arith.constant 405 : index
    %1201 = memref.load %arg1[%c405] : memref<433xf32, #tpu.memory_space<smem>>
    %1202 = vector.broadcast %1201 : f32 to vector<1x128xf32>
    %1203 = arith.addf %1200, %1202 : vector<1x128xf32>
    %cst_56 = arith.constant 0.000000e+00 : f32
    %1204 = vector.broadcast %cst_56 : f32 to vector<1x128xf32>
    %1205 = arith.maximumf %1203, %1204 : vector<1x128xf32>
    %c256 = arith.constant 256 : index
    %1206 = memref.load %arg1[%c256] : memref<433xf32, #tpu.memory_space<smem>>
    %1207 = vector.broadcast %1206 : f32 to vector<1x128xf32>
    %1208 = arith.mulf %597, %1207 : vector<1x128xf32>
    %c271 = arith.constant 271 : index
    %1209 = memref.load %arg1[%c271] : memref<433xf32, #tpu.memory_space<smem>>
    %1210 = vector.broadcast %1209 : f32 to vector<1x128xf32>
    %1211 = arith.mulf %645, %1210 : vector<1x128xf32>
    %1212 = arith.addf %1208, %1211 : vector<1x128xf32>
    %c286 = arith.constant 286 : index
    %1213 = memref.load %arg1[%c286] : memref<433xf32, #tpu.memory_space<smem>>
    %1214 = vector.broadcast %1213 : f32 to vector<1x128xf32>
    %1215 = arith.mulf %693, %1214 : vector<1x128xf32>
    %1216 = arith.addf %1212, %1215 : vector<1x128xf32>
    %c301 = arith.constant 301 : index
    %1217 = memref.load %arg1[%c301] : memref<433xf32, #tpu.memory_space<smem>>
    %1218 = vector.broadcast %1217 : f32 to vector<1x128xf32>
    %1219 = arith.mulf %741, %1218 : vector<1x128xf32>
    %1220 = arith.addf %1216, %1219 : vector<1x128xf32>
    %c316 = arith.constant 316 : index
    %1221 = memref.load %arg1[%c316] : memref<433xf32, #tpu.memory_space<smem>>
    %1222 = vector.broadcast %1221 : f32 to vector<1x128xf32>
    %1223 = arith.mulf %789, %1222 : vector<1x128xf32>
    %1224 = arith.addf %1220, %1223 : vector<1x128xf32>
    %c331 = arith.constant 331 : index
    %1225 = memref.load %arg1[%c331] : memref<433xf32, #tpu.memory_space<smem>>
    %1226 = vector.broadcast %1225 : f32 to vector<1x128xf32>
    %1227 = arith.mulf %837, %1226 : vector<1x128xf32>
    %1228 = arith.addf %1224, %1227 : vector<1x128xf32>
    %c346 = arith.constant 346 : index
    %1229 = memref.load %arg1[%c346] : memref<433xf32, #tpu.memory_space<smem>>
    %1230 = vector.broadcast %1229 : f32 to vector<1x128xf32>
    %1231 = arith.mulf %885, %1230 : vector<1x128xf32>
    %1232 = arith.addf %1228, %1231 : vector<1x128xf32>
    %c361 = arith.constant 361 : index
    %1233 = memref.load %arg1[%c361] : memref<433xf32, #tpu.memory_space<smem>>
    %1234 = vector.broadcast %1233 : f32 to vector<1x128xf32>
    %1235 = arith.mulf %933, %1234 : vector<1x128xf32>
    %1236 = arith.addf %1232, %1235 : vector<1x128xf32>
    %c376 = arith.constant 376 : index
    %1237 = memref.load %arg1[%c376] : memref<433xf32, #tpu.memory_space<smem>>
    %1238 = vector.broadcast %1237 : f32 to vector<1x128xf32>
    %1239 = arith.mulf %981, %1238 : vector<1x128xf32>
    %1240 = arith.addf %1236, %1239 : vector<1x128xf32>
    %c391 = arith.constant 391 : index
    %1241 = memref.load %arg1[%c391] : memref<433xf32, #tpu.memory_space<smem>>
    %1242 = vector.broadcast %1241 : f32 to vector<1x128xf32>
    %1243 = arith.mulf %1029, %1242 : vector<1x128xf32>
    %1244 = arith.addf %1240, %1243 : vector<1x128xf32>
    %c406 = arith.constant 406 : index
    %1245 = memref.load %arg1[%c406] : memref<433xf32, #tpu.memory_space<smem>>
    %1246 = vector.broadcast %1245 : f32 to vector<1x128xf32>
    %1247 = arith.addf %1244, %1246 : vector<1x128xf32>
    %cst_57 = arith.constant 0.000000e+00 : f32
    %1248 = vector.broadcast %cst_57 : f32 to vector<1x128xf32>
    %1249 = arith.maximumf %1247, %1248 : vector<1x128xf32>
    %c257 = arith.constant 257 : index
    %1250 = memref.load %arg1[%c257] : memref<433xf32, #tpu.memory_space<smem>>
    %1251 = vector.broadcast %1250 : f32 to vector<1x128xf32>
    %1252 = arith.mulf %597, %1251 : vector<1x128xf32>
    %c272 = arith.constant 272 : index
    %1253 = memref.load %arg1[%c272] : memref<433xf32, #tpu.memory_space<smem>>
    %1254 = vector.broadcast %1253 : f32 to vector<1x128xf32>
    %1255 = arith.mulf %645, %1254 : vector<1x128xf32>
    %1256 = arith.addf %1252, %1255 : vector<1x128xf32>
    %c287 = arith.constant 287 : index
    %1257 = memref.load %arg1[%c287] : memref<433xf32, #tpu.memory_space<smem>>
    %1258 = vector.broadcast %1257 : f32 to vector<1x128xf32>
    %1259 = arith.mulf %693, %1258 : vector<1x128xf32>
    %1260 = arith.addf %1256, %1259 : vector<1x128xf32>
    %c302 = arith.constant 302 : index
    %1261 = memref.load %arg1[%c302] : memref<433xf32, #tpu.memory_space<smem>>
    %1262 = vector.broadcast %1261 : f32 to vector<1x128xf32>
    %1263 = arith.mulf %741, %1262 : vector<1x128xf32>
    %1264 = arith.addf %1260, %1263 : vector<1x128xf32>
    %c317 = arith.constant 317 : index
    %1265 = memref.load %arg1[%c317] : memref<433xf32, #tpu.memory_space<smem>>
    %1266 = vector.broadcast %1265 : f32 to vector<1x128xf32>
    %1267 = arith.mulf %789, %1266 : vector<1x128xf32>
    %1268 = arith.addf %1264, %1267 : vector<1x128xf32>
    %c332 = arith.constant 332 : index
    %1269 = memref.load %arg1[%c332] : memref<433xf32, #tpu.memory_space<smem>>
    %1270 = vector.broadcast %1269 : f32 to vector<1x128xf32>
    %1271 = arith.mulf %837, %1270 : vector<1x128xf32>
    %1272 = arith.addf %1268, %1271 : vector<1x128xf32>
    %c347 = arith.constant 347 : index
    %1273 = memref.load %arg1[%c347] : memref<433xf32, #tpu.memory_space<smem>>
    %1274 = vector.broadcast %1273 : f32 to vector<1x128xf32>
    %1275 = arith.mulf %885, %1274 : vector<1x128xf32>
    %1276 = arith.addf %1272, %1275 : vector<1x128xf32>
    %c362 = arith.constant 362 : index
    %1277 = memref.load %arg1[%c362] : memref<433xf32, #tpu.memory_space<smem>>
    %1278 = vector.broadcast %1277 : f32 to vector<1x128xf32>
    %1279 = arith.mulf %933, %1278 : vector<1x128xf32>
    %1280 = arith.addf %1276, %1279 : vector<1x128xf32>
    %c377 = arith.constant 377 : index
    %1281 = memref.load %arg1[%c377] : memref<433xf32, #tpu.memory_space<smem>>
    %1282 = vector.broadcast %1281 : f32 to vector<1x128xf32>
    %1283 = arith.mulf %981, %1282 : vector<1x128xf32>
    %1284 = arith.addf %1280, %1283 : vector<1x128xf32>
    %c392 = arith.constant 392 : index
    %1285 = memref.load %arg1[%c392] : memref<433xf32, #tpu.memory_space<smem>>
    %1286 = vector.broadcast %1285 : f32 to vector<1x128xf32>
    %1287 = arith.mulf %1029, %1286 : vector<1x128xf32>
    %1288 = arith.addf %1284, %1287 : vector<1x128xf32>
    %c407 = arith.constant 407 : index
    %1289 = memref.load %arg1[%c407] : memref<433xf32, #tpu.memory_space<smem>>
    %1290 = vector.broadcast %1289 : f32 to vector<1x128xf32>
    %1291 = arith.addf %1288, %1290 : vector<1x128xf32>
    %cst_58 = arith.constant 0.000000e+00 : f32
    %1292 = vector.broadcast %cst_58 : f32 to vector<1x128xf32>
    %1293 = arith.maximumf %1291, %1292 : vector<1x128xf32>
    %c258 = arith.constant 258 : index
    %1294 = memref.load %arg1[%c258] : memref<433xf32, #tpu.memory_space<smem>>
    %1295 = vector.broadcast %1294 : f32 to vector<1x128xf32>
    %1296 = arith.mulf %597, %1295 : vector<1x128xf32>
    %c273 = arith.constant 273 : index
    %1297 = memref.load %arg1[%c273] : memref<433xf32, #tpu.memory_space<smem>>
    %1298 = vector.broadcast %1297 : f32 to vector<1x128xf32>
    %1299 = arith.mulf %645, %1298 : vector<1x128xf32>
    %1300 = arith.addf %1296, %1299 : vector<1x128xf32>
    %c288 = arith.constant 288 : index
    %1301 = memref.load %arg1[%c288] : memref<433xf32, #tpu.memory_space<smem>>
    %1302 = vector.broadcast %1301 : f32 to vector<1x128xf32>
    %1303 = arith.mulf %693, %1302 : vector<1x128xf32>
    %1304 = arith.addf %1300, %1303 : vector<1x128xf32>
    %c303 = arith.constant 303 : index
    %1305 = memref.load %arg1[%c303] : memref<433xf32, #tpu.memory_space<smem>>
    %1306 = vector.broadcast %1305 : f32 to vector<1x128xf32>
    %1307 = arith.mulf %741, %1306 : vector<1x128xf32>
    %1308 = arith.addf %1304, %1307 : vector<1x128xf32>
    %c318 = arith.constant 318 : index
    %1309 = memref.load %arg1[%c318] : memref<433xf32, #tpu.memory_space<smem>>
    %1310 = vector.broadcast %1309 : f32 to vector<1x128xf32>
    %1311 = arith.mulf %789, %1310 : vector<1x128xf32>
    %1312 = arith.addf %1308, %1311 : vector<1x128xf32>
    %c333 = arith.constant 333 : index
    %1313 = memref.load %arg1[%c333] : memref<433xf32, #tpu.memory_space<smem>>
    %1314 = vector.broadcast %1313 : f32 to vector<1x128xf32>
    %1315 = arith.mulf %837, %1314 : vector<1x128xf32>
    %1316 = arith.addf %1312, %1315 : vector<1x128xf32>
    %c348 = arith.constant 348 : index
    %1317 = memref.load %arg1[%c348] : memref<433xf32, #tpu.memory_space<smem>>
    %1318 = vector.broadcast %1317 : f32 to vector<1x128xf32>
    %1319 = arith.mulf %885, %1318 : vector<1x128xf32>
    %1320 = arith.addf %1316, %1319 : vector<1x128xf32>
    %c363 = arith.constant 363 : index
    %1321 = memref.load %arg1[%c363] : memref<433xf32, #tpu.memory_space<smem>>
    %1322 = vector.broadcast %1321 : f32 to vector<1x128xf32>
    %1323 = arith.mulf %933, %1322 : vector<1x128xf32>
    %1324 = arith.addf %1320, %1323 : vector<1x128xf32>
    %c378 = arith.constant 378 : index
    %1325 = memref.load %arg1[%c378] : memref<433xf32, #tpu.memory_space<smem>>
    %1326 = vector.broadcast %1325 : f32 to vector<1x128xf32>
    %1327 = arith.mulf %981, %1326 : vector<1x128xf32>
    %1328 = arith.addf %1324, %1327 : vector<1x128xf32>
    %c393 = arith.constant 393 : index
    %1329 = memref.load %arg1[%c393] : memref<433xf32, #tpu.memory_space<smem>>
    %1330 = vector.broadcast %1329 : f32 to vector<1x128xf32>
    %1331 = arith.mulf %1029, %1330 : vector<1x128xf32>
    %1332 = arith.addf %1328, %1331 : vector<1x128xf32>
    %c408 = arith.constant 408 : index
    %1333 = memref.load %arg1[%c408] : memref<433xf32, #tpu.memory_space<smem>>
    %1334 = vector.broadcast %1333 : f32 to vector<1x128xf32>
    %1335 = arith.addf %1332, %1334 : vector<1x128xf32>
    %cst_59 = arith.constant 0.000000e+00 : f32
    %1336 = vector.broadcast %cst_59 : f32 to vector<1x128xf32>
    %1337 = arith.maximumf %1335, %1336 : vector<1x128xf32>
    %c259 = arith.constant 259 : index
    %1338 = memref.load %arg1[%c259] : memref<433xf32, #tpu.memory_space<smem>>
    %1339 = vector.broadcast %1338 : f32 to vector<1x128xf32>
    %1340 = arith.mulf %597, %1339 : vector<1x128xf32>
    %c274 = arith.constant 274 : index
    %1341 = memref.load %arg1[%c274] : memref<433xf32, #tpu.memory_space<smem>>
    %1342 = vector.broadcast %1341 : f32 to vector<1x128xf32>
    %1343 = arith.mulf %645, %1342 : vector<1x128xf32>
    %1344 = arith.addf %1340, %1343 : vector<1x128xf32>
    %c289 = arith.constant 289 : index
    %1345 = memref.load %arg1[%c289] : memref<433xf32, #tpu.memory_space<smem>>
    %1346 = vector.broadcast %1345 : f32 to vector<1x128xf32>
    %1347 = arith.mulf %693, %1346 : vector<1x128xf32>
    %1348 = arith.addf %1344, %1347 : vector<1x128xf32>
    %c304 = arith.constant 304 : index
    %1349 = memref.load %arg1[%c304] : memref<433xf32, #tpu.memory_space<smem>>
    %1350 = vector.broadcast %1349 : f32 to vector<1x128xf32>
    %1351 = arith.mulf %741, %1350 : vector<1x128xf32>
    %1352 = arith.addf %1348, %1351 : vector<1x128xf32>
    %c319 = arith.constant 319 : index
    %1353 = memref.load %arg1[%c319] : memref<433xf32, #tpu.memory_space<smem>>
    %1354 = vector.broadcast %1353 : f32 to vector<1x128xf32>
    %1355 = arith.mulf %789, %1354 : vector<1x128xf32>
    %1356 = arith.addf %1352, %1355 : vector<1x128xf32>
    %c334 = arith.constant 334 : index
    %1357 = memref.load %arg1[%c334] : memref<433xf32, #tpu.memory_space<smem>>
    %1358 = vector.broadcast %1357 : f32 to vector<1x128xf32>
    %1359 = arith.mulf %837, %1358 : vector<1x128xf32>
    %1360 = arith.addf %1356, %1359 : vector<1x128xf32>
    %c349 = arith.constant 349 : index
    %1361 = memref.load %arg1[%c349] : memref<433xf32, #tpu.memory_space<smem>>
    %1362 = vector.broadcast %1361 : f32 to vector<1x128xf32>
    %1363 = arith.mulf %885, %1362 : vector<1x128xf32>
    %1364 = arith.addf %1360, %1363 : vector<1x128xf32>
    %c364 = arith.constant 364 : index
    %1365 = memref.load %arg1[%c364] : memref<433xf32, #tpu.memory_space<smem>>
    %1366 = vector.broadcast %1365 : f32 to vector<1x128xf32>
    %1367 = arith.mulf %933, %1366 : vector<1x128xf32>
    %1368 = arith.addf %1364, %1367 : vector<1x128xf32>
    %c379 = arith.constant 379 : index
    %1369 = memref.load %arg1[%c379] : memref<433xf32, #tpu.memory_space<smem>>
    %1370 = vector.broadcast %1369 : f32 to vector<1x128xf32>
    %1371 = arith.mulf %981, %1370 : vector<1x128xf32>
    %1372 = arith.addf %1368, %1371 : vector<1x128xf32>
    %c394 = arith.constant 394 : index
    %1373 = memref.load %arg1[%c394] : memref<433xf32, #tpu.memory_space<smem>>
    %1374 = vector.broadcast %1373 : f32 to vector<1x128xf32>
    %1375 = arith.mulf %1029, %1374 : vector<1x128xf32>
    %1376 = arith.addf %1372, %1375 : vector<1x128xf32>
    %c409 = arith.constant 409 : index
    %1377 = memref.load %arg1[%c409] : memref<433xf32, #tpu.memory_space<smem>>
    %1378 = vector.broadcast %1377 : f32 to vector<1x128xf32>
    %1379 = arith.addf %1376, %1378 : vector<1x128xf32>
    %cst_60 = arith.constant 0.000000e+00 : f32
    %1380 = vector.broadcast %cst_60 : f32 to vector<1x128xf32>
    %1381 = arith.maximumf %1379, %1380 : vector<1x128xf32>
    %c260 = arith.constant 260 : index
    %1382 = memref.load %arg1[%c260] : memref<433xf32, #tpu.memory_space<smem>>
    %1383 = vector.broadcast %1382 : f32 to vector<1x128xf32>
    %1384 = arith.mulf %597, %1383 : vector<1x128xf32>
    %c275 = arith.constant 275 : index
    %1385 = memref.load %arg1[%c275] : memref<433xf32, #tpu.memory_space<smem>>
    %1386 = vector.broadcast %1385 : f32 to vector<1x128xf32>
    %1387 = arith.mulf %645, %1386 : vector<1x128xf32>
    %1388 = arith.addf %1384, %1387 : vector<1x128xf32>
    %c290 = arith.constant 290 : index
    %1389 = memref.load %arg1[%c290] : memref<433xf32, #tpu.memory_space<smem>>
    %1390 = vector.broadcast %1389 : f32 to vector<1x128xf32>
    %1391 = arith.mulf %693, %1390 : vector<1x128xf32>
    %1392 = arith.addf %1388, %1391 : vector<1x128xf32>
    %c305 = arith.constant 305 : index
    %1393 = memref.load %arg1[%c305] : memref<433xf32, #tpu.memory_space<smem>>
    %1394 = vector.broadcast %1393 : f32 to vector<1x128xf32>
    %1395 = arith.mulf %741, %1394 : vector<1x128xf32>
    %1396 = arith.addf %1392, %1395 : vector<1x128xf32>
    %c320 = arith.constant 320 : index
    %1397 = memref.load %arg1[%c320] : memref<433xf32, #tpu.memory_space<smem>>
    %1398 = vector.broadcast %1397 : f32 to vector<1x128xf32>
    %1399 = arith.mulf %789, %1398 : vector<1x128xf32>
    %1400 = arith.addf %1396, %1399 : vector<1x128xf32>
    %c335 = arith.constant 335 : index
    %1401 = memref.load %arg1[%c335] : memref<433xf32, #tpu.memory_space<smem>>
    %1402 = vector.broadcast %1401 : f32 to vector<1x128xf32>
    %1403 = arith.mulf %837, %1402 : vector<1x128xf32>
    %1404 = arith.addf %1400, %1403 : vector<1x128xf32>
    %c350 = arith.constant 350 : index
    %1405 = memref.load %arg1[%c350] : memref<433xf32, #tpu.memory_space<smem>>
    %1406 = vector.broadcast %1405 : f32 to vector<1x128xf32>
    %1407 = arith.mulf %885, %1406 : vector<1x128xf32>
    %1408 = arith.addf %1404, %1407 : vector<1x128xf32>
    %c365 = arith.constant 365 : index
    %1409 = memref.load %arg1[%c365] : memref<433xf32, #tpu.memory_space<smem>>
    %1410 = vector.broadcast %1409 : f32 to vector<1x128xf32>
    %1411 = arith.mulf %933, %1410 : vector<1x128xf32>
    %1412 = arith.addf %1408, %1411 : vector<1x128xf32>
    %c380 = arith.constant 380 : index
    %1413 = memref.load %arg1[%c380] : memref<433xf32, #tpu.memory_space<smem>>
    %1414 = vector.broadcast %1413 : f32 to vector<1x128xf32>
    %1415 = arith.mulf %981, %1414 : vector<1x128xf32>
    %1416 = arith.addf %1412, %1415 : vector<1x128xf32>
    %c395 = arith.constant 395 : index
    %1417 = memref.load %arg1[%c395] : memref<433xf32, #tpu.memory_space<smem>>
    %1418 = vector.broadcast %1417 : f32 to vector<1x128xf32>
    %1419 = arith.mulf %1029, %1418 : vector<1x128xf32>
    %1420 = arith.addf %1416, %1419 : vector<1x128xf32>
    %c410 = arith.constant 410 : index
    %1421 = memref.load %arg1[%c410] : memref<433xf32, #tpu.memory_space<smem>>
    %1422 = vector.broadcast %1421 : f32 to vector<1x128xf32>
    %1423 = arith.addf %1420, %1422 : vector<1x128xf32>
    %cst_61 = arith.constant 0.000000e+00 : f32
    %1424 = vector.broadcast %cst_61 : f32 to vector<1x128xf32>
    %1425 = arith.maximumf %1423, %1424 : vector<1x128xf32>
    %c261 = arith.constant 261 : index
    %1426 = memref.load %arg1[%c261] : memref<433xf32, #tpu.memory_space<smem>>
    %1427 = vector.broadcast %1426 : f32 to vector<1x128xf32>
    %1428 = arith.mulf %597, %1427 : vector<1x128xf32>
    %c276 = arith.constant 276 : index
    %1429 = memref.load %arg1[%c276] : memref<433xf32, #tpu.memory_space<smem>>
    %1430 = vector.broadcast %1429 : f32 to vector<1x128xf32>
    %1431 = arith.mulf %645, %1430 : vector<1x128xf32>
    %1432 = arith.addf %1428, %1431 : vector<1x128xf32>
    %c291 = arith.constant 291 : index
    %1433 = memref.load %arg1[%c291] : memref<433xf32, #tpu.memory_space<smem>>
    %1434 = vector.broadcast %1433 : f32 to vector<1x128xf32>
    %1435 = arith.mulf %693, %1434 : vector<1x128xf32>
    %1436 = arith.addf %1432, %1435 : vector<1x128xf32>
    %c306 = arith.constant 306 : index
    %1437 = memref.load %arg1[%c306] : memref<433xf32, #tpu.memory_space<smem>>
    %1438 = vector.broadcast %1437 : f32 to vector<1x128xf32>
    %1439 = arith.mulf %741, %1438 : vector<1x128xf32>
    %1440 = arith.addf %1436, %1439 : vector<1x128xf32>
    %c321 = arith.constant 321 : index
    %1441 = memref.load %arg1[%c321] : memref<433xf32, #tpu.memory_space<smem>>
    %1442 = vector.broadcast %1441 : f32 to vector<1x128xf32>
    %1443 = arith.mulf %789, %1442 : vector<1x128xf32>
    %1444 = arith.addf %1440, %1443 : vector<1x128xf32>
    %c336 = arith.constant 336 : index
    %1445 = memref.load %arg1[%c336] : memref<433xf32, #tpu.memory_space<smem>>
    %1446 = vector.broadcast %1445 : f32 to vector<1x128xf32>
    %1447 = arith.mulf %837, %1446 : vector<1x128xf32>
    %1448 = arith.addf %1444, %1447 : vector<1x128xf32>
    %c351 = arith.constant 351 : index
    %1449 = memref.load %arg1[%c351] : memref<433xf32, #tpu.memory_space<smem>>
    %1450 = vector.broadcast %1449 : f32 to vector<1x128xf32>
    %1451 = arith.mulf %885, %1450 : vector<1x128xf32>
    %1452 = arith.addf %1448, %1451 : vector<1x128xf32>
    %c366 = arith.constant 366 : index
    %1453 = memref.load %arg1[%c366] : memref<433xf32, #tpu.memory_space<smem>>
    %1454 = vector.broadcast %1453 : f32 to vector<1x128xf32>
    %1455 = arith.mulf %933, %1454 : vector<1x128xf32>
    %1456 = arith.addf %1452, %1455 : vector<1x128xf32>
    %c381 = arith.constant 381 : index
    %1457 = memref.load %arg1[%c381] : memref<433xf32, #tpu.memory_space<smem>>
    %1458 = vector.broadcast %1457 : f32 to vector<1x128xf32>
    %1459 = arith.mulf %981, %1458 : vector<1x128xf32>
    %1460 = arith.addf %1456, %1459 : vector<1x128xf32>
    %c396 = arith.constant 396 : index
    %1461 = memref.load %arg1[%c396] : memref<433xf32, #tpu.memory_space<smem>>
    %1462 = vector.broadcast %1461 : f32 to vector<1x128xf32>
    %1463 = arith.mulf %1029, %1462 : vector<1x128xf32>
    %1464 = arith.addf %1460, %1463 : vector<1x128xf32>
    %c411 = arith.constant 411 : index
    %1465 = memref.load %arg1[%c411] : memref<433xf32, #tpu.memory_space<smem>>
    %1466 = vector.broadcast %1465 : f32 to vector<1x128xf32>
    %1467 = arith.addf %1464, %1466 : vector<1x128xf32>
    %cst_62 = arith.constant 0.000000e+00 : f32
    %1468 = vector.broadcast %cst_62 : f32 to vector<1x128xf32>
    %1469 = arith.maximumf %1467, %1468 : vector<1x128xf32>
    %c262 = arith.constant 262 : index
    %1470 = memref.load %arg1[%c262] : memref<433xf32, #tpu.memory_space<smem>>
    %1471 = vector.broadcast %1470 : f32 to vector<1x128xf32>
    %1472 = arith.mulf %597, %1471 : vector<1x128xf32>
    %c277 = arith.constant 277 : index
    %1473 = memref.load %arg1[%c277] : memref<433xf32, #tpu.memory_space<smem>>
    %1474 = vector.broadcast %1473 : f32 to vector<1x128xf32>
    %1475 = arith.mulf %645, %1474 : vector<1x128xf32>
    %1476 = arith.addf %1472, %1475 : vector<1x128xf32>
    %c292 = arith.constant 292 : index
    %1477 = memref.load %arg1[%c292] : memref<433xf32, #tpu.memory_space<smem>>
    %1478 = vector.broadcast %1477 : f32 to vector<1x128xf32>
    %1479 = arith.mulf %693, %1478 : vector<1x128xf32>
    %1480 = arith.addf %1476, %1479 : vector<1x128xf32>
    %c307 = arith.constant 307 : index
    %1481 = memref.load %arg1[%c307] : memref<433xf32, #tpu.memory_space<smem>>
    %1482 = vector.broadcast %1481 : f32 to vector<1x128xf32>
    %1483 = arith.mulf %741, %1482 : vector<1x128xf32>
    %1484 = arith.addf %1480, %1483 : vector<1x128xf32>
    %c322 = arith.constant 322 : index
    %1485 = memref.load %arg1[%c322] : memref<433xf32, #tpu.memory_space<smem>>
    %1486 = vector.broadcast %1485 : f32 to vector<1x128xf32>
    %1487 = arith.mulf %789, %1486 : vector<1x128xf32>
    %1488 = arith.addf %1484, %1487 : vector<1x128xf32>
    %c337 = arith.constant 337 : index
    %1489 = memref.load %arg1[%c337] : memref<433xf32, #tpu.memory_space<smem>>
    %1490 = vector.broadcast %1489 : f32 to vector<1x128xf32>
    %1491 = arith.mulf %837, %1490 : vector<1x128xf32>
    %1492 = arith.addf %1488, %1491 : vector<1x128xf32>
    %c352 = arith.constant 352 : index
    %1493 = memref.load %arg1[%c352] : memref<433xf32, #tpu.memory_space<smem>>
    %1494 = vector.broadcast %1493 : f32 to vector<1x128xf32>
    %1495 = arith.mulf %885, %1494 : vector<1x128xf32>
    %1496 = arith.addf %1492, %1495 : vector<1x128xf32>
    %c367 = arith.constant 367 : index
    %1497 = memref.load %arg1[%c367] : memref<433xf32, #tpu.memory_space<smem>>
    %1498 = vector.broadcast %1497 : f32 to vector<1x128xf32>
    %1499 = arith.mulf %933, %1498 : vector<1x128xf32>
    %1500 = arith.addf %1496, %1499 : vector<1x128xf32>
    %c382 = arith.constant 382 : index
    %1501 = memref.load %arg1[%c382] : memref<433xf32, #tpu.memory_space<smem>>
    %1502 = vector.broadcast %1501 : f32 to vector<1x128xf32>
    %1503 = arith.mulf %981, %1502 : vector<1x128xf32>
    %1504 = arith.addf %1500, %1503 : vector<1x128xf32>
    %c397 = arith.constant 397 : index
    %1505 = memref.load %arg1[%c397] : memref<433xf32, #tpu.memory_space<smem>>
    %1506 = vector.broadcast %1505 : f32 to vector<1x128xf32>
    %1507 = arith.mulf %1029, %1506 : vector<1x128xf32>
    %1508 = arith.addf %1504, %1507 : vector<1x128xf32>
    %c412 = arith.constant 412 : index
    %1509 = memref.load %arg1[%c412] : memref<433xf32, #tpu.memory_space<smem>>
    %1510 = vector.broadcast %1509 : f32 to vector<1x128xf32>
    %1511 = arith.addf %1508, %1510 : vector<1x128xf32>
    %cst_63 = arith.constant 0.000000e+00 : f32
    %1512 = vector.broadcast %cst_63 : f32 to vector<1x128xf32>
    %1513 = arith.maximumf %1511, %1512 : vector<1x128xf32>
    %c263 = arith.constant 263 : index
    %1514 = memref.load %arg1[%c263] : memref<433xf32, #tpu.memory_space<smem>>
    %1515 = vector.broadcast %1514 : f32 to vector<1x128xf32>
    %1516 = arith.mulf %597, %1515 : vector<1x128xf32>
    %c278 = arith.constant 278 : index
    %1517 = memref.load %arg1[%c278] : memref<433xf32, #tpu.memory_space<smem>>
    %1518 = vector.broadcast %1517 : f32 to vector<1x128xf32>
    %1519 = arith.mulf %645, %1518 : vector<1x128xf32>
    %1520 = arith.addf %1516, %1519 : vector<1x128xf32>
    %c293 = arith.constant 293 : index
    %1521 = memref.load %arg1[%c293] : memref<433xf32, #tpu.memory_space<smem>>
    %1522 = vector.broadcast %1521 : f32 to vector<1x128xf32>
    %1523 = arith.mulf %693, %1522 : vector<1x128xf32>
    %1524 = arith.addf %1520, %1523 : vector<1x128xf32>
    %c308 = arith.constant 308 : index
    %1525 = memref.load %arg1[%c308] : memref<433xf32, #tpu.memory_space<smem>>
    %1526 = vector.broadcast %1525 : f32 to vector<1x128xf32>
    %1527 = arith.mulf %741, %1526 : vector<1x128xf32>
    %1528 = arith.addf %1524, %1527 : vector<1x128xf32>
    %c323 = arith.constant 323 : index
    %1529 = memref.load %arg1[%c323] : memref<433xf32, #tpu.memory_space<smem>>
    %1530 = vector.broadcast %1529 : f32 to vector<1x128xf32>
    %1531 = arith.mulf %789, %1530 : vector<1x128xf32>
    %1532 = arith.addf %1528, %1531 : vector<1x128xf32>
    %c338 = arith.constant 338 : index
    %1533 = memref.load %arg1[%c338] : memref<433xf32, #tpu.memory_space<smem>>
    %1534 = vector.broadcast %1533 : f32 to vector<1x128xf32>
    %1535 = arith.mulf %837, %1534 : vector<1x128xf32>
    %1536 = arith.addf %1532, %1535 : vector<1x128xf32>
    %c353 = arith.constant 353 : index
    %1537 = memref.load %arg1[%c353] : memref<433xf32, #tpu.memory_space<smem>>
    %1538 = vector.broadcast %1537 : f32 to vector<1x128xf32>
    %1539 = arith.mulf %885, %1538 : vector<1x128xf32>
    %1540 = arith.addf %1536, %1539 : vector<1x128xf32>
    %c368 = arith.constant 368 : index
    %1541 = memref.load %arg1[%c368] : memref<433xf32, #tpu.memory_space<smem>>
    %1542 = vector.broadcast %1541 : f32 to vector<1x128xf32>
    %1543 = arith.mulf %933, %1542 : vector<1x128xf32>
    %1544 = arith.addf %1540, %1543 : vector<1x128xf32>
    %c383 = arith.constant 383 : index
    %1545 = memref.load %arg1[%c383] : memref<433xf32, #tpu.memory_space<smem>>
    %1546 = vector.broadcast %1545 : f32 to vector<1x128xf32>
    %1547 = arith.mulf %981, %1546 : vector<1x128xf32>
    %1548 = arith.addf %1544, %1547 : vector<1x128xf32>
    %c398 = arith.constant 398 : index
    %1549 = memref.load %arg1[%c398] : memref<433xf32, #tpu.memory_space<smem>>
    %1550 = vector.broadcast %1549 : f32 to vector<1x128xf32>
    %1551 = arith.mulf %1029, %1550 : vector<1x128xf32>
    %1552 = arith.addf %1548, %1551 : vector<1x128xf32>
    %c413 = arith.constant 413 : index
    %1553 = memref.load %arg1[%c413] : memref<433xf32, #tpu.memory_space<smem>>
    %1554 = vector.broadcast %1553 : f32 to vector<1x128xf32>
    %1555 = arith.addf %1552, %1554 : vector<1x128xf32>
    %cst_64 = arith.constant 0.000000e+00 : f32
    %1556 = vector.broadcast %cst_64 : f32 to vector<1x128xf32>
    %1557 = arith.maximumf %1555, %1556 : vector<1x128xf32>
    %c264 = arith.constant 264 : index
    %1558 = memref.load %arg1[%c264] : memref<433xf32, #tpu.memory_space<smem>>
    %1559 = vector.broadcast %1558 : f32 to vector<1x128xf32>
    %1560 = arith.mulf %597, %1559 : vector<1x128xf32>
    %c279 = arith.constant 279 : index
    %1561 = memref.load %arg1[%c279] : memref<433xf32, #tpu.memory_space<smem>>
    %1562 = vector.broadcast %1561 : f32 to vector<1x128xf32>
    %1563 = arith.mulf %645, %1562 : vector<1x128xf32>
    %1564 = arith.addf %1560, %1563 : vector<1x128xf32>
    %c294 = arith.constant 294 : index
    %1565 = memref.load %arg1[%c294] : memref<433xf32, #tpu.memory_space<smem>>
    %1566 = vector.broadcast %1565 : f32 to vector<1x128xf32>
    %1567 = arith.mulf %693, %1566 : vector<1x128xf32>
    %1568 = arith.addf %1564, %1567 : vector<1x128xf32>
    %c309 = arith.constant 309 : index
    %1569 = memref.load %arg1[%c309] : memref<433xf32, #tpu.memory_space<smem>>
    %1570 = vector.broadcast %1569 : f32 to vector<1x128xf32>
    %1571 = arith.mulf %741, %1570 : vector<1x128xf32>
    %1572 = arith.addf %1568, %1571 : vector<1x128xf32>
    %c324 = arith.constant 324 : index
    %1573 = memref.load %arg1[%c324] : memref<433xf32, #tpu.memory_space<smem>>
    %1574 = vector.broadcast %1573 : f32 to vector<1x128xf32>
    %1575 = arith.mulf %789, %1574 : vector<1x128xf32>
    %1576 = arith.addf %1572, %1575 : vector<1x128xf32>
    %c339 = arith.constant 339 : index
    %1577 = memref.load %arg1[%c339] : memref<433xf32, #tpu.memory_space<smem>>
    %1578 = vector.broadcast %1577 : f32 to vector<1x128xf32>
    %1579 = arith.mulf %837, %1578 : vector<1x128xf32>
    %1580 = arith.addf %1576, %1579 : vector<1x128xf32>
    %c354 = arith.constant 354 : index
    %1581 = memref.load %arg1[%c354] : memref<433xf32, #tpu.memory_space<smem>>
    %1582 = vector.broadcast %1581 : f32 to vector<1x128xf32>
    %1583 = arith.mulf %885, %1582 : vector<1x128xf32>
    %1584 = arith.addf %1580, %1583 : vector<1x128xf32>
    %c369 = arith.constant 369 : index
    %1585 = memref.load %arg1[%c369] : memref<433xf32, #tpu.memory_space<smem>>
    %1586 = vector.broadcast %1585 : f32 to vector<1x128xf32>
    %1587 = arith.mulf %933, %1586 : vector<1x128xf32>
    %1588 = arith.addf %1584, %1587 : vector<1x128xf32>
    %c384 = arith.constant 384 : index
    %1589 = memref.load %arg1[%c384] : memref<433xf32, #tpu.memory_space<smem>>
    %1590 = vector.broadcast %1589 : f32 to vector<1x128xf32>
    %1591 = arith.mulf %981, %1590 : vector<1x128xf32>
    %1592 = arith.addf %1588, %1591 : vector<1x128xf32>
    %c399 = arith.constant 399 : index
    %1593 = memref.load %arg1[%c399] : memref<433xf32, #tpu.memory_space<smem>>
    %1594 = vector.broadcast %1593 : f32 to vector<1x128xf32>
    %1595 = arith.mulf %1029, %1594 : vector<1x128xf32>
    %1596 = arith.addf %1592, %1595 : vector<1x128xf32>
    %c414 = arith.constant 414 : index
    %1597 = memref.load %arg1[%c414] : memref<433xf32, #tpu.memory_space<smem>>
    %1598 = vector.broadcast %1597 : f32 to vector<1x128xf32>
    %1599 = arith.addf %1596, %1598 : vector<1x128xf32>
    %cst_65 = arith.constant 0.000000e+00 : f32
    %1600 = vector.broadcast %cst_65 : f32 to vector<1x128xf32>
    %1601 = arith.maximumf %1599, %1600 : vector<1x128xf32>
    %c265 = arith.constant 265 : index
    %1602 = memref.load %arg1[%c265] : memref<433xf32, #tpu.memory_space<smem>>
    %1603 = vector.broadcast %1602 : f32 to vector<1x128xf32>
    %1604 = arith.mulf %597, %1603 : vector<1x128xf32>
    %c280 = arith.constant 280 : index
    %1605 = memref.load %arg1[%c280] : memref<433xf32, #tpu.memory_space<smem>>
    %1606 = vector.broadcast %1605 : f32 to vector<1x128xf32>
    %1607 = arith.mulf %645, %1606 : vector<1x128xf32>
    %1608 = arith.addf %1604, %1607 : vector<1x128xf32>
    %c295 = arith.constant 295 : index
    %1609 = memref.load %arg1[%c295] : memref<433xf32, #tpu.memory_space<smem>>
    %1610 = vector.broadcast %1609 : f32 to vector<1x128xf32>
    %1611 = arith.mulf %693, %1610 : vector<1x128xf32>
    %1612 = arith.addf %1608, %1611 : vector<1x128xf32>
    %c310 = arith.constant 310 : index
    %1613 = memref.load %arg1[%c310] : memref<433xf32, #tpu.memory_space<smem>>
    %1614 = vector.broadcast %1613 : f32 to vector<1x128xf32>
    %1615 = arith.mulf %741, %1614 : vector<1x128xf32>
    %1616 = arith.addf %1612, %1615 : vector<1x128xf32>
    %c325 = arith.constant 325 : index
    %1617 = memref.load %arg1[%c325] : memref<433xf32, #tpu.memory_space<smem>>
    %1618 = vector.broadcast %1617 : f32 to vector<1x128xf32>
    %1619 = arith.mulf %789, %1618 : vector<1x128xf32>
    %1620 = arith.addf %1616, %1619 : vector<1x128xf32>
    %c340 = arith.constant 340 : index
    %1621 = memref.load %arg1[%c340] : memref<433xf32, #tpu.memory_space<smem>>
    %1622 = vector.broadcast %1621 : f32 to vector<1x128xf32>
    %1623 = arith.mulf %837, %1622 : vector<1x128xf32>
    %1624 = arith.addf %1620, %1623 : vector<1x128xf32>
    %c355 = arith.constant 355 : index
    %1625 = memref.load %arg1[%c355] : memref<433xf32, #tpu.memory_space<smem>>
    %1626 = vector.broadcast %1625 : f32 to vector<1x128xf32>
    %1627 = arith.mulf %885, %1626 : vector<1x128xf32>
    %1628 = arith.addf %1624, %1627 : vector<1x128xf32>
    %c370 = arith.constant 370 : index
    %1629 = memref.load %arg1[%c370] : memref<433xf32, #tpu.memory_space<smem>>
    %1630 = vector.broadcast %1629 : f32 to vector<1x128xf32>
    %1631 = arith.mulf %933, %1630 : vector<1x128xf32>
    %1632 = arith.addf %1628, %1631 : vector<1x128xf32>
    %c385 = arith.constant 385 : index
    %1633 = memref.load %arg1[%c385] : memref<433xf32, #tpu.memory_space<smem>>
    %1634 = vector.broadcast %1633 : f32 to vector<1x128xf32>
    %1635 = arith.mulf %981, %1634 : vector<1x128xf32>
    %1636 = arith.addf %1632, %1635 : vector<1x128xf32>
    %c400 = arith.constant 400 : index
    %1637 = memref.load %arg1[%c400] : memref<433xf32, #tpu.memory_space<smem>>
    %1638 = vector.broadcast %1637 : f32 to vector<1x128xf32>
    %1639 = arith.mulf %1029, %1638 : vector<1x128xf32>
    %1640 = arith.addf %1636, %1639 : vector<1x128xf32>
    %c415 = arith.constant 415 : index
    %1641 = memref.load %arg1[%c415] : memref<433xf32, #tpu.memory_space<smem>>
    %1642 = vector.broadcast %1641 : f32 to vector<1x128xf32>
    %1643 = arith.addf %1640, %1642 : vector<1x128xf32>
    %cst_66 = arith.constant 0.000000e+00 : f32
    %1644 = vector.broadcast %cst_66 : f32 to vector<1x128xf32>
    %1645 = arith.maximumf %1643, %1644 : vector<1x128xf32>
    %c266 = arith.constant 266 : index
    %1646 = memref.load %arg1[%c266] : memref<433xf32, #tpu.memory_space<smem>>
    %1647 = vector.broadcast %1646 : f32 to vector<1x128xf32>
    %1648 = arith.mulf %597, %1647 : vector<1x128xf32>
    %c281 = arith.constant 281 : index
    %1649 = memref.load %arg1[%c281] : memref<433xf32, #tpu.memory_space<smem>>
    %1650 = vector.broadcast %1649 : f32 to vector<1x128xf32>
    %1651 = arith.mulf %645, %1650 : vector<1x128xf32>
    %1652 = arith.addf %1648, %1651 : vector<1x128xf32>
    %c296 = arith.constant 296 : index
    %1653 = memref.load %arg1[%c296] : memref<433xf32, #tpu.memory_space<smem>>
    %1654 = vector.broadcast %1653 : f32 to vector<1x128xf32>
    %1655 = arith.mulf %693, %1654 : vector<1x128xf32>
    %1656 = arith.addf %1652, %1655 : vector<1x128xf32>
    %c311 = arith.constant 311 : index
    %1657 = memref.load %arg1[%c311] : memref<433xf32, #tpu.memory_space<smem>>
    %1658 = vector.broadcast %1657 : f32 to vector<1x128xf32>
    %1659 = arith.mulf %741, %1658 : vector<1x128xf32>
    %1660 = arith.addf %1656, %1659 : vector<1x128xf32>
    %c326 = arith.constant 326 : index
    %1661 = memref.load %arg1[%c326] : memref<433xf32, #tpu.memory_space<smem>>
    %1662 = vector.broadcast %1661 : f32 to vector<1x128xf32>
    %1663 = arith.mulf %789, %1662 : vector<1x128xf32>
    %1664 = arith.addf %1660, %1663 : vector<1x128xf32>
    %c341 = arith.constant 341 : index
    %1665 = memref.load %arg1[%c341] : memref<433xf32, #tpu.memory_space<smem>>
    %1666 = vector.broadcast %1665 : f32 to vector<1x128xf32>
    %1667 = arith.mulf %837, %1666 : vector<1x128xf32>
    %1668 = arith.addf %1664, %1667 : vector<1x128xf32>
    %c356 = arith.constant 356 : index
    %1669 = memref.load %arg1[%c356] : memref<433xf32, #tpu.memory_space<smem>>
    %1670 = vector.broadcast %1669 : f32 to vector<1x128xf32>
    %1671 = arith.mulf %885, %1670 : vector<1x128xf32>
    %1672 = arith.addf %1668, %1671 : vector<1x128xf32>
    %c371 = arith.constant 371 : index
    %1673 = memref.load %arg1[%c371] : memref<433xf32, #tpu.memory_space<smem>>
    %1674 = vector.broadcast %1673 : f32 to vector<1x128xf32>
    %1675 = arith.mulf %933, %1674 : vector<1x128xf32>
    %1676 = arith.addf %1672, %1675 : vector<1x128xf32>
    %c386 = arith.constant 386 : index
    %1677 = memref.load %arg1[%c386] : memref<433xf32, #tpu.memory_space<smem>>
    %1678 = vector.broadcast %1677 : f32 to vector<1x128xf32>
    %1679 = arith.mulf %981, %1678 : vector<1x128xf32>
    %1680 = arith.addf %1676, %1679 : vector<1x128xf32>
    %c401 = arith.constant 401 : index
    %1681 = memref.load %arg1[%c401] : memref<433xf32, #tpu.memory_space<smem>>
    %1682 = vector.broadcast %1681 : f32 to vector<1x128xf32>
    %1683 = arith.mulf %1029, %1682 : vector<1x128xf32>
    %1684 = arith.addf %1680, %1683 : vector<1x128xf32>
    %c416 = arith.constant 416 : index
    %1685 = memref.load %arg1[%c416] : memref<433xf32, #tpu.memory_space<smem>>
    %1686 = vector.broadcast %1685 : f32 to vector<1x128xf32>
    %1687 = arith.addf %1684, %1686 : vector<1x128xf32>
    %cst_67 = arith.constant 0.000000e+00 : f32
    %1688 = vector.broadcast %cst_67 : f32 to vector<1x128xf32>
    %1689 = arith.maximumf %1687, %1688 : vector<1x128xf32>
    %c417 = arith.constant 417 : index
    %1690 = memref.load %arg1[%c417] : memref<433xf32, #tpu.memory_space<smem>>
    %1691 = vector.broadcast %1690 : f32 to vector<1x128xf32>
    %1692 = arith.mulf %1073, %1691 : vector<1x128xf32>
    %c418 = arith.constant 418 : index
    %1693 = memref.load %arg1[%c418] : memref<433xf32, #tpu.memory_space<smem>>
    %1694 = vector.broadcast %1693 : f32 to vector<1x128xf32>
    %1695 = arith.mulf %1117, %1694 : vector<1x128xf32>
    %1696 = arith.addf %1692, %1695 : vector<1x128xf32>
    %c419 = arith.constant 419 : index
    %1697 = memref.load %arg1[%c419] : memref<433xf32, #tpu.memory_space<smem>>
    %1698 = vector.broadcast %1697 : f32 to vector<1x128xf32>
    %1699 = arith.mulf %1161, %1698 : vector<1x128xf32>
    %1700 = arith.addf %1696, %1699 : vector<1x128xf32>
    %c420 = arith.constant 420 : index
    %1701 = memref.load %arg1[%c420] : memref<433xf32, #tpu.memory_space<smem>>
    %1702 = vector.broadcast %1701 : f32 to vector<1x128xf32>
    %1703 = arith.mulf %1205, %1702 : vector<1x128xf32>
    %1704 = arith.addf %1700, %1703 : vector<1x128xf32>
    %c421 = arith.constant 421 : index
    %1705 = memref.load %arg1[%c421] : memref<433xf32, #tpu.memory_space<smem>>
    %1706 = vector.broadcast %1705 : f32 to vector<1x128xf32>
    %1707 = arith.mulf %1249, %1706 : vector<1x128xf32>
    %1708 = arith.addf %1704, %1707 : vector<1x128xf32>
    %c422 = arith.constant 422 : index
    %1709 = memref.load %arg1[%c422] : memref<433xf32, #tpu.memory_space<smem>>
    %1710 = vector.broadcast %1709 : f32 to vector<1x128xf32>
    %1711 = arith.mulf %1293, %1710 : vector<1x128xf32>
    %1712 = arith.addf %1708, %1711 : vector<1x128xf32>
    %c423 = arith.constant 423 : index
    %1713 = memref.load %arg1[%c423] : memref<433xf32, #tpu.memory_space<smem>>
    %1714 = vector.broadcast %1713 : f32 to vector<1x128xf32>
    %1715 = arith.mulf %1337, %1714 : vector<1x128xf32>
    %1716 = arith.addf %1712, %1715 : vector<1x128xf32>
    %c424 = arith.constant 424 : index
    %1717 = memref.load %arg1[%c424] : memref<433xf32, #tpu.memory_space<smem>>
    %1718 = vector.broadcast %1717 : f32 to vector<1x128xf32>
    %1719 = arith.mulf %1381, %1718 : vector<1x128xf32>
    %1720 = arith.addf %1716, %1719 : vector<1x128xf32>
    %c425 = arith.constant 425 : index
    %1721 = memref.load %arg1[%c425] : memref<433xf32, #tpu.memory_space<smem>>
    %1722 = vector.broadcast %1721 : f32 to vector<1x128xf32>
    %1723 = arith.mulf %1425, %1722 : vector<1x128xf32>
    %1724 = arith.addf %1720, %1723 : vector<1x128xf32>
    %c426 = arith.constant 426 : index
    %1725 = memref.load %arg1[%c426] : memref<433xf32, #tpu.memory_space<smem>>
    %1726 = vector.broadcast %1725 : f32 to vector<1x128xf32>
    %1727 = arith.mulf %1469, %1726 : vector<1x128xf32>
    %1728 = arith.addf %1724, %1727 : vector<1x128xf32>
    %c427 = arith.constant 427 : index
    %1729 = memref.load %arg1[%c427] : memref<433xf32, #tpu.memory_space<smem>>
    %1730 = vector.broadcast %1729 : f32 to vector<1x128xf32>
    %1731 = arith.mulf %1513, %1730 : vector<1x128xf32>
    %1732 = arith.addf %1728, %1731 : vector<1x128xf32>
    %c428 = arith.constant 428 : index
    %1733 = memref.load %arg1[%c428] : memref<433xf32, #tpu.memory_space<smem>>
    %1734 = vector.broadcast %1733 : f32 to vector<1x128xf32>
    %1735 = arith.mulf %1557, %1734 : vector<1x128xf32>
    %1736 = arith.addf %1732, %1735 : vector<1x128xf32>
    %c429 = arith.constant 429 : index
    %1737 = memref.load %arg1[%c429] : memref<433xf32, #tpu.memory_space<smem>>
    %1738 = vector.broadcast %1737 : f32 to vector<1x128xf32>
    %1739 = arith.mulf %1601, %1738 : vector<1x128xf32>
    %1740 = arith.addf %1736, %1739 : vector<1x128xf32>
    %c430 = arith.constant 430 : index
    %1741 = memref.load %arg1[%c430] : memref<433xf32, #tpu.memory_space<smem>>
    %1742 = vector.broadcast %1741 : f32 to vector<1x128xf32>
    %1743 = arith.mulf %1645, %1742 : vector<1x128xf32>
    %1744 = arith.addf %1740, %1743 : vector<1x128xf32>
    %c431 = arith.constant 431 : index
    %1745 = memref.load %arg1[%c431] : memref<433xf32, #tpu.memory_space<smem>>
    %1746 = vector.broadcast %1745 : f32 to vector<1x128xf32>
    %1747 = arith.mulf %1689, %1746 : vector<1x128xf32>
    %1748 = arith.addf %1744, %1747 : vector<1x128xf32>
    %c432 = arith.constant 432 : index
    %1749 = memref.load %arg1[%c432] : memref<433xf32, #tpu.memory_space<smem>>
    %1750 = vector.broadcast %1749 : f32 to vector<1x128xf32>
    %1751 = arith.addf %1748, %1750 : vector<1x128xf32>
    %1752 = arith.negf %1751 : vector<1x128xf32>
    %1753 = math.exp %1752 : vector<1x128xf32>
    %cst_68 = arith.constant 1.000000e+00 : f32
    %1754 = vector.broadcast %cst_68 : f32 to vector<1x128xf32>
    %1755 = arith.addf %1754, %1753 : vector<1x128xf32>
    %1756 = arith.divf %1754, %1755 : vector<1x128xf32>
    %c0_69 = arith.constant 0 : index
    %c0_70 = arith.constant 0 : index
    %1757 = vector.load %arg3[%c0_69, %c0_70] : memref<1x128xf32, #tpu.memory_space<vmem>>, vector<1x128xf32>
    tpu.vector_store %arg3[%c0_69, %c0_70], %1756 {strides = array<i32>} : memref<1x128xf32, #tpu.memory_space<vmem>>, vector<1x128xf32>,
    return
  }
  func.func @transform_0(%arg0: i32) -> i32 {
    %c0_i32 = arith.constant 0 : i32
    %c0_i32_0 = arith.constant 0 : i32
    return %c0_i32 : i32
  }
  func.func @transform_1(%arg0: i32) -> (i32, i32, i32) {
    %c0_i32 = arith.constant 0 : i32
    %c0_i32_0 = arith.constant 0 : i32
    %c0_i32_1 = arith.constant 0 : i32
    return %c0_i32, %arg0, %c0_i32_0 : i32, i32, i32
  }
  func.func @transform_2(%arg0: i32) -> (i32, i32) {
    %c0_i32 = arith.constant 0 : i32
    %c0_i32_0 = arith.constant 0 : i32
    return %arg0, %c0_i32 : i32, i32
  }
}

</mosaic_0001>

<llo_original>
// kernel: heart_disease_ann_forward.1
$region0: #{heart_disease_ann_forward.1}
  #allocation0 [shape = 'u32[]', space=smem, size = 0x4, offset = 0x4, fixed_abs, tag = 'smem constant byte address 0x4 - core index']
  #allocation1 [shape = 'u32[72,128]{1,0:T(1,128)}', space=vmem, size = 0x9000, scoped, tag = 'internal scratch']
  %s0 = inlined_call_operand.vmem [shape: f32[433], index: 0, kind: input, shape index: {}]
  %s1 = inlined_call_operand.vmem [shape: f32[11,1,128], index: 1, kind: input, shape index: {}]
  %s2 = inlined_call_operand.vmem [shape: f32[1,128], index: 2, kind: output, shape index: {}]
  %s3 = sld [smem:[#allocation0]]
  $region22: #{heart_disease_ann_forward.1} parent=0
    _
  %s5 = ssub.s32 1, %s3
  %s6 = scalar_select 0, %s5, %s3
  $region1: #{heart_disease_ann_forward.1} parent=0
    #allocation2 [shape = 'u8[2048]{0}', space=smem, size = 0x800, scoped, tag = 'input window, operand 0, single buffered']
    #allocation3 [shape = 's32[1]{0}', space=sflag, size = 0x4, scoped, tag = 'scoped memory for heart_disease_ann_forward.1']
    %7 = vsyncpa [#allocation3], 0
    // Predicated region
    $region2: #{heart_disease_ann_forward.1} parent=1 // pred_check
      _
    $region3: #{heart_disease_ann_forward.1} parent=1 // pred_check_branch
      %9 = sbr.rel (0) target = $region5
    $region4: #{heart_disease_ann_forward.1} parent=1 // pred_region
      %11 = vsyncadd [#allocation3], 0
      %s13 = sshll.u32 %s0, 4
      %s14 = int_to_ptr.vmem [resolvable:$true] %s13
      %16 = dma.vmem_to_smem %s14, 64, [#allocation2], [#allocation3]
    $region5: #{heart_disease_ann_forward.1} parent=1 // pred_fallthru
      _
    // Predicated region
    $region6: #{heart_disease_ann_forward.1} parent=1 // pred_check
      _
    $region7: #{heart_disease_ann_forward.1} parent=1 // pred_check_branch
      %18 = sbr.rel (0) target = $region9
    $region8: #{heart_disease_ann_forward.1} parent=1 // pred_region
      _
    $region9: #{heart_disease_ann_forward.1} parent=1 // pred_fallthru
      _
    // Predicated region
    $region10: #{heart_disease_ann_forward.1} parent=1 // pred_check
      _
    $region11: #{heart_disease_ann_forward.1} parent=1 // pred_check_branch
      %20 = sbr.rel (0) target = $region13
    $region12: #{heart_disease_ann_forward.1} parent=1 // pred_region
      %22 = dma.done [#allocation3], 64
    $region13: #{heart_disease_ann_forward.1} parent=1 // pred_fallthru
      _
    %23 = sfence
    %v24 = vld [vmem:[%s1] sm:$0x1]
    %s25 = scalar_lea.vmem %s1, 1
    %v26 = vld [vmem:[%s25] sm:$0x1]
    %s27 = scalar_lea.vmem %s1, 2
    %v28 = vld [vmem:[%s27] sm:$0x1]
    %s29 = scalar_lea.vmem %s1, 3
    %v30 = vld [vmem:[%s29] sm:$0x1]
    %s31 = scalar_lea.vmem %s1, 4
    %v32 = vld [vmem:[%s31] sm:$0x1]
    %s33 = scalar_lea.vmem %s1, 5
    %v34 = vld [vmem:[%s33] sm:$0x1]
    %s35 = scalar_lea.vmem %s1, 6
    %v36 = vld [vmem:[%s35] sm:$0x1]
    %s37 = scalar_lea.vmem %s1, 7
    %v38 = vld [vmem:[%s37] sm:$0x1]
    %s39 = scalar_lea.vmem %s1, 8
    %v40 = vld [vmem:[%s39] sm:$0x1]
    %s41 = scalar_lea.vmem %s1, 9
    %v42 = vld [vmem:[%s41] sm:$0x1]
    %s43 = scalar_lea.vmem %s1, 10
    %v44 = vld [vmem:[%s43] sm:$0x1]
    %s45 = sld [smem:[#allocation2]]
    %v46 = vstv %s45
    %v47 = vmul.f32 %v24, %v46
    %s48 = sld [smem:[#allocation2 + $0xb]]
    %v49 = vstv %s48
    %v50 = vmul.f32 %v26, %v49
    %v51 = vadd.f32 %v47, %v50
    %s52 = sld [smem:[#allocation2 + $0x16]]
    %v53 = vstv %s52
    %v54 = vmul.f32 %v28, %v53
    %v55 = vadd.f32 %v51, %v54
    %s56 = sld [smem:[#allocation2 + $0x21]]
    %v57 = vstv %s56
    %v58 = vmul.f32 %v30, %v57
    %v59 = vadd.f32 %v55, %v58
    %s60 = sld [smem:[#allocation2 + $0x2c]]
    %v61 = vstv %s60
    %v62 = vmul.f32 %v32, %v61
    %v63 = vadd.f32 %v59, %v62
    %s64 = sld [smem:[#allocation2 + $0x37]]
    %v65 = vstv %s64
    %v66 = vmul.f32 %v34, %v65
    %v67 = vadd.f32 %v63, %v66
    %s68 = sld [smem:[#allocation2 + $0x42]]
    %v69 = vstv %s68
    %v70 = vmul.f32 %v36, %v69
    %v71 = vadd.f32 %v67, %v70
    %s72 = sld [smem:[#allocation2 + $0x4d]]
    %v73 = vstv %s72
    %v74 = vmul.f32 %v38, %v73
    %v75 = vadd.f32 %v71, %v74
    %s76 = sld [smem:[#allocation2 + $0x58]]
    %v77 = vstv %s76
    %v78 = vmul.f32 %v40, %v77
    %v79 = vadd.f32 %v75, %v78
    %s80 = sld [smem:[#allocation2 + $0x63]]
    %v81 = vstv %s80
    %v82 = vmul.f32 %v42, %v81
    %v83 = vadd.f32 %v79, %v82
    %s84 = sld [smem:[#allocation2 + $0x6e]]
    %v85 = vstv %s84
    %v86 = vmul.f32 %v44, %v85
    %v87 = vadd.f32 %v83, %v86
    %s88 = sld [smem:[#allocation2 + $0x79]]
    %v89 = vstv %s88
    %v90 = vadd.f32 %v87, %v89
    %v91 = vmax.f32 %v90, 0.0
    %s92 = sld [smem:[#allocation2 + $0x1]]
    %v93 = vstv %s92
    %v94 = vmul.f32 %v24, %v93
    %s95 = sld [smem:[#allocation2 + $0xc]]
    %v96 = vstv %s95
    %v97 = vmul.f32 %v26, %v96
    %v98 = vadd.f32 %v94, %v97
    %s99 = sld [smem:[#allocation2 + $0x17]]
    %v100 = vstv %s99
    %v101 = vmul.f32 %v28, %v100
    %v102 = vadd.f32 %v98, %v101
    %s103 = sld [smem:[#allocation2 + $0x22]]
    %v104 = vstv %s103
    %v105 = vmul.f32 %v30, %v104
    %v106 = vadd.f32 %v102, %v105
    %s107 = sld [smem:[#allocation2 + $0x2d]]
    %v108 = vstv %s107
    %v109 = vmul.f32 %v32, %v108
    %v110 = vadd.f32 %v106, %v109
    %s111 = sld [smem:[#allocation2 + $0x38]]
    %v112 = vstv %s111
    %v113 = vmul.f32 %v34, %v112
    %v114 = vadd.f32 %v110, %v113
    %s115 = sld [smem:[#allocation2 + $0x43]]
    %v116 = vstv %s115
    %v117 = vmul.f32 %v36, %v116
    %v118 = vadd.f32 %v114, %v117
    %s119 = sld [smem:[#allocation2 + $0x4e]]
    %v120 = vstv %s119
    %v121 = vmul.f32 %v38, %v120
    %v122 = vadd.f32 %v118, %v121
    %s123 = sld [smem:[#allocation2 + $0x59]]
    %v124 = vstv %s123
    %v125 = vmul.f32 %v40, %v124
    %v126 = vadd.f32 %v122, %v125
    %s127 = sld [smem:[#allocation2 + $0x64]]
    %v128 = vstv %s127
    %v129 = vmul.f32 %v42, %v128
    %v130 = vadd.f32 %v126, %v129
    %s131 = sld [smem:[#allocation2 + $0x6f]]
    %v132 = vstv %s131
    %v133 = vmul.f32 %v44, %v132
    %v134 = vadd.f32 %v130, %v133
    %s135 = sld [smem:[#allocation2 + $0x7a]]
    %v136 = vstv %s135
    %v137 = vadd.f32 %v134, %v136
    %v138 = vmax.f32 %v137, 0.0
    %s139 = sld [smem:[#allocation2 + $0x2]]
    %v140 = vstv %s139
    %v141 = vmul.f32 %v24, %v140
    %s142 = sld [smem:[#allocation2 + $0xd]]
    %v143 = vstv %s142
    %v144 = vmul.f32 %v26, %v143
    %v145 = vadd.f32 %v141, %v144
    %s146 = sld [smem:[#allocation2 + $0x18]]
    %v147 = vstv %s146
    %v148 = vmul.f32 %v28, %v147
    %v149 = vadd.f32 %v145, %v148
    %s150 = sld [smem:[#allocation2 + $0x23]]
    %v151 = vstv %s150
    %v152 = vmul.f32 %v30, %v151
    %v153 = vadd.f32 %v149, %v152
    %s154 = sld [smem:[#allocation2 + $0x2e]]
    %v155 = vstv %s154
    %v156 = vmul.f32 %v32, %v155
    %v157 = vadd.f32 %v153, %v156
    %s158 = sld [smem:[#allocation2 + $0x39]]
    %v159 = vstv %s158
    %v160 = vmul.f32 %v34, %v159
    %v161 = vadd.f32 %v157, %v160
    %s162 = sld [smem:[#allocation2 + $0x44]]
    %v163 = vstv %s162
    %v164 = vmul.f32 %v36, %v163
    %v165 = vadd.f32 %v161, %v164
    %s166 = sld [smem:[#allocation2 + $0x4f]]
    %v167 = vstv %s166
    %v168 = vmul.f32 %v38, %v167
    %v169 = vadd.f32 %v165, %v168
    %s170 = sld [smem:[#allocation2 + $0x5a]]
    %v171 = vstv %s170
    %v172 = vmul.f32 %v40, %v171
    %v173 = vadd.f32 %v169, %v172
    %s174 = sld [smem:[#allocation2 + $0x65]]
    %v175 = vstv %s174
    %v176 = vmul.f32 %v42, %v175
    %v177 = vadd.f32 %v173, %v176
    %s178 = sld [smem:[#allocation2 + $0x70]]
    %v179 = vstv %s178
    %v180 = vmul.f32 %v44, %v179
    %v181 = vadd.f32 %v177, %v180
    %s182 = sld [smem:[#allocation2 + $0x7b]]
    %v183 = vstv %s182
    %v184 = vadd.f32 %v181, %v183
    %v185 = vmax.f32 %v184, 0.0
    %s186 = sld [smem:[#allocation2 + $0x3]]
    %v187 = vstv %s186
    %v188 = vmul.f32 %v24, %v187
    %s189 = sld [smem:[#allocation2 + $0xe]]
    %v190 = vstv %s189
    %v191 = vmul.f32 %v26, %v190
    %v192 = vadd.f32 %v188, %v191
    %s193 = sld [smem:[#allocation2 + $0x19]]
    %v194 = vstv %s193
    %v195 = vmul.f32 %v28, %v194
    %v196 = vadd.f32 %v192, %v195
    %s197 = sld [smem:[#allocation2 + $0x24]]
    %v198 = vstv %s197
    %v199 = vmul.f32 %v30, %v198
    %v200 = vadd.f32 %v196, %v199
    %s201 = sld [smem:[#allocation2 + $0x2f]]
    %v202 = vstv %s201
    %v203 = vmul.f32 %v32, %v202
    %v204 = vadd.f32 %v200, %v203
    %s205 = sld [smem:[#allocation2 + $0x3a]]
    %v206 = vstv %s205
    %v207 = vmul.f32 %v34, %v206
    %v208 = vadd.f32 %v204, %v207
    %s209 = sld [smem:[#allocation2 + $0x45]]
    %v210 = vstv %s209
    %v211 = vmul.f32 %v36, %v210
    %v212 = vadd.f32 %v208, %v211
    %s213 = sld [smem:[#allocation2 + $0x50]]
    %v214 = vstv %s213
    %v215 = vmul.f32 %v38, %v214
    %v216 = vadd.f32 %v212, %v215
    %s217 = sld [smem:[#allocation2 + $0x5b]]
    %v218 = vstv %s217
    %v219 = vmul.f32 %v40, %v218
    %v220 = vadd.f32 %v216, %v219
    %s221 = sld [smem:[#allocation2 + $0x66]]
    %v222 = vstv %s221
    %v223 = vmul.f32 %v42, %v222
    %v224 = vadd.f32 %v220, %v223
    %s225 = sld [smem:[#allocation2 + $0x71]]
    %v226 = vstv %s225
    %v227 = vmul.f32 %v44, %v226
    %v228 = vadd.f32 %v224, %v227
    %s229 = sld [smem:[#allocation2 + $0x7c]]
    %v230 = vstv %s229
    %v231 = vadd.f32 %v228, %v230
    %v232 = vmax.f32 %v231, 0.0
    %s233 = sld [smem:[#allocation2 + $0x4]]
    %v234 = vstv %s233
    %v235 = vmul.f32 %v24, %v234
    %s236 = sld [smem:[#allocation2 + $0xf]]
    %v237 = vstv %s236
    %v238 = vmul.f32 %v26, %v237
    %v239 = vadd.f32 %v235, %v238
    %s240 = sld [smem:[#allocation2 + $0x1a]]
    %v241 = vstv %s240
    %v242 = vmul.f32 %v28, %v241
    %v243 = vadd.f32 %v239, %v242
    %s244 = sld [smem:[#allocation2 + $0x25]]
    %v245 = vstv %s244
    %v246 = vmul.f32 %v30, %v245
    %v247 = vadd.f32 %v243, %v246
    %s248 = sld [smem:[#allocation2 + $0x30]]
    %v249 = vstv %s248
    %v250 = vmul.f32 %v32, %v249
    %v251 = vadd.f32 %v247, %v250
    %s252 = sld [smem:[#allocation2 + $0x3b]]
    %v253 = vstv %s252
    %v254 = vmul.f32 %v34, %v253
    %v255 = vadd.f32 %v251, %v254
    %s256 = sld [smem:[#allocation2 + $0x46]]
    %v257 = vstv %s256
    %v258 = vmul.f32 %v36, %v257
    %v259 = vadd.f32 %v255, %v258
    %s260 = sld [smem:[#allocation2 + $0x51]]
    %v261 = vstv %s260
    %v262 = vmul.f32 %v38, %v261
    %v263 = vadd.f32 %v259, %v262
    %s264 = sld [smem:[#allocation2 + $0x5c]]
    %v265 = vstv %s264
    %v266 = vmul.f32 %v40, %v265
    %v267 = vadd.f32 %v263, %v266
    %s268 = sld [smem:[#allocation2 + $0x67]]
    %v269 = vstv %s268
    %v270 = vmul.f32 %v42, %v269
    %v271 = vadd.f32 %v267, %v270
    %s272 = sld [smem:[#allocation2 + $0x72]]
    %v273 = vstv %s272
    %v274 = vmul.f32 %v44, %v273
    %v275 = vadd.f32 %v271, %v274
    %s276 = sld [smem:[#allocation2 + $0x7d]]
    %v277 = vstv %s276
    %v278 = vadd.f32 %v275, %v277
    %v279 = vmax.f32 %v278, 0.0
    %s280 = sld [smem:[#allocation2 + $0x5]]
    %v281 = vstv %s280
    %v282 = vmul.f32 %v24, %v281
    %s283 = sld [smem:[#allocation2 + $0x10]]
    %v284 = vstv %s283
    %v285 = vmul.f32 %v26, %v284
    %v286 = vadd.f32 %v282, %v285
    %s287 = sld [smem:[#allocation2 + $0x1b]]
    %v288 = vstv %s287
    %v289 = vmul.f32 %v28, %v288
    %v290 = vadd.f32 %v286, %v289
    %s291 = sld [smem:[#allocation2 + $0x26]]
    %v292 = vstv %s291
    %v293 = vmul.f32 %v30, %v292
    %v294 = vadd.f32 %v290, %v293
    %s295 = sld [smem:[#allocation2 + $0x31]]
    %v296 = vstv %s295
    %v297 = vmul.f32 %v32, %v296
    %v298 = vadd.f32 %v294, %v297
    %s299 = sld [smem:[#allocation2 + $0x3c]]
    %v300 = vstv %s299
    %v301 = vmul.f32 %v34, %v300
    %v302 = vadd.f32 %v298, %v301
    %s303 = sld [smem:[#allocation2 + $0x47]]
    %v304 = vstv %s303
    %v305 = vmul.f32 %v36, %v304
    %v306 = vadd.f32 %v302, %v305
    %s307 = sld [smem:[#allocation2 + $0x52]]
    %v308 = vstv %s307
    %v309 = vmul.f32 %v38, %v308
    %v310 = vadd.f32 %v306, %v309
    %s311 = sld [smem:[#allocation2 + $0x5d]]
    %v312 = vstv %s311
    %v313 = vmul.f32 %v40, %v312
    %v314 = vadd.f32 %v310, %v313
    %s315 = sld [smem:[#allocation2 + $0x68]]
    %v316 = vstv %s315
    %v317 = vmul.f32 %v42, %v316
    %v318 = vadd.f32 %v314, %v317
    %s319 = sld [smem:[#allocation2 + $0x73]]
    %v320 = vstv %s319
    %v321 = vmul.f32 %v44, %v320
    %v322 = vadd.f32 %v318, %v321
    %s323 = sld [smem:[#allocation2 + $0x7e]]
    %v324 = vstv %s323
    %v325 = vadd.f32 %v322, %v324
    %v326 = vmax.f32 %v325, 0.0
    %s327 = sld [smem:[#allocation2 + $0x6]]
    %v328 = vstv %s327
    %v329 = vmul.f32 %v24, %v328
    %s330 = sld [smem:[#allocation2 + $0x11]]
    %v331 = vstv %s330
    %v332 = vmul.f32 %v26, %v331
    %v333 = vadd.f32 %v329, %v332
    %s334 = sld [smem:[#allocation2 + $0x1c]]
    %v335 = vstv %s334
    %v336 = vmul.f32 %v28, %v335
    %v337 = vadd.f32 %v333, %v336
    %s338 = sld [smem:[#allocation2 + $0x27]]
    %v339 = vstv %s338
    %v340 = vmul.f32 %v30, %v339
    %v341 = vadd.f32 %v337, %v340
    %s342 = sld [smem:[#allocation2 + $0x32]]
    %v343 = vstv %s342
    %v344 = vmul.f32 %v32, %v343
    %v345 = vadd.f32 %v341, %v344
    %s346 = sld [smem:[#allocation2 + $0x3d]]
    %v347 = vstv %s346
    %v348 = vmul.f32 %v34, %v347
    %v349 = vadd.f32 %v345, %v348
    %s350 = sld [smem:[#allocation2 + $0x48]]
    %v351 = vstv %s350
    %v352 = vmul.f32 %v36, %v351
    %v353 = vadd.f32 %v349, %v352
    %s354 = sld [smem:[#allocation2 + $0x53]]
    %v355 = vstv %s354
    %v356 = vmul.f32 %v38, %v355
    %v357 = vadd.f32 %v353, %v356
    %s358 = sld [smem:[#allocation2 + $0x5e]]
    %v359 = vstv %s358
    %v360 = vmul.f32 %v40, %v359
    %v361 = vadd.f32 %v357, %v360
    %s362 = sld [smem:[#allocation2 + $0x69]]
    %v363 = vstv %s362
    %v364 = vmul.f32 %v42, %v363
    %v365 = vadd.f32 %v361, %v364
    %s366 = sld [smem:[#allocation2 + $0x74]]
    %v367 = vstv %s366
    %v368 = vmul.f32 %v44, %v367
    %v369 = vadd.f32 %v365, %v368
    %s370 = sld [smem:[#allocation2 + $0x7f]]
    %v371 = vstv %s370
    %v372 = vadd.f32 %v369, %v371
    %v373 = vmax.f32 %v372, 0.0
    %s374 = sld [smem:[#allocation2 + $0x7]]
    %v375 = vstv %s374
    %v376 = vmul.f32 %v24, %v375
    %s377 = sld [smem:[#allocation2 + $0x12]]
    %v378 = vstv %s377
    %v379 = vmul.f32 %v26, %v378
    %v380 = vadd.f32 %v376, %v379
    %s381 = sld [smem:[#allocation2 + $0x1d]]
    %v382 = vstv %s381
    %v383 = vmul.f32 %v28, %v382
    %v384 = vadd.f32 %v380, %v383
    %s385 = sld [smem:[#allocation2 + $0x28]]
    %v386 = vstv %s385
    %v387 = vmul.f32 %v30, %v386
    %v388 = vadd.f32 %v384, %v387
    %s389 = sld [smem:[#allocation2 + $0x33]]
    %v390 = vstv %s389
    %v391 = vmul.f32 %v32, %v390
    %v392 = vadd.f32 %v388, %v391
    %s393 = sld [smem:[#allocation2 + $0x3e]]
    %v394 = vstv %s393
    %v395 = vmul.f32 %v34, %v394
    %v396 = vadd.f32 %v392, %v395
    %s397 = sld [smem:[#allocation2 + $0x49]]
    %v398 = vstv %s397
    %v399 = vmul.f32 %v36, %v398
    %v400 = vadd.f32 %v396, %v399
    %s401 = sld [smem:[#allocation2 + $0x54]]
    %v402 = vstv %s401
    %v403 = vmul.f32 %v38, %v402
    %v404 = vadd.f32 %v400, %v403
    %s405 = sld [smem:[#allocation2 + $0x5f]]
    %v406 = vstv %s405
    %v407 = vmul.f32 %v40, %v406
    %v408 = vadd.f32 %v404, %v407
    %s409 = sld [smem:[#allocation2 + $0x6a]]
    %v410 = vstv %s409
    %v411 = vmul.f32 %v42, %v410
    %v412 = vadd.f32 %v408, %v411
    %s413 = sld [smem:[#allocation2 + $0x75]]
    %v414 = vstv %s413
    %v415 = vmul.f32 %v44, %v414
    %v416 = vadd.f32 %v412, %v415
    %s417 = sld [smem:[#allocation2 + $0x80]]
    %v418 = vstv %s417
    %v419 = vadd.f32 %v416, %v418
    %v420 = vmax.f32 %v419, 0.0
    %s421 = sld [smem:[#allocation2 + $0x8]]
    %v422 = vstv %s421
    %v423 = vmul.f32 %v24, %v422
    %s424 = sld [smem:[#allocation2 + $0x13]]
    %v425 = vstv %s424
    %v426 = vmul.f32 %v26, %v425
    %v427 = vadd.f32 %v423, %v426
    %s428 = sld [smem:[#allocation2 + $0x1e]]
    %v429 = vstv %s428
    %v430 = vmul.f32 %v28, %v429
    %v431 = vadd.f32 %v427, %v430
    %s432 = sld [smem:[#allocation2 + $0x29]]
    %v433 = vstv %s432
    %v434 = vmul.f32 %v30, %v433
    %v435 = vadd.f32 %v431, %v434
    %s436 = sld [smem:[#allocation2 + $0x34]]
    %v437 = vstv %s436
    %v438 = vmul.f32 %v32, %v437
    %v439 = vadd.f32 %v435, %v438
    %s440 = sld [smem:[#allocation2 + $0x3f]]
    %v441 = vstv %s440
    %v442 = vmul.f32 %v34, %v441
    %v443 = vadd.f32 %v439, %v442
    %s444 = sld [smem:[#allocation2 + $0x4a]]
    %v445 = vstv %s444
    %v446 = vmul.f32 %v36, %v445
    %v447 = vadd.f32 %v443, %v446
    %s448 = sld [smem:[#allocation2 + $0x55]]
    %v449 = vstv %s448
    %v450 = vmul.f32 %v38, %v449
    %v451 = vadd.f32 %v447, %v450
    %s452 = sld [smem:[#allocation2 + $0x60]]
    %v453 = vstv %s452
    %v454 = vmul.f32 %v40, %v453
    %v455 = vadd.f32 %v451, %v454
    %s456 = sld [smem:[#allocation2 + $0x6b]]
    %v457 = vstv %s456
    %v458 = vmul.f32 %v42, %v457
    %v459 = vadd.f32 %v455, %v458
    %s460 = sld [smem:[#allocation2 + $0x76]]
    %v461 = vstv %s460
    %v462 = vmul.f32 %v44, %v461
    %v463 = vadd.f32 %v459, %v462
    %s464 = sld [smem:[#allocation2 + $0x81]]
    %v465 = vstv %s464
    %v466 = vadd.f32 %v463, %v465
    %v467 = vmax.f32 %v466, 0.0
    %s468 = sld [smem:[#allocation2 + $0x9]]
    %v469 = vstv %s468
    %v470 = vmul.f32 %v24, %v469
    %s471 = sld [smem:[#allocation2 + $0x14]]
    %v472 = vstv %s471
    %v473 = vmul.f32 %v26, %v472
    %v474 = vadd.f32 %v470, %v473
    %s475 = sld [smem:[#allocation2 + $0x1f]]
    %v476 = vstv %s475
    %v477 = vmul.f32 %v28, %v476
    %v478 = vadd.f32 %v474, %v477
    %s479 = sld [smem:[#allocation2 + $0x2a]]
    %v480 = vstv %s479
    %v481 = vmul.f32 %v30, %v480
    %v482 = vadd.f32 %v478, %v481
    %s483 = sld [smem:[#allocation2 + $0x35]]
    %v484 = vstv %s483
    %v485 = vmul.f32 %v32, %v484
    %v486 = vadd.f32 %v482, %v485
    %s487 = sld [smem:[#allocation2 + $0x40]]
    %v488 = vstv %s487
    %v489 = vmul.f32 %v34, %v488
    %v490 = vadd.f32 %v486, %v489
    %s491 = sld [smem:[#allocation2 + $0x4b]]
    %v492 = vstv %s491
    %v493 = vmul.f32 %v36, %v492
    %v494 = vadd.f32 %v490, %v493
    %s495 = sld [smem:[#allocation2 + $0x56]]
    %v496 = vstv %s495
    %v497 = vmul.f32 %v38, %v496
    %v498 = vadd.f32 %v494, %v497
    %s499 = sld [smem:[#allocation2 + $0x61]]
    %v500 = vstv %s499
    %v501 = vmul.f32 %v40, %v500
    %v502 = vadd.f32 %v498, %v501
    %s503 = sld [smem:[#allocation2 + $0x6c]]
    %v504 = vstv %s503
    %v505 = vmul.f32 %v42, %v504
    %v506 = vadd.f32 %v502, %v505
    %s507 = sld [smem:[#allocation2 + $0x77]]
    %v508 = vstv %s507
    %v509 = vmul.f32 %v44, %v508
    %v510 = vadd.f32 %v506, %v509
    %s511 = sld [smem:[#allocation2 + $0x82]]
    %v512 = vstv %s511
    %v513 = vadd.f32 %v510, %v512
    %v514 = vmax.f32 %v513, 0.0
    %s515 = sld [smem:[#allocation2 + $0xa]]
    %v516 = vstv %s515
    %v517 = vmul.f32 %v24, %v516
    %s518 = sld [smem:[#allocation2 + $0x15]]
    %v519 = vstv %s518
    %v520 = vmul.f32 %v26, %v519
    %v521 = vadd.f32 %v517, %v520
    %s522 = sld [smem:[#allocation2 + $0x20]]
    %v523 = vstv %s522
    %v524 = vmul.f32 %v28, %v523
    %v525 = vadd.f32 %v521, %v524
    %s526 = sld [smem:[#allocation2 + $0x2b]]
    %v527 = vstv %s526
    %v528 = vmul.f32 %v30, %v527
    %v529 = vadd.f32 %v525, %v528
    %s530 = sld [smem:[#allocation2 + $0x36]]
    %v531 = vstv %s530
    %v532 = vmul.f32 %v32, %v531
    %v533 = vadd.f32 %v529, %v532
    %s534 = sld [smem:[#allocation2 + $0x41]]
    %v535 = vstv %s534
    %v536 = vmul.f32 %v34, %v535
    %v537 = vadd.f32 %v533, %v536
    %s538 = sld [smem:[#allocation2 + $0x4c]]
    %v539 = vstv %s538
    %v540 = vmul.f32 %v36, %v539
    %v541 = vadd.f32 %v537, %v540
    %s542 = sld [smem:[#allocation2 + $0x57]]
    %v543 = vstv %s542
    %v544 = vmul.f32 %v38, %v543
    %v545 = vadd.f32 %v541, %v544
    %s546 = sld [smem:[#allocation2 + $0x62]]
    %v547 = vstv %s546
    %v548 = vmul.f32 %v40, %v547
    %v549 = vadd.f32 %v545, %v548
    %s550 = sld [smem:[#allocation2 + $0x6d]]
    %v551 = vstv %s550
    %v552 = vmul.f32 %v42, %v551
    %v553 = vadd.f32 %v549, %v552
    %s554 = sld [smem:[#allocation2 + $0x78]]
    %v555 = vstv %s554
    %v556 = vmul.f32 %v44, %v555
    %v557 = vadd.f32 %v553, %v556
    %s558 = sld [smem:[#allocation2 + $0x83]]
    %v559 = vstv %s558
    %v560 = vadd.f32 %v557, %v559
    %v561 = vmax.f32 %v560, 0.0
    %s562 = sld [smem:[#allocation2 + $0x84]]
    %v563 = vstv %s562
    %v564 = vmul.f32 %v91, %v563
    %s565 = sld [smem:[#allocation2 + $0x8e]]
    %v566 = vstv %s565
    %v567 = vmul.f32 %v138, %v566
    %v568 = vadd.f32 %v564, %v567
    %s569 = sld [smem:[#allocation2 + $0x98]]
    %v570 = vstv %s569
    %v571 = vmul.f32 %v185, %v570
    %v572 = vadd.f32 %v568, %v571
    %s573 = sld [smem:[#allocation2 + $0xa2]]
    %v574 = vstv %s573
    %v575 = vmul.f32 %v232, %v574
    %v576 = vadd.f32 %v572, %v575
    %s577 = sld [smem:[#allocation2 + $0xac]]
    %v578 = vstv %s577
    %v579 = vmul.f32 %v279, %v578
    %v580 = vadd.f32 %v576, %v579
    %s581 = sld [smem:[#allocation2 + $0xb6]]
    %v582 = vstv %s581
    %v583 = vmul.f32 %v326, %v582
    %v584 = vadd.f32 %v580, %v583
    %s585 = sld [smem:[#allocation2 + $0xc0]]
    %v586 = vstv %s585
    %v587 = vmul.f32 %v373, %v586
    %v588 = vadd.f32 %v584, %v587
    %s589 = sld [smem:[#allocation2 + $0xca]]
    %v590 = vstv %s589
    %v591 = vmul.f32 %v420, %v590
    %v592 = vadd.f32 %v588, %v591
    %s593 = sld [smem:[#allocation2 + $0xd4]]
    %v594 = vstv %s593
    %v595 = vmul.f32 %v467, %v594
    %v596 = vadd.f32 %v592, %v595
    %s597 = sld [smem:[#allocation2 + $0xde]]
    %v598 = vstv %s597
    %v599 = vmul.f32 %v514, %v598
    %v600 = vadd.f32 %v596, %v599
    %s601 = sld [smem:[#allocation2 + $0xe8]]
    %v602 = vstv %s601
    %v603 = vmul.f32 %v561, %v602
    %v604 = vadd.f32 %v600, %v603
    %s605 = sld [smem:[#allocation2 + $0xf2]]
    %v606 = vstv %s605
    %v607 = vadd.f32 %v604, %v606
    %v608 = vmax.f32 %v607, 0.0
    %s609 = sld [smem:[#allocation2 + $0x85]]
    %v610 = vstv %s609
    %v611 = vmul.f32 %v91, %v610
    %s612 = sld [smem:[#allocation2 + $0x8f]]
    %v613 = vstv %s612
    %v614 = vmul.f32 %v138, %v613
    %v615 = vadd.f32 %v611, %v614
    %s616 = sld [smem:[#allocation2 + $0x99]]
    %v617 = vstv %s616
    %v618 = vmul.f32 %v185, %v617
    %v619 = vadd.f32 %v615, %v618
    %s620 = sld [smem:[#allocation2 + $0xa3]]
    %v621 = vstv %s620
    %v622 = vmul.f32 %v232, %v621
    %v623 = vadd.f32 %v619, %v622
    %s624 = sld [smem:[#allocation2 + $0xad]]
    %v625 = vstv %s624
    %v626 = vmul.f32 %v279, %v625
    %v627 = vadd.f32 %v623, %v626
    %s628 = sld [smem:[#allocation2 + $0xb7]]
    %v629 = vstv %s628
    %v630 = vmul.f32 %v326, %v629
    %v631 = vadd.f32 %v627, %v630
    %s632 = sld [smem:[#allocation2 + $0xc1]]
    %v633 = vstv %s632
    %v634 = vmul.f32 %v373, %v633
    %v635 = vadd.f32 %v631, %v634
    %s636 = sld [smem:[#allocation2 + $0xcb]]
    %v637 = vstv %s636
    %v638 = vmul.f32 %v420, %v637
    %v639 = vadd.f32 %v635, %v638
    %s640 = sld [smem:[#allocation2 + $0xd5]]
    %v641 = vstv %s640
    %v642 = vmul.f32 %v467, %v641
    %v643 = vadd.f32 %v639, %v642
    %s644 = sld [smem:[#allocation2 + $0xdf]]
    %v645 = vstv %s644
    %v646 = vmul.f32 %v514, %v645
    %v647 = vadd.f32 %v643, %v646
    %s648 = sld [smem:[#allocation2 + $0xe9]]
    %v649 = vstv %s648
    %v650 = vmul.f32 %v561, %v649
    %v651 = vadd.f32 %v647, %v650
    %s652 = sld [smem:[#allocation2 + $0xf3]]
    %v653 = vstv %s652
    %v654 = vadd.f32 %v651, %v653
    %v655 = vmax.f32 %v654, 0.0
    %s656 = sld [smem:[#allocation2 + $0x86]]
    %v657 = vstv %s656
    %v658 = vmul.f32 %v91, %v657
    %s659 = sld [smem:[#allocation2 + $0x90]]
    %v660 = vstv %s659
    %v661 = vmul.f32 %v138, %v660
    %v662 = vadd.f32 %v658, %v661
    %s663 = sld [smem:[#allocation2 + $0x9a]]
    %v664 = vstv %s663
    %v665 = vmul.f32 %v185, %v664
    %v666 = vadd.f32 %v662, %v665
    %s667 = sld [smem:[#allocation2 + $0xa4]]
    %v668 = vstv %s667
    %v669 = vmul.f32 %v232, %v668
    %v670 = vadd.f32 %v666, %v669
    %s671 = sld [smem:[#allocation2 + $0xae]]
    %v672 = vstv %s671
    %v673 = vmul.f32 %v279, %v672
    %v674 = vadd.f32 %v670, %v673
    %s675 = sld [smem:[#allocation2 + $0xb8]]
    %v676 = vstv %s675
    %v677 = vmul.f32 %v326, %v676
    %v678 = vadd.f32 %v674, %v677
    %s679 = sld [smem:[#allocation2 + $0xc2]]
    %v680 = vstv %s679
    %v681 = vmul.f32 %v373, %v680
    %v682 = vadd.f32 %v678, %v681
    %s683 = sld [smem:[#allocation2 + $0xcc]]
    %v684 = vstv %s683
    %v685 = vmul.f32 %v420, %v684
    %v686 = vadd.f32 %v682, %v685
    %s687 = sld [smem:[#allocation2 + $0xd6]]
    %v688 = vstv %s687
    %v689 = vmul.f32 %v467, %v688
    %v690 = vadd.f32 %v686, %v689
    %s691 = sld [smem:[#allocation2 + $0xe0]]
    %v692 = vstv %s691
    %v693 = vmul.f32 %v514, %v692
    %v694 = vadd.f32 %v690, %v693
    %s695 = sld [smem:[#allocation2 + $0xea]]
    %v696 = vstv %s695
    %v697 = vmul.f32 %v561, %v696
    %v698 = vadd.f32 %v694, %v697
    %s699 = sld [smem:[#allocation2 + $0xf4]]
    %v700 = vstv %s699
    %v701 = vadd.f32 %v698, %v700
    %v702 = vmax.f32 %v701, 0.0
    %s703 = sld [smem:[#allocation2 + $0x87]]
    %v704 = vstv %s703
    %v705 = vmul.f32 %v91, %v704
    %s706 = sld [smem:[#allocation2 + $0x91]]
    %v707 = vstv %s706
    %v708 = vmul.f32 %v138, %v707
    %v709 = vadd.f32 %v705, %v708
    %s710 = sld [smem:[#allocation2 + $0x9b]]
    %v711 = vstv %s710
    %v712 = vmul.f32 %v185, %v711
    %v713 = vadd.f32 %v709, %v712
    %s714 = sld [smem:[#allocation2 + $0xa5]]
    %v715 = vstv %s714
    %v716 = vmul.f32 %v232, %v715
    %v717 = vadd.f32 %v713, %v716
    %s718 = sld [smem:[#allocation2 + $0xaf]]
    %v719 = vstv %s718
    %v720 = vmul.f32 %v279, %v719
    %v721 = vadd.f32 %v717, %v720
    %s722 = sld [smem:[#allocation2 + $0xb9]]
    %v723 = vstv %s722
    %v724 = vmul.f32 %v326, %v723
    %v725 = vadd.f32 %v721, %v724
    %s726 = sld [smem:[#allocation2 + $0xc3]]
    %v727 = vstv %s726
    %v728 = vmul.f32 %v373, %v727
    %v729 = vadd.f32 %v725, %v728
    %s730 = sld [smem:[#allocation2 + $0xcd]]
    %v731 = vstv %s730
    %v732 = vmul.f32 %v420, %v731
    %v733 = vadd.f32 %v729, %v732
    %s734 = sld [smem:[#allocation2 + $0xd7]]
    %v735 = vstv %s734
    %v736 = vmul.f32 %v467, %v735
    %v737 = vadd.f32 %v733, %v736
    %s738 = sld [smem:[#allocation2 + $0xe1]]
    %v739 = vstv %s738
    %v740 = vmul.f32 %v514, %v739
    %v741 = vadd.f32 %v737, %v740
    %s742 = sld [smem:[#allocation2 + $0xeb]]
    %v743 = vstv %s742
    %v744 = vmul.f32 %v561, %v743
    %v745 = vadd.f32 %v741, %v744
    %s746 = sld [smem:[#allocation2 + $0xf5]]
    %v747 = vstv %s746
    %v748 = vadd.f32 %v745, %v747
    %v749 = vmax.f32 %v748, 0.0
    %s750 = sld [smem:[#allocation2 + $0x88]]
    %v751 = vstv %s750
    %v752 = vmul.f32 %v91, %v751
    %s753 = sld [smem:[#allocation2 + $0x92]]
    %v754 = vstv %s753
    %v755 = vmul.f32 %v138, %v754
    %v756 = vadd.f32 %v752, %v755
    %s757 = sld [smem:[#allocation2 + $0x9c]]
    %v758 = vstv %s757
    %v759 = vmul.f32 %v185, %v758
    %v760 = vadd.f32 %v756, %v759
    %s761 = sld [smem:[#allocation2 + $0xa6]]
    %v762 = vstv %s761
    %v763 = vmul.f32 %v232, %v762
    %v764 = vadd.f32 %v760, %v763
    %s765 = sld [smem:[#allocation2 + $0xb0]]
    %v766 = vstv %s765
    %v767 = vmul.f32 %v279, %v766
    %v768 = vadd.f32 %v764, %v767
    %s769 = sld [smem:[#allocation2 + $0xba]]
    %v770 = vstv %s769
    %v771 = vmul.f32 %v326, %v770
    %v772 = vadd.f32 %v768, %v771
    %s773 = sld [smem:[#allocation2 + $0xc4]]
    %v774 = vstv %s773
    %v775 = vmul.f32 %v373, %v774
    %v776 = vadd.f32 %v772, %v775
    %s777 = sld [smem:[#allocation2 + $0xce]]
    %v778 = vstv %s777
    %v779 = vmul.f32 %v420, %v778
    %v780 = vadd.f32 %v776, %v779
    %s781 = sld [smem:[#allocation2 + $0xd8]]
    %v782 = vstv %s781
    %v783 = vmul.f32 %v467, %v782
    %v784 = vadd.f32 %v780, %v783
    %s785 = sld [smem:[#allocation2 + $0xe2]]
    %v786 = vstv %s785
    %v787 = vmul.f32 %v514, %v786
    %v788 = vadd.f32 %v784, %v787
    %s789 = sld [smem:[#allocation2 + $0xec]]
    %v790 = vstv %s789
    %v791 = vmul.f32 %v561, %v790
    %v792 = vadd.f32 %v788, %v791
    %s793 = sld [smem:[#allocation2 + $0xf6]]
    %v794 = vstv %s793
    %v795 = vadd.f32 %v792, %v794
    %v796 = vmax.f32 %v795, 0.0
    %s797 = sld [smem:[#allocation2 + $0x89]]
    %v798 = vstv %s797
    %v799 = vmul.f32 %v91, %v798
    %s800 = sld [smem:[#allocation2 + $0x93]]
    %v801 = vstv %s800
    %v802 = vmul.f32 %v138, %v801
    %v803 = vadd.f32 %v799, %v802
    %s804 = sld [smem:[#allocation2 + $0x9d]]
    %v805 = vstv %s804
    %v806 = vmul.f32 %v185, %v805
    %v807 = vadd.f32 %v803, %v806
    %s808 = sld [smem:[#allocation2 + $0xa7]]
    %v809 = vstv %s808
    %v810 = vmul.f32 %v232, %v809
    %v811 = vadd.f32 %v807, %v810
    %s812 = sld [smem:[#allocation2 + $0xb1]]
    %v813 = vstv %s812
    %v814 = vmul.f32 %v279, %v813
    %v815 = vadd.f32 %v811, %v814
    %s816 = sld [smem:[#allocation2 + $0xbb]]
    %v817 = vstv %s816
    %v818 = vmul.f32 %v326, %v817
    %v819 = vadd.f32 %v815, %v818
    %s820 = sld [smem:[#allocation2 + $0xc5]]
    %v821 = vstv %s820
    %v822 = vmul.f32 %v373, %v821
    %v823 = vadd.f32 %v819, %v822
    %s824 = sld [smem:[#allocation2 + $0xcf]]
    %v825 = vstv %s824
    %v826 = vmul.f32 %v420, %v825
    %v827 = vadd.f32 %v823, %v826
    %s828 = sld [smem:[#allocation2 + $0xd9]]
    %v829 = vstv %s828
    %v830 = vmul.f32 %v467, %v829
    %v831 = vadd.f32 %v827, %v830
    %s832 = sld [smem:[#allocation2 + $0xe3]]
    %v833 = vstv %s832
    %v834 = vmul.f32 %v514, %v833
    %v835 = vadd.f32 %v831, %v834
    %s836 = sld [smem:[#allocation2 + $0xed]]
    %v837 = vstv %s836
    %v838 = vmul.f32 %v561, %v837
    %v839 = vadd.f32 %v835, %v838
    %s840 = sld [smem:[#allocation2 + $0xf7]]
    %v841 = vstv %s840
    %v842 = vadd.f32 %v839, %v841
    %v843 = vmax.f32 %v842, 0.0
    %s844 = sld [smem:[#allocation2 + $0x8a]]
    %v845 = vstv %s844
    %v846 = vmul.f32 %v91, %v845
    %s847 = sld [smem:[#allocation2 + $0x94]]
    %v848 = vstv %s847
    %v849 = vmul.f32 %v138, %v848
    %v850 = vadd.f32 %v846, %v849
    %s851 = sld [smem:[#allocation2 + $0x9e]]
    %v852 = vstv %s851
    %v853 = vmul.f32 %v185, %v852
    %v854 = vadd.f32 %v850, %v853
    %s855 = sld [smem:[#allocation2 + $0xa8]]
    %v856 = vstv %s855
    %v857 = vmul.f32 %v232, %v856
    %v858 = vadd.f32 %v854, %v857
    %s859 = sld [smem:[#allocation2 + $0xb2]]
    %v860 = vstv %s859
    %v861 = vmul.f32 %v279, %v860
    %v862 = vadd.f32 %v858, %v861
    %s863 = sld [smem:[#allocation2 + $0xbc]]
    %v864 = vstv %s863
    %v865 = vmul.f32 %v326, %v864
    %v866 = vadd.f32 %v862, %v865
    %s867 = sld [smem:[#allocation2 + $0xc6]]
    %v868 = vstv %s867
    %v869 = vmul.f32 %v373, %v868
    %v870 = vadd.f32 %v866, %v869
    %s871 = sld [smem:[#allocation2 + $0xd0]]
    %v872 = vstv %s871
    %v873 = vmul.f32 %v420, %v872
    %v874 = vadd.f32 %v870, %v873
    %s875 = sld [smem:[#allocation2 + $0xda]]
    %v876 = vstv %s875
    %v877 = vmul.f32 %v467, %v876
    %v878 = vadd.f32 %v874, %v877
    %s879 = sld [smem:[#allocation2 + $0xe4]]
    %v880 = vstv %s879
    %v881 = vmul.f32 %v514, %v880
    %v882 = vadd.f32 %v878, %v881
    %s883 = sld [smem:[#allocation2 + $0xee]]
    %v884 = vstv %s883
    %v885 = vmul.f32 %v561, %v884
    %v886 = vadd.f32 %v882, %v885
    %s887 = sld [smem:[#allocation2 + $0xf8]]
    %v888 = vstv %s887
    %v889 = vadd.f32 %v886, %v888
    %v890 = vmax.f32 %v889, 0.0
    %s891 = sld [smem:[#allocation2 + $0x8b]]
    %v892 = vstv %s891
    %v893 = vmul.f32 %v91, %v892
    %s894 = sld [smem:[#allocation2 + $0x95]]
    %v895 = vstv %s894
    %v896 = vmul.f32 %v138, %v895
    %v897 = vadd.f32 %v893, %v896
    %s898 = sld [smem:[#allocation2 + $0x9f]]
    %v899 = vstv %s898
    %v900 = vmul.f32 %v185, %v899
    %v901 = vadd.f32 %v897, %v900
    %s902 = sld [smem:[#allocation2 + $0xa9]]
    %v903 = vstv %s902
    %v904 = vmul.f32 %v232, %v903
    %v905 = vadd.f32 %v901, %v904
    %s906 = sld [smem:[#allocation2 + $0xb3]]
    %v907 = vstv %s906
    %v908 = vmul.f32 %v279, %v907
    %v909 = vadd.f32 %v905, %v908
    %s910 = sld [smem:[#allocation2 + $0xbd]]
    %v911 = vstv %s910
    %v912 = vmul.f32 %v326, %v911
    %v913 = vadd.f32 %v909, %v912
    %s914 = sld [smem:[#allocation2 + $0xc7]]
    %v915 = vstv %s914
    %v916 = vmul.f32 %v373, %v915
    %v917 = vadd.f32 %v913, %v916
    %s918 = sld [smem:[#allocation2 + $0xd1]]
    %v919 = vstv %s918
    %v920 = vmul.f32 %v420, %v919
    %v921 = vadd.f32 %v917, %v920
    %s922 = sld [smem:[#allocation2 + $0xdb]]
    %v923 = vstv %s922
    %v924 = vmul.f32 %v467, %v923
    %v925 = vadd.f32 %v921, %v924
    %s926 = sld [smem:[#allocation2 + $0xe5]]
    %v927 = vstv %s926
    %v928 = vmul.f32 %v514, %v927
    %v929 = vadd.f32 %v925, %v928
    %s930 = sld [smem:[#allocation2 + $0xef]]
    %v931 = vstv %s930
    %v932 = vmul.f32 %v561, %v931
    %v933 = vadd.f32 %v929, %v932
    %s934 = sld [smem:[#allocation2 + $0xf9]]
    %v935 = vstv %s934
    %v936 = vadd.f32 %v933, %v935
    %v937 = vmax.f32 %v936, 0.0
    %s938 = sld [smem:[#allocation2 + $0x8c]]
    %v939 = vstv %s938
    %v940 = vmul.f32 %v91, %v939
    %s941 = sld [smem:[#allocation2 + $0x96]]
    %v942 = vstv %s941
    %v943 = vmul.f32 %v138, %v942
    %v944 = vadd.f32 %v940, %v943
    %s945 = sld [smem:[#allocation2 + $0xa0]]
    %v946 = vstv %s945
    %v947 = vmul.f32 %v185, %v946
    %v948 = vadd.f32 %v944, %v947
    %s949 = sld [smem:[#allocation2 + $0xaa]]
    %v950 = vstv %s949
    %v951 = vmul.f32 %v232, %v950
    %v952 = vadd.f32 %v948, %v951
    %s953 = sld [smem:[#allocation2 + $0xb4]]
    %v954 = vstv %s953
    %v955 = vmul.f32 %v279, %v954
    %v956 = vadd.f32 %v952, %v955
    %s957 = sld [smem:[#allocation2 + $0xbe]]
    %v958 = vstv %s957
    %v959 = vmul.f32 %v326, %v958
    %v960 = vadd.f32 %v956, %v959
    %s961 = sld [smem:[#allocation2 + $0xc8]]
    %v962 = vstv %s961
    %v963 = vmul.f32 %v373, %v962
    %v964 = vadd.f32 %v960, %v963
    %s965 = sld [smem:[#allocation2 + $0xd2]]
    %v966 = vstv %s965
    %v967 = vmul.f32 %v420, %v966
    %v968 = vadd.f32 %v964, %v967
    %s969 = sld [smem:[#allocation2 + $0xdc]]
    %v970 = vstv %s969
    %v971 = vmul.f32 %v467, %v970
    %v972 = vadd.f32 %v968, %v971
    %s973 = sld [smem:[#allocation2 + $0xe6]]
    %v974 = vstv %s973
    %v975 = vmul.f32 %v514, %v974
    %v976 = vadd.f32 %v972, %v975
    %s977 = sld [smem:[#allocation2 + $0xf0]]
    %v978 = vstv %s977
    %v979 = vmul.f32 %v561, %v978
    %v980 = vadd.f32 %v976, %v979
    %s981 = sld [smem:[#allocation2 + $0xfa]]
    %v982 = vstv %s981
    %v983 = vadd.f32 %v980, %v982
    %v984 = vmax.f32 %v983, 0.0
    %s985 = sld [smem:[#allocation2 + $0x8d]]
    %v986 = vstv %s985
    %v987 = vmul.f32 %v91, %v986
    %s988 = sld [smem:[#allocation2 + $0x97]]
    %v989 = vstv %s988
    %v990 = vmul.f32 %v138, %v989
    %v991 = vadd.f32 %v987, %v990
    %s992 = sld [smem:[#allocation2 + $0xa1]]
    %v993 = vstv %s992
    %v994 = vmul.f32 %v185, %v993
    %v995 = vadd.f32 %v991, %v994
    %s996 = sld [smem:[#allocation2 + $0xab]]
    %v997 = vstv %s996
    %v998 = vmul.f32 %v232, %v997
    %v999 = vadd.f32 %v995, %v998
    %s1000 = sld [smem:[#allocation2 + $0xb5]]
    %v1001 = vstv %s1000
    %v1002 = vmul.f32 %v279, %v1001
    %v1003 = vadd.f32 %v999, %v1002
    %s1004 = sld [smem:[#allocation2 + $0xbf]]
    %v1005 = vstv %s1004
    %v1006 = vmul.f32 %v326, %v1005
    %v1007 = vadd.f32 %v1003, %v1006
    %s1008 = sld [smem:[#allocation2 + $0xc9]]
    %v1009 = vstv %s1008
    %v1010 = vmul.f32 %v373, %v1009
    %v1011 = vadd.f32 %v1007, %v1010
    %s1012 = sld [smem:[#allocation2 + $0xd3]]
    %v1013 = vstv %s1012
    %v1014 = vmul.f32 %v420, %v1013
    %v1015 = vadd.f32 %v1011, %v1014
    %s1016 = sld [smem:[#allocation2 + $0xdd]]
    %v1017 = vstv %s1016
    %v1018 = vmul.f32 %v467, %v1017
    %v1019 = vadd.f32 %v1015, %v1018
    %s1020 = sld [smem:[#allocation2 + $0xe7]]
    %v1021 = vstv %s1020
    %v1022 = vmul.f32 %v514, %v1021
    %v1023 = vadd.f32 %v1019, %v1022
    %s1024 = sld [smem:[#allocation2 + $0xf1]]
    %v1025 = vstv %s1024
    %v1026 = vmul.f32 %v561, %v1025
    %v1027 = vadd.f32 %v1023, %v1026
    %s1028 = sld [smem:[#allocation2 + $0xfb]]
    %v1029 = vstv %s1028
    %v1030 = vadd.f32 %v1027, %v1029
    %v1031 = vmax.f32 %v1030, 0.0
    %s1032 = sld [smem:[#allocation2 + $0xfc]]
    %v1033 = vstv %s1032
    %v1034 = vmul.f32 %v608, %v1033
    %s1035 = sld [smem:[#allocation2 + $0x10b]]
    %v1036 = vstv %s1035
    %v1037 = vmul.f32 %v655, %v1036
    %v1038 = vadd.f32 %v1034, %v1037
    %s1039 = sld [smem:[#allocation2 + $0x11a]]
    %v1040 = vstv %s1039
    %v1041 = vmul.f32 %v702, %v1040
    %v1042 = vadd.f32 %v1038, %v1041
    %s1043 = sld [smem:[#allocation2 + $0x129]]
    %v1044 = vstv %s1043
    %v1045 = vmul.f32 %v749, %v1044
    %v1046 = vadd.f32 %v1042, %v1045
    %s1047 = sld [smem:[#allocation2 + $0x138]]
    %v1048 = vstv %s1047
    %v1049 = vmul.f32 %v796, %v1048
    %v1050 = vadd.f32 %v1046, %v1049
    %s1051 = sld [smem:[#allocation2 + $0x147]]
    %v1052 = vstv %s1051
    %v1053 = vmul.f32 %v843, %v1052
    %v1054 = vadd.f32 %v1050, %v1053
    %s1055 = sld [smem:[#allocation2 + $0x156]]
    %v1056 = vstv %s1055
    %v1057 = vmul.f32 %v890, %v1056
    %v1058 = vadd.f32 %v1054, %v1057
    %s1059 = sld [smem:[#allocation2 + $0x165]]
    %v1060 = vstv %s1059
    %v1061 = vmul.f32 %v937, %v1060
    %v1062 = vadd.f32 %v1058, %v1061
    %s1063 = sld [smem:[#allocation2 + $0x174]]
    %v1064 = vstv %s1063
    %v1065 = vmul.f32 %v984, %v1064
    %v1066 = vadd.f32 %v1062, %v1065
    %s1067 = sld [smem:[#allocation2 + $0x183]]
    %v1068 = vstv %s1067
    %v1069 = vmul.f32 %v1031, %v1068
    %v1070 = vadd.f32 %v1066, %v1069
    %s1071 = sld [smem:[#allocation2 + $0x192]]
    %v1072 = vstv %s1071
    %v1073 = vadd.f32 %v1070, %v1072
    %v1074 = vmax.f32 %v1073, 0.0
    %s1075 = sld [smem:[#allocation2 + $0xfd]]
    %v1076 = vstv %s1075
    %v1077 = vmul.f32 %v608, %v1076
    %s1078 = sld [smem:[#allocation2 + $0x10c]]
    %v1079 = vstv %s1078
    %v1080 = vmul.f32 %v655, %v1079
    %v1081 = vadd.f32 %v1077, %v1080
    %s1082 = sld [smem:[#allocation2 + $0x11b]]
    %v1083 = vstv %s1082
    %v1084 = vmul.f32 %v702, %v1083
    %v1085 = vadd.f32 %v1081, %v1084
    %s1086 = sld [smem:[#allocation2 + $0x12a]]
    %v1087 = vstv %s1086
    %v1088 = vmul.f32 %v749, %v1087
    %v1089 = vadd.f32 %v1085, %v1088
    %s1090 = sld [smem:[#allocation2 + $0x139]]
    %v1091 = vstv %s1090
    %v1092 = vmul.f32 %v796, %v1091
    %v1093 = vadd.f32 %v1089, %v1092
    %s1094 = sld [smem:[#allocation2 + $0x148]]
    %v1095 = vstv %s1094
    %v1096 = vmul.f32 %v843, %v1095
    %v1097 = vadd.f32 %v1093, %v1096
    %s1098 = sld [smem:[#allocation2 + $0x157]]
    %v1099 = vstv %s1098
    %v1100 = vmul.f32 %v890, %v1099
    %v1101 = vadd.f32 %v1097, %v1100
    %s1102 = sld [smem:[#allocation2 + $0x166]]
    %v1103 = vstv %s1102
    %v1104 = vmul.f32 %v937, %v1103
    %v1105 = vadd.f32 %v1101, %v1104
    %s1106 = sld [smem:[#allocation2 + $0x175]]
    %v1107 = vstv %s1106
    %v1108 = vmul.f32 %v984, %v1107
    %v1109 = vadd.f32 %v1105, %v1108
    %s1110 = sld [smem:[#allocation2 + $0x184]]
    %v1111 = vstv %s1110
    %v1112 = vmul.f32 %v1031, %v1111
    %v1113 = vadd.f32 %v1109, %v1112
    %s1114 = sld [smem:[#allocation2 + $0x193]]
    %v1115 = vstv %s1114
    %v1116 = vadd.f32 %v1113, %v1115
    %v1117 = vmax.f32 %v1116, 0.0
    %s1118 = sld [smem:[#allocation2 + $0xfe]]
    %v1119 = vstv %s1118
    %v1120 = vmul.f32 %v608, %v1119
    %s1121 = sld [smem:[#allocation2 + $0x10d]]
    %v1122 = vstv %s1121
    %v1123 = vmul.f32 %v655, %v1122
    %v1124 = vadd.f32 %v1120, %v1123
    %s1125 = sld [smem:[#allocation2 + $0x11c]]
    %v1126 = vstv %s1125
    %v1127 = vmul.f32 %v702, %v1126
    %v1128 = vadd.f32 %v1124, %v1127
    %s1129 = sld [smem:[#allocation2 + $0x12b]]
    %v1130 = vstv %s1129
    %v1131 = vmul.f32 %v749, %v1130
    %v1132 = vadd.f32 %v1128, %v1131
    %s1133 = sld [smem:[#allocation2 + $0x13a]]
    %v1134 = vstv %s1133
    %v1135 = vmul.f32 %v796, %v1134
    %v1136 = vadd.f32 %v1132, %v1135
    %s1137 = sld [smem:[#allocation2 + $0x149]]
    %v1138 = vstv %s1137
    %v1139 = vmul.f32 %v843, %v1138
    %v1140 = vadd.f32 %v1136, %v1139
    %s1141 = sld [smem:[#allocation2 + $0x158]]
    %v1142 = vstv %s1141
    %v1143 = vmul.f32 %v890, %v1142
    %v1144 = vadd.f32 %v1140, %v1143
    %s1145 = sld [smem:[#allocation2 + $0x167]]
    %v1146 = vstv %s1145
    %v1147 = vmul.f32 %v937, %v1146
    %v1148 = vadd.f32 %v1144, %v1147
    %s1149 = sld [smem:[#allocation2 + $0x176]]
    %v1150 = vstv %s1149
    %v1151 = vmul.f32 %v984, %v1150
    %v1152 = vadd.f32 %v1148, %v1151
    %s1153 = sld [smem:[#allocation2 + $0x185]]
    %v1154 = vstv %s1153
    %v1155 = vmul.f32 %v1031, %v1154
    %v1156 = vadd.f32 %v1152, %v1155
    %s1157 = sld [smem:[#allocation2 + $0x194]]
    %v1158 = vstv %s1157
    %v1159 = vadd.f32 %v1156, %v1158
    %v1160 = vmax.f32 %v1159, 0.0
    %s1161 = sld [smem:[#allocation2 + $0xff]]
    %v1162 = vstv %s1161
    %v1163 = vmul.f32 %v608, %v1162
    %s1164 = sld [smem:[#allocation2 + $0x10e]]
    %v1165 = vstv %s1164
    %v1166 = vmul.f32 %v655, %v1165
    %v1167 = vadd.f32 %v1163, %v1166
    %s1168 = sld [smem:[#allocation2 + $0x11d]]
    %v1169 = vstv %s1168
    %v1170 = vmul.f32 %v702, %v1169
    %v1171 = vadd.f32 %v1167, %v1170
    %s1172 = sld [smem:[#allocation2 + $0x12c]]
    %v1173 = vstv %s1172
    %v1174 = vmul.f32 %v749, %v1173
    %v1175 = vadd.f32 %v1171, %v1174
    %s1176 = sld [smem:[#allocation2 + $0x13b]]
    %v1177 = vstv %s1176
    %v1178 = vmul.f32 %v796, %v1177
    %v1179 = vadd.f32 %v1175, %v1178
    %s1180 = sld [smem:[#allocation2 + $0x14a]]
    %v1181 = vstv %s1180
    %v1182 = vmul.f32 %v843, %v1181
    %v1183 = vadd.f32 %v1179, %v1182
    %s1184 = sld [smem:[#allocation2 + $0x159]]
    %v1185 = vstv %s1184
    %v1186 = vmul.f32 %v890, %v1185
    %v1187 = vadd.f32 %v1183, %v1186
    %s1188 = sld [smem:[#allocation2 + $0x168]]
    %v1189 = vstv %s1188
    %v1190 = vmul.f32 %v937, %v1189
    %v1191 = vadd.f32 %v1187, %v1190
    %s1192 = sld [smem:[#allocation2 + $0x177]]
    %v1193 = vstv %s1192
    %v1194 = vmul.f32 %v984, %v1193
    %v1195 = vadd.f32 %v1191, %v1194
    %s1196 = sld [smem:[#allocation2 + $0x186]]
    %v1197 = vstv %s1196
    %v1198 = vmul.f32 %v1031, %v1197
    %v1199 = vadd.f32 %v1195, %v1198
    %s1200 = sld [smem:[#allocation2 + $0x195]]
    %v1201 = vstv %s1200
    %v1202 = vadd.f32 %v1199, %v1201
    %v1203 = vmax.f32 %v1202, 0.0
    %s1204 = sld [smem:[#allocation2 + $0x100]]
    %v1205 = vstv %s1204
    %v1206 = vmul.f32 %v608, %v1205
    %s1207 = sld [smem:[#allocation2 + $0x10f]]
    %v1208 = vstv %s1207
    %v1209 = vmul.f32 %v655, %v1208
    %v1210 = vadd.f32 %v1206, %v1209
    %s1211 = sld [smem:[#allocation2 + $0x11e]]
    %v1212 = vstv %s1211
    %v1213 = vmul.f32 %v702, %v1212
    %v1214 = vadd.f32 %v1210, %v1213
    %s1215 = sld [smem:[#allocation2 + $0x12d]]
    %v1216 = vstv %s1215
    %v1217 = vmul.f32 %v749, %v1216
    %v1218 = vadd.f32 %v1214, %v1217
    %s1219 = sld [smem:[#allocation2 + $0x13c]]
    %v1220 = vstv %s1219
    %v1221 = vmul.f32 %v796, %v1220
    %v1222 = vadd.f32 %v1218, %v1221
    %s1223 = sld [smem:[#allocation2 + $0x14b]]
    %v1224 = vstv %s1223
    %v1225 = vmul.f32 %v843, %v1224
    %v1226 = vadd.f32 %v1222, %v1225
    %s1227 = sld [smem:[#allocation2 + $0x15a]]
    %v1228 = vstv %s1227
    %v1229 = vmul.f32 %v890, %v1228
    %v1230 = vadd.f32 %v1226, %v1229
    %s1231 = sld [smem:[#allocation2 + $0x169]]
    %v1232 = vstv %s1231
    %v1233 = vmul.f32 %v937, %v1232
    %v1234 = vadd.f32 %v1230, %v1233
    %s1235 = sld [smem:[#allocation2 + $0x178]]
    %v1236 = vstv %s1235
    %v1237 = vmul.f32 %v984, %v1236
    %v1238 = vadd.f32 %v1234, %v1237
    %s1239 = sld [smem:[#allocation2 + $0x187]]
    %v1240 = vstv %s1239
    %v1241 = vmul.f32 %v1031, %v1240
    %v1242 = vadd.f32 %v1238, %v1241
    %s1243 = sld [smem:[#allocation2 + $0x196]]
    %v1244 = vstv %s1243
    %v1245 = vadd.f32 %v1242, %v1244
    %v1246 = vmax.f32 %v1245, 0.0
    %s1247 = sld [smem:[#allocation2 + $0x101]]
    %v1248 = vstv %s1247
    %v1249 = vmul.f32 %v608, %v1248
    %s1250 = sld [smem:[#allocation2 + $0x110]]
    %v1251 = vstv %s1250
    %v1252 = vmul.f32 %v655, %v1251
    %v1253 = vadd.f32 %v1249, %v1252
    %s1254 = sld [smem:[#allocation2 + $0x11f]]
    %v1255 = vstv %s1254
    %v1256 = vmul.f32 %v702, %v1255
    %v1257 = vadd.f32 %v1253, %v1256
    %s1258 = sld [smem:[#allocation2 + $0x12e]]
    %v1259 = vstv %s1258
    %v1260 = vmul.f32 %v749, %v1259
    %v1261 = vadd.f32 %v1257, %v1260
    %s1262 = sld [smem:[#allocation2 + $0x13d]]
    %v1263 = vstv %s1262
    %v1264 = vmul.f32 %v796, %v1263
    %v1265 = vadd.f32 %v1261, %v1264
    %s1266 = sld [smem:[#allocation2 + $0x14c]]
    %v1267 = vstv %s1266
    %v1268 = vmul.f32 %v843, %v1267
    %v1269 = vadd.f32 %v1265, %v1268
    %s1270 = sld [smem:[#allocation2 + $0x15b]]
    %v1271 = vstv %s1270
    %v1272 = vmul.f32 %v890, %v1271
    %v1273 = vadd.f32 %v1269, %v1272
    %s1274 = sld [smem:[#allocation2 + $0x16a]]
    %v1275 = vstv %s1274
    %v1276 = vmul.f32 %v937, %v1275
    %v1277 = vadd.f32 %v1273, %v1276
    %s1278 = sld [smem:[#allocation2 + $0x179]]
    %v1279 = vstv %s1278
    %v1280 = vmul.f32 %v984, %v1279
    %v1281 = vadd.f32 %v1277, %v1280
    %s1282 = sld [smem:[#allocation2 + $0x188]]
    %v1283 = vstv %s1282
    %v1284 = vmul.f32 %v1031, %v1283
    %v1285 = vadd.f32 %v1281, %v1284
    %s1286 = sld [smem:[#allocation2 + $0x197]]
    %v1287 = vstv %s1286
    %v1288 = vadd.f32 %v1285, %v1287
    %v1289 = vmax.f32 %v1288, 0.0
    %s1290 = sld [smem:[#allocation2 + $0x102]]
    %v1291 = vstv %s1290
    %v1292 = vmul.f32 %v608, %v1291
    %s1293 = sld [smem:[#allocation2 + $0x111]]
    %v1294 = vstv %s1293
    %v1295 = vmul.f32 %v655, %v1294
    %v1296 = vadd.f32 %v1292, %v1295
    %s1297 = sld [smem:[#allocation2 + $0x120]]
    %v1298 = vstv %s1297
    %v1299 = vmul.f32 %v702, %v1298
    %v1300 = vadd.f32 %v1296, %v1299
    %s1301 = sld [smem:[#allocation2 + $0x12f]]
    %v1302 = vstv %s1301
    %v1303 = vmul.f32 %v749, %v1302
    %v1304 = vadd.f32 %v1300, %v1303
    %s1305 = sld [smem:[#allocation2 + $0x13e]]
    %v1306 = vstv %s1305
    %v1307 = vmul.f32 %v796, %v1306
    %v1308 = vadd.f32 %v1304, %v1307
    %s1309 = sld [smem:[#allocation2 + $0x14d]]
    %v1310 = vstv %s1309
    %v1311 = vmul.f32 %v843, %v1310
    %v1312 = vadd.f32 %v1308, %v1311
    %s1313 = sld [smem:[#allocation2 + $0x15c]]
    %v1314 = vstv %s1313
    %v1315 = vmul.f32 %v890, %v1314
    %v1316 = vadd.f32 %v1312, %v1315
    %s1317 = sld [smem:[#allocation2 + $0x16b]]
    %v1318 = vstv %s1317
    %v1319 = vmul.f32 %v937, %v1318
    %v1320 = vadd.f32 %v1316, %v1319
    %s1321 = sld [smem:[#allocation2 + $0x17a]]
    %v1322 = vstv %s1321
    %v1323 = vmul.f32 %v984, %v1322
    %v1324 = vadd.f32 %v1320, %v1323
    %s1325 = sld [smem:[#allocation2 + $0x189]]
    %v1326 = vstv %s1325
    %v1327 = vmul.f32 %v1031, %v1326
    %v1328 = vadd.f32 %v1324, %v1327
    %s1329 = sld [smem:[#allocation2 + $0x198]]
    %v1330 = vstv %s1329
    %v1331 = vadd.f32 %v1328, %v1330
    %v1332 = vmax.f32 %v1331, 0.0
    %s1333 = sld [smem:[#allocation2 + $0x103]]
    %v1334 = vstv %s1333
    %v1335 = vmul.f32 %v608, %v1334
    %s1336 = sld [smem:[#allocation2 + $0x112]]
    %v1337 = vstv %s1336
    %v1338 = vmul.f32 %v655, %v1337
    %v1339 = vadd.f32 %v1335, %v1338
    %s1340 = sld [smem:[#allocation2 + $0x121]]
    %v1341 = vstv %s1340
    %v1342 = vmul.f32 %v702, %v1341
    %v1343 = vadd.f32 %v1339, %v1342
    %s1344 = sld [smem:[#allocation2 + $0x130]]
    %v1345 = vstv %s1344
    %v1346 = vmul.f32 %v749, %v1345
    %v1347 = vadd.f32 %v1343, %v1346
    %s1348 = sld [smem:[#allocation2 + $0x13f]]
    %v1349 = vstv %s1348
    %v1350 = vmul.f32 %v796, %v1349
    %v1351 = vadd.f32 %v1347, %v1350
    %s1352 = sld [smem:[#allocation2 + $0x14e]]
    %v1353 = vstv %s1352
    %v1354 = vmul.f32 %v843, %v1353
    %v1355 = vadd.f32 %v1351, %v1354
    %s1356 = sld [smem:[#allocation2 + $0x15d]]
    %v1357 = vstv %s1356
    %v1358 = vmul.f32 %v890, %v1357
    %v1359 = vadd.f32 %v1355, %v1358
    %s1360 = sld [smem:[#allocation2 + $0x16c]]
    %v1361 = vstv %s1360
    %v1362 = vmul.f32 %v937, %v1361
    %v1363 = vadd.f32 %v1359, %v1362
    %s1364 = sld [smem:[#allocation2 + $0x17b]]
    %v1365 = vstv %s1364
    %v1366 = vmul.f32 %v984, %v1365
    %v1367 = vadd.f32 %v1363, %v1366
    %s1368 = sld [smem:[#allocation2 + $0x18a]]
    %v1369 = vstv %s1368
    %v1370 = vmul.f32 %v1031, %v1369
    %v1371 = vadd.f32 %v1367, %v1370
    %s1372 = sld [smem:[#allocation2 + $0x199]]
    %v1373 = vstv %s1372
    %v1374 = vadd.f32 %v1371, %v1373
    %v1375 = vmax.f32 %v1374, 0.0
    %s1376 = sld [smem:[#allocation2 + $0x104]]
    %v1377 = vstv %s1376
    %v1378 = vmul.f32 %v608, %v1377
    %s1379 = sld [smem:[#allocation2 + $0x113]]
    %v1380 = vstv %s1379
    %v1381 = vmul.f32 %v655, %v1380
    %v1382 = vadd.f32 %v1378, %v1381
    %s1383 = sld [smem:[#allocation2 + $0x122]]
    %v1384 = vstv %s1383
    %v1385 = vmul.f32 %v702, %v1384
    %v1386 = vadd.f32 %v1382, %v1385
    %s1387 = sld [smem:[#allocation2 + $0x131]]
    %v1388 = vstv %s1387
    %v1389 = vmul.f32 %v749, %v1388
    %v1390 = vadd.f32 %v1386, %v1389
    %s1391 = sld [smem:[#allocation2 + $0x140]]
    %v1392 = vstv %s1391
    %v1393 = vmul.f32 %v796, %v1392
    %v1394 = vadd.f32 %v1390, %v1393
    %s1395 = sld [smem:[#allocation2 + $0x14f]]
    %v1396 = vstv %s1395
    %v1397 = vmul.f32 %v843, %v1396
    %v1398 = vadd.f32 %v1394, %v1397
    %s1399 = sld [smem:[#allocation2 + $0x15e]]
    %v1400 = vstv %s1399
    %v1401 = vmul.f32 %v890, %v1400
    %v1402 = vadd.f32 %v1398, %v1401
    %s1403 = sld [smem:[#allocation2 + $0x16d]]
    %v1404 = vstv %s1403
    %v1405 = vmul.f32 %v937, %v1404
    %v1406 = vadd.f32 %v1402, %v1405
    %s1407 = sld [smem:[#allocation2 + $0x17c]]
    %v1408 = vstv %s1407
    %v1409 = vmul.f32 %v984, %v1408
    %v1410 = vadd.f32 %v1406, %v1409
    %s1411 = sld [smem:[#allocation2 + $0x18b]]
    %v1412 = vstv %s1411
    %v1413 = vmul.f32 %v1031, %v1412
    %v1414 = vadd.f32 %v1410, %v1413
    %s1415 = sld [smem:[#allocation2 + $0x19a]]
    %v1416 = vstv %s1415
    %v1417 = vadd.f32 %v1414, %v1416
    %v1418 = vmax.f32 %v1417, 0.0
    %s1419 = sld [smem:[#allocation2 + $0x105]]
    %v1420 = vstv %s1419
    %v1421 = vmul.f32 %v608, %v1420
    %s1422 = sld [smem:[#allocation2 + $0x114]]
    %v1423 = vstv %s1422
    %v1424 = vmul.f32 %v655, %v1423
    %v1425 = vadd.f32 %v1421, %v1424
    %s1426 = sld [smem:[#allocation2 + $0x123]]
    %v1427 = vstv %s1426
    %v1428 = vmul.f32 %v702, %v1427
    %v1429 = vadd.f32 %v1425, %v1428
    %s1430 = sld [smem:[#allocation2 + $0x132]]
    %v1431 = vstv %s1430
    %v1432 = vmul.f32 %v749, %v1431
    %v1433 = vadd.f32 %v1429, %v1432
    %s1434 = sld [smem:[#allocation2 + $0x141]]
    %v1435 = vstv %s1434
    %v1436 = vmul.f32 %v796, %v1435
    %v1437 = vadd.f32 %v1433, %v1436
    %s1438 = sld [smem:[#allocation2 + $0x150]]
    %v1439 = vstv %s1438
    %v1440 = vmul.f32 %v843, %v1439
    %v1441 = vadd.f32 %v1437, %v1440
    %s1442 = sld [smem:[#allocation2 + $0x15f]]
    %v1443 = vstv %s1442
    %v1444 = vmul.f32 %v890, %v1443
    %v1445 = vadd.f32 %v1441, %v1444
    %s1446 = sld [smem:[#allocation2 + $0x16e]]
    %v1447 = vstv %s1446
    %v1448 = vmul.f32 %v937, %v1447
    %v1449 = vadd.f32 %v1445, %v1448
    %s1450 = sld [smem:[#allocation2 + $0x17d]]
    %v1451 = vstv %s1450
    %v1452 = vmul.f32 %v984, %v1451
    %v1453 = vadd.f32 %v1449, %v1452
    %s1454 = sld [smem:[#allocation2 + $0x18c]]
    %v1455 = vstv %s1454
    %v1456 = vmul.f32 %v1031, %v1455
    %v1457 = vadd.f32 %v1453, %v1456
    %s1458 = sld [smem:[#allocation2 + $0x19b]]
    %v1459 = vstv %s1458
    %v1460 = vadd.f32 %v1457, %v1459
    %v1461 = vmax.f32 %v1460, 0.0
    %s1462 = sld [smem:[#allocation2 + $0x106]]
    %v1463 = vstv %s1462
    %v1464 = vmul.f32 %v608, %v1463
    %s1465 = sld [smem:[#allocation2 + $0x115]]
    %v1466 = vstv %s1465
    %v1467 = vmul.f32 %v655, %v1466
    %v1468 = vadd.f32 %v1464, %v1467
    %s1469 = sld [smem:[#allocation2 + $0x124]]
    %v1470 = vstv %s1469
    %v1471 = vmul.f32 %v702, %v1470
    %v1472 = vadd.f32 %v1468, %v1471
    %s1473 = sld [smem:[#allocation2 + $0x133]]
    %v1474 = vstv %s1473
    %v1475 = vmul.f32 %v749, %v1474
    %v1476 = vadd.f32 %v1472, %v1475
    %s1477 = sld [smem:[#allocation2 + $0x142]]
    %v1478 = vstv %s1477
    %v1479 = vmul.f32 %v796, %v1478
    %v1480 = vadd.f32 %v1476, %v1479
    %s1481 = sld [smem:[#allocation2 + $0x151]]
    %v1482 = vstv %s1481
    %v1483 = vmul.f32 %v843, %v1482
    %v1484 = vadd.f32 %v1480, %v1483
    %s1485 = sld [smem:[#allocation2 + $0x160]]
    %v1486 = vstv %s1485
    %v1487 = vmul.f32 %v890, %v1486
    %v1488 = vadd.f32 %v1484, %v1487
    %s1489 = sld [smem:[#allocation2 + $0x16f]]
    %v1490 = vstv %s1489
    %v1491 = vmul.f32 %v937, %v1490
    %v1492 = vadd.f32 %v1488, %v1491
    %s1493 = sld [smem:[#allocation2 + $0x17e]]
    %v1494 = vstv %s1493
    %v1495 = vmul.f32 %v984, %v1494
    %v1496 = vadd.f32 %v1492, %v1495
    %s1497 = sld [smem:[#allocation2 + $0x18d]]
    %v1498 = vstv %s1497
    %v1499 = vmul.f32 %v1031, %v1498
    %v1500 = vadd.f32 %v1496, %v1499
    %s1501 = sld [smem:[#allocation2 + $0x19c]]
    %v1502 = vstv %s1501
    %v1503 = vadd.f32 %v1500, %v1502
    %v1504 = vmax.f32 %v1503, 0.0
    %s1505 = sld [smem:[#allocation2 + $0x107]]
    %v1506 = vstv %s1505
    %v1507 = vmul.f32 %v608, %v1506
    %s1508 = sld [smem:[#allocation2 + $0x116]]
    %v1509 = vstv %s1508
    %v1510 = vmul.f32 %v655, %v1509
    %v1511 = vadd.f32 %v1507, %v1510
    %s1512 = sld [smem:[#allocation2 + $0x125]]
    %v1513 = vstv %s1512
    %v1514 = vmul.f32 %v702, %v1513
    %v1515 = vadd.f32 %v1511, %v1514
    %s1516 = sld [smem:[#allocation2 + $0x134]]
    %v1517 = vstv %s1516
    %v1518 = vmul.f32 %v749, %v1517
    %v1519 = vadd.f32 %v1515, %v1518
    %s1520 = sld [smem:[#allocation2 + $0x143]]
    %v1521 = vstv %s1520
    %v1522 = vmul.f32 %v796, %v1521
    %v1523 = vadd.f32 %v1519, %v1522
    %s1524 = sld [smem:[#allocation2 + $0x152]]
    %v1525 = vstv %s1524
    %v1526 = vmul.f32 %v843, %v1525
    %v1527 = vadd.f32 %v1523, %v1526
    %s1528 = sld [smem:[#allocation2 + $0x161]]
    %v1529 = vstv %s1528
    %v1530 = vmul.f32 %v890, %v1529
    %v1531 = vadd.f32 %v1527, %v1530
    %s1532 = sld [smem:[#allocation2 + $0x170]]
    %v1533 = vstv %s1532
    %v1534 = vmul.f32 %v937, %v1533
    %v1535 = vadd.f32 %v1531, %v1534
    %s1536 = sld [smem:[#allocation2 + $0x17f]]
    %v1537 = vstv %s1536
    %v1538 = vmul.f32 %v984, %v1537
    %v1539 = vadd.f32 %v1535, %v1538
    %s1540 = sld [smem:[#allocation2 + $0x18e]]
    %v1541 = vstv %s1540
    %v1542 = vmul.f32 %v1031, %v1541
    %v1543 = vadd.f32 %v1539, %v1542
    %s1544 = sld [smem:[#allocation2 + $0x19d]]
    %v1545 = vstv %s1544
    %v1546 = vadd.f32 %v1543, %v1545
    %v1547 = vmax.f32 %v1546, 0.0
    %s1548 = sld [smem:[#allocation2 + $0x108]]
    %v1549 = vstv %s1548
    %v1550 = vmul.f32 %v608, %v1549
    %s1551 = sld [smem:[#allocation2 + $0x117]]
    %v1552 = vstv %s1551
    %v1553 = vmul.f32 %v655, %v1552
    %v1554 = vadd.f32 %v1550, %v1553
    %s1555 = sld [smem:[#allocation2 + $0x126]]
    %v1556 = vstv %s1555
    %v1557 = vmul.f32 %v702, %v1556
    %v1558 = vadd.f32 %v1554, %v1557
    %s1559 = sld [smem:[#allocation2 + $0x135]]
    %v1560 = vstv %s1559
    %v1561 = vmul.f32 %v749, %v1560
    %v1562 = vadd.f32 %v1558, %v1561
    %s1563 = sld [smem:[#allocation2 + $0x144]]
    %v1564 = vstv %s1563
    %v1565 = vmul.f32 %v796, %v1564
    %v1566 = vadd.f32 %v1562, %v1565
    %s1567 = sld [smem:[#allocation2 + $0x153]]
    %v1568 = vstv %s1567
    %v1569 = vmul.f32 %v843, %v1568
    %v1570 = vadd.f32 %v1566, %v1569
    %s1571 = sld [smem:[#allocation2 + $0x162]]
    %v1572 = vstv %s1571
    %v1573 = vmul.f32 %v890, %v1572
    %v1574 = vadd.f32 %v1570, %v1573
    %s1575 = sld [smem:[#allocation2 + $0x171]]
    %v1576 = vstv %s1575
    %v1577 = vmul.f32 %v937, %v1576
    %v1578 = vadd.f32 %v1574, %v1577
    %s1579 = sld [smem:[#allocation2 + $0x180]]
    %v1580 = vstv %s1579
    %v1581 = vmul.f32 %v984, %v1580
    %v1582 = vadd.f32 %v1578, %v1581
    %s1583 = sld [smem:[#allocation2 + $0x18f]]
    %v1584 = vstv %s1583
    %v1585 = vmul.f32 %v1031, %v1584
    %v1586 = vadd.f32 %v1582, %v1585
    %s1587 = sld [smem:[#allocation2 + $0x19e]]
    %v1588 = vstv %s1587
    %v1589 = vadd.f32 %v1586, %v1588
    %v1590 = vmax.f32 %v1589, 0.0
    %s1591 = sld [smem:[#allocation2 + $0x109]]
    %v1592 = vstv %s1591
    %v1593 = vmul.f32 %v608, %v1592
    %s1594 = sld [smem:[#allocation2 + $0x118]]
    %v1595 = vstv %s1594
    %v1596 = vmul.f32 %v655, %v1595
    %v1597 = vadd.f32 %v1593, %v1596
    %s1598 = sld [smem:[#allocation2 + $0x127]]
    %v1599 = vstv %s1598
    %v1600 = vmul.f32 %v702, %v1599
    %v1601 = vadd.f32 %v1597, %v1600
    %s1602 = sld [smem:[#allocation2 + $0x136]]
    %v1603 = vstv %s1602
    %v1604 = vmul.f32 %v749, %v1603
    %v1605 = vadd.f32 %v1601, %v1604
    %s1606 = sld [smem:[#allocation2 + $0x145]]
    %v1607 = vstv %s1606
    %v1608 = vmul.f32 %v796, %v1607
    %v1609 = vadd.f32 %v1605, %v1608
    %s1610 = sld [smem:[#allocation2 + $0x154]]
    %v1611 = vstv %s1610
    %v1612 = vmul.f32 %v843, %v1611
    %v1613 = vadd.f32 %v1609, %v1612
    %s1614 = sld [smem:[#allocation2 + $0x163]]
    %v1615 = vstv %s1614
    %v1616 = vmul.f32 %v890, %v1615
    %v1617 = vadd.f32 %v1613, %v1616
    %s1618 = sld [smem:[#allocation2 + $0x172]]
    %v1619 = vstv %s1618
    %v1620 = vmul.f32 %v937, %v1619
    %v1621 = vadd.f32 %v1617, %v1620
    %s1622 = sld [smem:[#allocation2 + $0x181]]
    %v1623 = vstv %s1622
    %v1624 = vmul.f32 %v984, %v1623
    %v1625 = vadd.f32 %v1621, %v1624
    %s1626 = sld [smem:[#allocation2 + $0x190]]
    %v1627 = vstv %s1626
    %v1628 = vmul.f32 %v1031, %v1627
    %v1629 = vadd.f32 %v1625, %v1628
    %s1630 = sld [smem:[#allocation2 + $0x19f]]
    %v1631 = vstv %s1630
    %v1632 = vadd.f32 %v1629, %v1631
    %v1633 = vmax.f32 %v1632, 0.0
    %s1634 = sld [smem:[#allocation2 + $0x10a]]
    %v1635 = vstv %s1634
    %v1636 = vmul.f32 %v608, %v1635
    %s1637 = sld [smem:[#allocation2 + $0x119]]
    %v1638 = vstv %s1637
    %v1639 = vmul.f32 %v655, %v1638
    %v1640 = vadd.f32 %v1636, %v1639
    %s1641 = sld [smem:[#allocation2 + $0x128]]
    %v1642 = vstv %s1641
    %v1643 = vmul.f32 %v702, %v1642
    %v1644 = vadd.f32 %v1640, %v1643
    %s1645 = sld [smem:[#allocation2 + $0x137]]
    %v1646 = vstv %s1645
    %v1647 = vmul.f32 %v749, %v1646
    %v1648 = vadd.f32 %v1644, %v1647
    %s1649 = sld [smem:[#allocation2 + $0x146]]
    %v1650 = vstv %s1649
    %v1651 = vmul.f32 %v796, %v1650
    %v1652 = vadd.f32 %v1648, %v1651
    %s1653 = sld [smem:[#allocation2 + $0x155]]
    %v1654 = vstv %s1653
    %v1655 = vmul.f32 %v843, %v1654
    %v1656 = vadd.f32 %v1652, %v1655
    %s1657 = sld [smem:[#allocation2 + $0x164]]
    %v1658 = vstv %s1657
    %v1659 = vmul.f32 %v890, %v1658
    %v1660 = vadd.f32 %v1656, %v1659
    %s1661 = sld [smem:[#allocation2 + $0x173]]
    %v1662 = vstv %s1661
    %v1663 = vmul.f32 %v937, %v1662
    %v1664 = vadd.f32 %v1660, %v1663
    %s1665 = sld [smem:[#allocation2 + $0x182]]
    %v1666 = vstv %s1665
    %v1667 = vmul.f32 %v984, %v1666
    %v1668 = vadd.f32 %v1664, %v1667
    %s1669 = sld [smem:[#allocation2 + $0x191]]
    %v1670 = vstv %s1669
    %v1671 = vmul.f32 %v1031, %v1670
    %v1672 = vadd.f32 %v1668, %v1671
    %s1673 = sld [smem:[#allocation2 + $0x1a0]]
    %v1674 = vstv %s1673
    %v1675 = vadd.f32 %v1672, %v1674
    %v1676 = vmax.f32 %v1675, 0.0
    %s1677 = sld [smem:[#allocation2 + $0x1a1]]
    %v1678 = vstv %s1677
    %v1679 = vmul.f32 %v1074, %v1678
    %s1680 = sld [smem:[#allocation2 + $0x1a2]]
    %v1681 = vstv %s1680
    %v1682 = vmul.f32 %v1117, %v1681
    %v1683 = vadd.f32 %v1679, %v1682
    %s1684 = sld [smem:[#allocation2 + $0x1a3]]
    %v1685 = vstv %s1684
    %v1686 = vmul.f32 %v1160, %v1685
    %v1687 = vadd.f32 %v1683, %v1686
    %s1688 = sld [smem:[#allocation2 + $0x1a4]]
    %v1689 = vstv %s1688
    %v1690 = vmul.f32 %v1203, %v1689
    %v1691 = vadd.f32 %v1687, %v1690
    %s1692 = sld [smem:[#allocation2 + $0x1a5]]
    %v1693 = vstv %s1692
    %v1694 = vmul.f32 %v1246, %v1693
    %v1695 = vadd.f32 %v1691, %v1694
    %s1696 = sld [smem:[#allocation2 + $0x1a6]]
    %v1697 = vstv %s1696
    %v1698 = vmul.f32 %v1289, %v1697
    %v1699 = vadd.f32 %v1695, %v1698
    %s1700 = sld [smem:[#allocation2 + $0x1a7]]
    %v1701 = vstv %s1700
    %v1702 = vmul.f32 %v1332, %v1701
    %v1703 = vadd.f32 %v1699, %v1702
    %s1704 = sld [smem:[#allocation2 + $0x1a8]]
    %v1705 = vstv %s1704
    %v1706 = vmul.f32 %v1375, %v1705
    %v1707 = vadd.f32 %v1703, %v1706
    %s1708 = sld [smem:[#allocation2 + $0x1a9]]
    %v1709 = vstv %s1708
    %v1710 = vmul.f32 %v1418, %v1709
    %v1711 = vadd.f32 %v1707, %v1710
    %s1712 = sld [smem:[#allocation2 + $0x1aa]]
    %v1713 = vstv %s1712
    %v1714 = vmul.f32 %v1461, %v1713
    %v1715 = vadd.f32 %v1711, %v1714
    %s1716 = sld [smem:[#allocation2 + $0x1ab]]
    %v1717 = vstv %s1716
    %v1718 = vmul.f32 %v1504, %v1717
    %v1719 = vadd.f32 %v1715, %v1718
    %s1720 = sld [smem:[#allocation2 + $0x1ac]]
    %v1721 = vstv %s1720
    %v1722 = vmul.f32 %v1547, %v1721
    %v1723 = vadd.f32 %v1719, %v1722
    %s1724 = sld [smem:[#allocation2 + $0x1ad]]
    %v1725 = vstv %s1724
    %v1726 = vmul.f32 %v1590, %v1725
    %v1727 = vadd.f32 %v1723, %v1726
    %s1728 = sld [smem:[#allocation2 + $0x1ae]]
    %v1729 = vstv %s1728
    %v1730 = vmul.f32 %v1633, %v1729
    %v1731 = vadd.f32 %v1727, %v1730
    %s1732 = sld [smem:[#allocation2 + $0x1af]]
    %v1733 = vstv %s1732
    %v1734 = vmul.f32 %v1676, %v1733
    %v1735 = vadd.f32 %v1731, %v1734
    %s1736 = sld [smem:[#allocation2 + $0x1b0]]
    %v1737 = vstv %s1736
    %v1738 = vadd.f32 %v1735, %v1737
    %v1739 = vxor.u32 %v1738, 2147483648
    %v1740 = vmul.f32 %v1739, 1.442695
    %v1741 = vpow.pop %v1740
    %v1742 = vadd.f32 %v1741, 1.0
    %v1743 = vrcp.pop %v1742
    %v1744 = vmul.f32 %v1742, %v1743
    %v1745 = vsub.f32 1.0, %v1744
    %v1746 = vmul.f32 %v1743, %v1745
    %v1747 = vadd.f32 %v1743, %v1746
    %vm1748 = vweird.f32 %v1742
    %vm1749 = vweird.f32 %v1743
    %vm1750 = vmor %vm1748, %vm1749
    %v1751 = vsel %vm1750, %v1743, %v1747
    %v1752 = vand.u32 2147483647, %v1742
    %vm1753 = vcmp.eq.f32.partialorder %v1752, 8.507059e+37
    %v1754 = vand.u32 %v1742, 2147483648
    %v1755 = vor.u32 1.1754944e-38, %v1754
    %v1756 = vsel %vm1753, %v1755, %v1751
    %v1757 = vmul.f32 1.0, %v1756
    %1758 = vst [vmem:[%s2] sm:$0x1] %v1757
    // Predicated region
    $region14: #{heart_disease_ann_forward.1} parent=1 // pred_check
      _
    $region15: #{heart_disease_ann_forward.1} parent=1 // pred_check_branch
      %1760 = sbr.rel (0) target = $region17
    $region16: #{heart_disease_ann_forward.1} parent=1 // pred_region
      _
    $region17: #{heart_disease_ann_forward.1} parent=1 // pred_fallthru
      _
    // Predicated region
    $region18: #{heart_disease_ann_forward.1} parent=1 // pred_check
      _
    $region19: #{heart_disease_ann_forward.1} parent=1 // pred_check_branch
      %1762 = sbr.rel (0) target = $region21
    $region20: #{heart_disease_ann_forward.1} parent=1 // pred_region
      _
    $region21: #{heart_disease_ann_forward.1} parent=1 // pred_fallthru
      _
    %1763 = vsyncpa [#allocation3], 1

</llo_original>
